<compile_context>
chip_gen: v6e
topology: v6e:2x2x1
jax: 0.10.0
libtpu: 0.0.40
codegen_flags: <defaults>
</compile_context>

<pallas_src>
import functools

import numpy as np
import jax
import jax.numpy as jnp
from jax.experimental import pallas as pl
from jax.experimental.pallas import tpu as pltpu

N_QUBITS = 4
N_LAYERS = 2
DIM = 2 ** N_QUBITS          # 16 basis states
QK = 2 * N_QUBITS            # 8: fused Q|K projection width
MIB = 1024 * 1024


# ----------------------------------------------------------------------------
# Circuit-unitary construction (weights-only, done once outside the kernel).
# ----------------------------------------------------------------------------
def _rz(a):
    return np.array([[np.exp(-1j * a / 2), 0.0], [0.0, np.exp(1j * a / 2)]],
                    dtype=np.complex128)


def _ry(a):
    c, s = np.cos(a / 2), np.sin(a / 2)
    return np.array([[c, -s], [s, c]], dtype=np.complex128)


def _rot(phi, theta, omega):
    # PennyLane Rot(phi, theta, omega) = RZ(omega) RY(theta) RZ(phi)
    return _rz(omega) @ _ry(theta) @ _rz(phi)


def _single_qubit_full(gate, wire, n):
    ops = [np.eye(2, dtype=np.complex128)] * n
    ops[wire] = gate
    full = ops[0]
    for o in ops[1:]:
        full = np.kron(full, o)  # wire 0 = most-significant bit (PennyLane order)
    return full


def _cnot_full(control, target, n):
    dim = 2 ** n
    m = np.zeros((dim, dim), dtype=np.complex128)
    for b in range(dim):
        cbit = (b >> (n - 1 - control)) & 1
        b2 = b ^ (1 << (n - 1 - target)) if cbit else b
        m[b2, b] = 1.0
    return m


def strongly_entangling_unitary(weights, n):
    """16x16 unitary of StronglyEntanglingLayers(weights) for n wires."""
    dim = 2 ** n
    u = np.eye(dim, dtype=np.complex128)
    for l in range(weights.shape[0]):
        r = (l % (n - 1)) + 1  # PennyLane default ranges
        for i in range(n):
            g = _rot(weights[l, i, 0], weights[l, i, 1], weights[l, i, 2])
            u = _single_qubit_full(g, i, n) @ u
        for i in range(n):
            u = _cnot_full(i, (i + r) % n, n) @ u
    return u


def _basis_tables():
    """Static lookup tables (bit table, RX phases, Pauli-Z signs)."""
    sel = np.zeros((N_QUBITS, DIM), dtype=np.float32)   # sel[i, b] = bit_i(b)
    for b in range(DIM):
        for i in range(N_QUBITS):
            sel[i, b] = (b >> (N_QUBITS - 1 - i)) & 1
    popcount = sel.sum(axis=0).astype(np.int32)          # (16,)
    # amplitude phase = (-i)^popcount
    ph_re = np.array([[1.0, 0.0, -1.0, 0.0][k % 4] for k in popcount],
                     dtype=np.float32).reshape(1, DIM)
    ph_im = np.array([[0.0, -1.0, 0.0, 1.0][k % 4] for k in popcount],
                     dtype=np.float32).reshape(1, DIM)
    zsign = (1.0 - 2.0 * sel.T).astype(np.float32)       # (16, 4)
    return sel, ph_re, ph_im, zsign


# ----------------------------------------------------------------------------
# Pallas kernel: one grid step == one batch tile of bt elements.
# ----------------------------------------------------------------------------
def _qattn_kernel(emb_ref, wcat_ref, bcat_ref, mfold_ref, zcat_ref, out_ref,
                  *, lane_dense_out):
    emb3 = emb_ref[...]                                   # (bt, S, H)
    bt, s_len, h = emb3.shape
    rows = bt * s_len
    # Layout-free only because the wrapper enforces S % 8 == 0 (sublane count).
    emb2 = emb3.reshape(rows, h)

    # Fused Q|K projection: one (rows, H) @ (H, 8) MXU matmul (bf16 or f32
    # operands, f32 accumulate) + bias.
    qk = jnp.dot(emb2, wcat_ref[...],
                 preferred_element_type=jnp.float32) + bcat_ref[...]   # (rows, 8)

    # ---- lane-dense VQC -----------------------------------------------------
    # Q and K stay side-by-side in lanes (no row stacking): trig runs once on
    # the (rows, 8) angle block; the 16 Q-basis magnitudes occupy lanes 0..15
    # and the 16 K-basis magnitudes lanes 16..31 of one (rows, 32) array.
    c = jnp.cos(0.5 * qk)                                 # (rows, 8)  EUP
    s = jnp.sin(0.5 * qk)                                 # (rows, 8)  EUP
    d = s - c

    lane = jax.lax.broadcasted_iota(jnp.int32, (1, 2 * DIM), 1)    # 0..31
    b_idx = lane & (DIM - 1)                                        # basis index
    is_k = lane >= DIM                                              # K-half mask

    # |amp(b)| = prod_i (cos if bit_i(b)==0 else sin); the (-i)^popcount phase
    # of the RX embedding is pre-folded into mfold.
    mags = None
    for i in range(N_QUBITS):
        bit = ((b_idx >> (N_QUBITS - 1 - i)) & 1).astype(jnp.float32)   # (1, 32)
        fq = c[:, i:i + 1] + d[:, i:i + 1] * bit                        # (rows, 32)
        fk = (c[:, N_QUBITS + i:N_QUBITS + i + 1]
              + d[:, N_QUBITS + i:N_QUBITS + i + 1] * bit)
        f = jnp.where(is_k, fk, fq)
        mags = f if mags is None else mags * f                          # (rows, 32)

    # Block-diagonal folded unitary: (rows,32)@(32,64) ->
    # [phiQ_re | phiQ_im | phiK_re | phiK_im]
    phi = jnp.dot(mags, mfold_ref[...], preferred_element_type=jnp.float32)
    # <Z_i> = sum_b |phi_b|^2 * zsign[b, i]: (rows,64)@(64,8) -> [Qv | Kv]
    z = jnp.dot(phi * phi, zcat_ref[...], preferred_element_type=jnp.float32)

    qv = z[:, :N_QUBITS].reshape(bt, s_len, N_QUBITS)
    kv = z[:, N_QUBITS:].reshape(bt, s_len, N_QUBITS)

    # Attention: softmax(Qv Kv^T) @ emb (the module applies no 1/sqrt(d) scale).
    # TODO(synk): for long sequences, tile the K axis with an online softmax
    # instead of materializing the full (bt, S, S) score block.
    scores = jnp.einsum('bqd,bkd->bqk', qv, kv,
                        preferred_element_type=jnp.float32)
    scores = scores - jnp.max(scores, axis=-1, keepdims=True)
    e = jnp.exp(scores)
    # Exact reciprocal: the denominator is only (bt, S, 1), so this costs ~0 and
    # removes the approx-normalization correctness concern.
    attn = e * (1.0 / jnp.sum(e, axis=-1, keepdims=True))

    out3 = jnp.einsum('bqk,bkh->bqh', attn.astype(emb3.dtype), emb3,
                      preferred_element_type=jnp.float32)
    if lane_dense_out:
        # Relayout to (bt, S*H): S*H is a multiple of 128, so stores are
        # unmasked full-lane vst instead of H(=32)-lane masked stores.
        out_ref[...] = out3.reshape(bt, s_len * h)
    else:
        out_ref[...] = out3


# ----------------------------------------------------------------------------
# Generation-aware tiling.
# ----------------------------------------------------------------------------
def _tpu_info():
    """(vmem_capacity_bytes, multi_tensorcore) with conservative fallbacks."""
    vmem_cap = 64 * MIB          # conservative (v7x-sized) fallback
    multi_tc = False
    try:
        vmem_cap = int(pltpu.get_tpu_info().vmem_capacity_bytes)
    except Exception:
        pass
    try:
        kind = jax.devices()[0].device_kind.lower()
        multi_tc = ("v7" in kind) or ("tpu7" in kind)
    except Exception:
        pass
    return vmem_cap, multi_tc


def _per_batch_vmem_bytes(S, H, emb_bytes):
    """Rough steady-state VMEM cost of one batch element in the tile."""
    io = 2 * S * H * emb_bytes + 2 * S * H * 4     # double-buffered in + f32 out
    inter = S * 7 * 128 * 4                        # qk/c/s/d/mags/phi/z, lane-padded
    smax = 3 * S * S * 4                           # scores / e / attn
    return io + inter + smax


def _pick_batch_tile(B, S, H, emb_bytes, block_budget, multi_tc):
    per_b = max(1, _per_batch_vmem_bytes(S, H, emb_bytes))
    cap = max(1, block_budget // per_b)
    if multi_tc and B >= 2:
        # Only dual-TensorCore chips (v7x) need >= 2 "parallel" grid steps;
        # on single-TC v5e/v6e we keep the tile as large as the budget allows.
        cap = min(cap, max(1, B // 2))
    cap = min(cap, B)
    for d in range(cap, 0, -1):
        if B % d == 0:
            return d
    return 1


def _build_call(B, S, H, bt, vmem_limit, lane_dense_out):
    kernel = functools.partial(_qattn_kernel, lane_dense_out=lane_dense_out)
    if lane_dense_out:
        out_shape = jax.ShapeDtypeStruct((B, S * H), jnp.float32)
        out_spec = pl.BlockSpec((bt, S * H), lambda i: (i, 0))
    else:
        out_shape = jax.ShapeDtypeStruct((B, S, H), jnp.float32)
        out_spec = pl.BlockSpec((bt, S, H), lambda i: (i, 0, 0))
    const2d = lambda shape: pl.BlockSpec(shape, lambda i: (0, 0))
    return pl.pallas_call(
        kernel,
        out_shape=out_shape,
        grid=(B // bt,),
        in_specs=[
            pl.BlockSpec((bt, S, H), lambda i: (i, 0, 0)),   # embeddings tile
            const2d((H, QK)),                                # fused Wq|Wk (pre-transposed)
            const2d((1, QK)),                                # fused bq|bk
            const2d((2 * DIM, 4 * DIM)),                     # block-diag folded unitary
            const2d((4 * DIM, QK)),                          # block-diag Z-sign table
        ],
        out_specs=out_spec,
        compiler_params=pltpu.CompilerParams(
            dimension_semantics=("parallel",),
            vmem_limit_bytes=int(vmem_limit)),
    )


def quantum_attention_forward(emb, wq, bq, wk, bk, vqc_weights, *,
                              batch_tile=None, emb_matmul_dtype=jnp.float32):
    """emb: (B, S, H) -> (B, S, H) float32.

    emb_matmul_dtype=jnp.bfloat16 halves HBM traffic for the dominant array and
    feeds the MXU at full bf16 rate (v6e/v7x); all trig / softmax math stays in
    f32 (v5e has no bf16 VPU/EUP), and the output is always f32.
    """
    B, S, H = emb.shape
    if S % 8 != 0:
        # TODO(synk): pad S up to a multiple of 8; the in-kernel
        # (bt,S,H)->(bt*S,H) reshape is only layout-free when S % 8 == 0.
        raise ValueError("sequence length S must be a multiple of 8")

    # Host-side, weights-only precompute of the 4-qubit circuit unitary.
    # TODO(synk): vqc_weights must be concrete here (np.asarray); route through
    # jax.pure_callback / a static argument if this layer is traced under jit.
    u = strongly_entangling_unitary(np.asarray(vqc_weights, np.float64), N_QUBITS)
    _, ph_re, ph_im, zsign = _basis_tables()
    ph = (ph_re + 1j * ph_im).reshape(DIM)
    c_fold = np.diag(ph) @ u.T                              # (16,16), RX phases folded
    mfold = np.concatenate([c_fold.real, c_fold.imag], axis=1).astype(np.float32)
    zcat = np.concatenate([zsign, zsign], axis=0).astype(np.float32)      # (32, 4)

    # Block-diagonal versions so Q and K stay side-by-side in lanes.
    mfold_big = np.zeros((2 * DIM, 4 * DIM), np.float32)
    mfold_big[:DIM, :2 * DIM] = mfold
    mfold_big[DIM:, 2 * DIM:] = mfold
    zcat_big = np.zeros((4 * DIM, QK), np.float32)
    zcat_big[:2 * DIM, :N_QUBITS] = zcat
    zcat_big[2 * DIM:, N_QUBITS:] = zcat

    mm_dtype = np.dtype(emb_matmul_dtype)
    emb_c = jnp.asarray(emb).astype(mm_dtype)
    wcat = jnp.concatenate([jnp.asarray(wq, jnp.float32).T,
                            jnp.asarray(wk, jnp.float32).T],
                           axis=1).astype(mm_dtype)                       # (H, 8)
    bcat = jnp.concatenate([jnp.asarray(bq, jnp.float32),
                            jnp.asarray(bk, jnp.float32)]).reshape(1, QK)

    vmem_cap, multi_tc = _tpu_info()
    # Block budget per the review: ~12 MiB on 128-MiB-VMEM chips (v5e/v6e),
    # ~7 MiB on v7x (64 MiB); raise the scoped limit explicitly.
    block_budget = 12 * MIB if vmem_cap >= 96 * MIB else 7 * MIB
    vmem_limit = max(32 * MIB, min(3 * vmem_cap // 4, 96 * MIB))

    bt = batch_tile if batch_tile is not None else _pick_batch_tile(
        B, S, H, mm_dtype.itemsize, block_budget, multi_tc)
    assert B % bt == 0, "batch tile must divide batch"

    args = (emb_c, wcat, bcat, jnp.asarray(mfold_big), jnp.asarray(zcat_big))

    # Lane-dense (bt, S*H) output store, valid when the block is sublane-aligned
    # along the batch axis; otherwise (or if the relayout fails to lower) fall
    # back to the (bt, S, H) output layout.
    lane_dense_ok = (bt % 8 == 0) or (bt == B)
    if lane_dense_ok:
        try:
            out = _build_call(B, S, H, bt, vmem_limit, True)(*args)
            return jax.block_until_ready(out).reshape(B, S, H)
        except Exception:
            pass
    return _build_call(B, S, H, bt, vmem_limit, False)(*args)


# ----------------------------------------------------------------------------
# Pure numpy reference (same math, f64) used only for a correctness check.
# ----------------------------------------------------------------------------
def _reference_forward(emb, wq, bq, wk, bk, vqc_weights):
    u = strongly_entangling_unitary(np.asarray(vqc_weights, np.float64), N_QUBITS)
    sel_np, ph_re_np, ph_im_np, zsign_np = _basis_tables()

    def vqc(x):  # (..., 4)
        x = np.asarray(x, np.float64)
        flat = x.reshape(-1, N_QUBITS)
        c, s = np.cos(flat / 2), np.sin(flat / 2)
        mags = np.ones((flat.shape[0], DIM))
        for i in range(N_QUBITS):
            seli = sel_np[i]
            mags *= c[:, i:i + 1] * (1 - seli) + s[:, i:i + 1] * seli
        psi = mags * (ph_re_np + 1j * ph_im_np)
        phi = psi @ u.T
        probs = np.abs(phi) ** 2
        return (probs @ zsign_np).reshape(x.shape).astype(np.float32)

    emb_np = np.asarray(emb)
    q = emb_np @ np.asarray(wq).T + np.asarray(bq)
    k = emb_np @ np.asarray(wk).T + np.asarray(bk)
    qv, kv = vqc(q), vqc(k)
    scores = qv @ np.swapaxes(kv, -1, -2)
    scores = scores - scores.max(-1, keepdims=True)
    e = np.exp(scores)
    attn = e / e.sum(-1, keepdims=True)
    return (attn @ emb_np).astype(np.float32)


if __name__ == "__main__":
    B, S, H = 4, 8, 32
    key = jax.random.PRNGKey(0)
    k_emb, k_wq, k_bq, k_wk, k_bk, k_vqc = jax.random.split(key, 6)

    emb = jax.random.normal(k_emb, (B, S, H), dtype=jnp.float32)
    bound = 1.0 / np.sqrt(H)
    wq = jax.random.uniform(k_wq, (N_QUBITS, H), jnp.float32, -bound, bound)
    bq = jax.random.uniform(k_bq, (N_QUBITS,), jnp.float32, -bound, bound)
    wk = jax.random.uniform(k_wk, (N_QUBITS, H), jnp.float32, -bound, bound)
    bk = jax.random.uniform(k_bk, (N_QUBITS,), jnp.float32, -bound, bound)
    vqc_weights = jax.random.uniform(k_vqc, (N_LAYERS, N_QUBITS, 3), jnp.float32,
                                     0.0, 2.0 * np.pi)

    ref = _reference_forward(emb, wq, bq, wk, bk, vqc_weights)

    # f32 path (matches the PyTorch module's precision).
    out = quantum_attention_forward(emb, wq, bq, wk, bk, vqc_weights)
    out = jax.block_until_ready(out)
    np.testing.assert_allclose(np.asarray(out), ref, rtol=1e-3, atol=1e-3)

    # bf16-embeddings path (v6e/v7x HBM-traffic optimization); looser tolerance
    # because emb / Wqk / attn are quantized to bf16 for the MXU matmuls.
    out_bf16 = quantum_attention_forward(emb, wq, bq, wk, bk, vqc_weights,
                                         emb_matmul_dtype=jnp.bfloat16)
    out_bf16 = jax.block_until_ready(out_bf16)
    np.testing.assert_allclose(np.asarray(out_bf16), ref, rtol=1e-1, atol=1e-1)

    print("KERNEL_OK")
</pallas_src>

<mosaic_0001>
module attributes {stable_mosaic.version = 11 : i64} {
  func.func @_qattn_kernel(%arg0: i32, %arg1: memref<4x8x32xf32, #tpu.memory_space<vmem>>, %arg2: memref<32x8xf32, #tpu.memory_space<vmem>>, %arg3: memref<1x8xf32, #tpu.memory_space<vmem>>, %arg4: memref<32x64xf32, #tpu.memory_space<vmem>>, %arg5: memref<64x8xf32, #tpu.memory_space<vmem>>, %arg6: memref<4x256xf32, #tpu.memory_space<vmem>>) attributes {dimension_semantics = [#tpu.dimension_semantics<parallel>], iteration_bounds = array<i64: 1>, scalar_prefetch = 0 : i64, scratch_operands = 0 : i64, tpu.core_type = #tpu.core_type<tc>, window_params = [{transform_indices = @transform_0, window_bounds = array<i64: 4, 8, 32>}, {pipeline_mode = #tpu.pipeline_mode<synchronous>, transform_indices = @transform_1, window_bounds = array<i64: 32, 8>}, {pipeline_mode = #tpu.pipeline_mode<synchronous>, transform_indices = @transform_2, window_bounds = array<i64: 1, 8>}, {pipeline_mode = #tpu.pipeline_mode<synchronous>, transform_indices = @transform_3, window_bounds = array<i64: 32, 64>}, {pipeline_mode = #tpu.pipeline_mode<synchronous>, transform_indices = @transform_4, window_bounds = array<i64: 64, 8>}, {transform_indices = @transform_5, window_bounds = array<i64: 4, 256>}]} {
    %c0 = arith.constant 0 : index
    %c0_0 = arith.constant 0 : index
    %c0_1 = arith.constant 0 : index
    %0 = vector.load %arg1[%c0, %c0_0, %c0_1] : memref<4x8x32xf32, #tpu.memory_space<vmem>>, vector<4x8x32xf32>
    %1 = vector.shape_cast %0 : vector<4x8x32xf32> to vector<32x32xf32>
    %c0_2 = arith.constant 0 : index
    %c0_3 = arith.constant 0 : index
    %2 = vector.load %arg2[%c0_2, %c0_3] : memref<32x8xf32, #tpu.memory_space<vmem>>, vector<32x8xf32>
    %cst = arith.constant dense<0.000000e+00> : vector<32x8xf32>
    %3 = tpu.matmul %1, %2, %cst {dimension_numbers = #tpu.dot_dimension_numbers<[1], [0], [0], [1], [0, 0, 1, 1], [], []>} : vector<32x32xf32>, vector<32x8xf32>, vector<32x8xf32> -> vector<32x8xf32>
    %c0_4 = arith.constant 0 : index
    %c0_5 = arith.constant 0 : index
    %4 = vector.load %arg3[%c0_4, %c0_5] : memref<1x8xf32, #tpu.memory_space<vmem>>, vector<1x8xf32>
    %5 = vector.broadcast %4 : vector<1x8xf32> to vector<32x8xf32>
    %6 = arith.addf %3, %5 : vector<32x8xf32>
    %cst_6 = arith.constant 5.000000e-01 : f32
    %7 = vector.broadcast %cst_6 : f32 to vector<32x8xf32>
    %8 = arith.mulf %7, %6 : vector<32x8xf32>
    %9 = math.cos %8 : vector<32x8xf32>
    %cst_7 = arith.constant 5.000000e-01 : f32
    %10 = vector.broadcast %cst_7 : f32 to vector<32x8xf32>
    %11 = arith.mulf %10, %6 : vector<32x8xf32>
    %12 = math.sin %11 : vector<32x8xf32>
    %13 = arith.subf %12, %9 : vector<32x8xf32>
    %14 = tpu.iota {dimensions = array<i32: 1>} : vector<1x32xi32>
    %c15_i32 = arith.constant 15 : i32
    %15 = vector.broadcast %c15_i32 : i32 to vector<1x32xi32>
    %16 = arith.andi %14, %15 : vector<1x32xi32>
    %c16_i32 = arith.constant 16 : i32
    %17 = vector.broadcast %c16_i32 : i32 to vector<1x32xi32>
    %18 = arith.cmpi sge, %14, %17 : vector<1x32xi32>
    %c3_i32 = arith.constant 3 : i32
    %19 = vector.broadcast %c3_i32 : i32 to vector<1x32xi32>
    %20 = arith.shrsi %16, %19 : vector<1x32xi32>
    %c1_i32 = arith.constant 1 : i32
    %21 = vector.broadcast %c1_i32 : i32 to vector<1x32xi32>
    %22 = arith.andi %20, %21 : vector<1x32xi32>
    %23 = arith.sitofp %22 : vector<1x32xi32> to vector<1x32xf32>
    %24 = vector.extract_strided_slice %9 {offsets = [0, 0], sizes = [32, 1], strides = [1, 1]} : vector<32x8xf32> to vector<32x1xf32>
    %25 = vector.extract_strided_slice %13 {offsets = [0, 0], sizes = [32, 1], strides = [1, 1]} : vector<32x8xf32> to vector<32x1xf32>
    %26 = vector.broadcast %25 : vector<32x1xf32> to vector<32x32xf32>
    %27 = vector.broadcast %23 : vector<1x32xf32> to vector<32x32xf32>
    %28 = arith.mulf %26, %27 : vector<32x32xf32>
    %29 = vector.broadcast %24 : vector<32x1xf32> to vector<32x32xf32>
    %30 = arith.addf %29, %28 : vector<32x32xf32>
    %31 = vector.extract_strided_slice %9 {offsets = [0, 4], sizes = [32, 1], strides = [1, 1]} : vector<32x8xf32> to vector<32x1xf32>
    %32 = vector.extract_strided_slice %13 {offsets = [0, 4], sizes = [32, 1], strides = [1, 1]} : vector<32x8xf32> to vector<32x1xf32>
    %33 = vector.broadcast %32 : vector<32x1xf32> to vector<32x32xf32>
    %34 = vector.broadcast %23 : vector<1x32xf32> to vector<32x32xf32>
    %35 = arith.mulf %33, %34 : vector<32x32xf32>
    %36 = vector.broadcast %31 : vector<32x1xf32> to vector<32x32xf32>
    %37 = arith.addf %36, %35 : vector<32x32xf32>
    %38 = vector.shape_cast %18 : vector<1x32xi1> to vector<1x32xi1>
    %39 = vector.broadcast %38 : vector<1x32xi1> to vector<32x32xi1>
    %40 = arith.select %39, %37, %30 : vector<32x32xi1>, vector<32x32xf32>
    %c2_i32 = arith.constant 2 : i32
    %41 = vector.broadcast %c2_i32 : i32 to vector<1x32xi32>
    %42 = arith.shrsi %16, %41 : vector<1x32xi32>
    %c1_i32_8 = arith.constant 1 : i32
    %43 = vector.broadcast %c1_i32_8 : i32 to vector<1x32xi32>
    %44 = arith.andi %42, %43 : vector<1x32xi32>
    %45 = arith.sitofp %44 : vector<1x32xi32> to vector<1x32xf32>
    %46 = vector.extract_strided_slice %9 {offsets = [0, 1], sizes = [32, 1], strides = [1, 1]} : vector<32x8xf32> to vector<32x1xf32>
    %47 = vector.extract_strided_slice %13 {offsets = [0, 1], sizes = [32, 1], strides = [1, 1]} : vector<32x8xf32> to vector<32x1xf32>
    %48 = vector.broadcast %47 : vector<32x1xf32> to vector<32x32xf32>
    %49 = vector.broadcast %45 : vector<1x32xf32> to vector<32x32xf32>
    %50 = arith.mulf %48, %49 : vector<32x32xf32>
    %51 = vector.broadcast %46 : vector<32x1xf32> to vector<32x32xf32>
    %52 = arith.addf %51, %50 : vector<32x32xf32>
    %53 = vector.extract_strided_slice %9 {offsets = [0, 5], sizes = [32, 1], strides = [1, 1]} : vector<32x8xf32> to vector<32x1xf32>
    %54 = vector.extract_strided_slice %13 {offsets = [0, 5], sizes = [32, 1], strides = [1, 1]} : vector<32x8xf32> to vector<32x1xf32>
    %55 = vector.broadcast %54 : vector<32x1xf32> to vector<32x32xf32>
    %56 = vector.broadcast %45 : vector<1x32xf32> to vector<32x32xf32>
    %57 = arith.mulf %55, %56 : vector<32x32xf32>
    %58 = vector.broadcast %53 : vector<32x1xf32> to vector<32x32xf32>
    %59 = arith.addf %58, %57 : vector<32x32xf32>
    %60 = vector.shape_cast %18 : vector<1x32xi1> to vector<1x32xi1>
    %61 = vector.broadcast %60 : vector<1x32xi1> to vector<32x32xi1>
    %62 = arith.select %61, %59, %52 : vector<32x32xi1>, vector<32x32xf32>
    %63 = arith.mulf %40, %62 : vector<32x32xf32>
    %c1_i32_9 = arith.constant 1 : i32
    %64 = vector.broadcast %c1_i32_9 : i32 to vector<1x32xi32>
    %65 = arith.shrsi %16, %64 : vector<1x32xi32>
    %c1_i32_10 = arith.constant 1 : i32
    %66 = vector.broadcast %c1_i32_10 : i32 to vector<1x32xi32>
    %67 = arith.andi %65, %66 : vector<1x32xi32>
    %68 = arith.sitofp %67 : vector<1x32xi32> to vector<1x32xf32>
    %69 = vector.extract_strided_slice %9 {offsets = [0, 2], sizes = [32, 1], strides = [1, 1]} : vector<32x8xf32> to vector<32x1xf32>
    %70 = vector.extract_strided_slice %13 {offsets = [0, 2], sizes = [32, 1], strides = [1, 1]} : vector<32x8xf32> to vector<32x1xf32>
    %71 = vector.broadcast %70 : vector<32x1xf32> to vector<32x32xf32>
    %72 = vector.broadcast %68 : vector<1x32xf32> to vector<32x32xf32>
    %73 = arith.mulf %71, %72 : vector<32x32xf32>
    %74 = vector.broadcast %69 : vector<32x1xf32> to vector<32x32xf32>
    %75 = arith.addf %74, %73 : vector<32x32xf32>
    %76 = vector.extract_strided_slice %9 {offsets = [0, 6], sizes = [32, 1], strides = [1, 1]} : vector<32x8xf32> to vector<32x1xf32>
    %77 = vector.extract_strided_slice %13 {offsets = [0, 6], sizes = [32, 1], strides = [1, 1]} : vector<32x8xf32> to vector<32x1xf32>
    %78 = vector.broadcast %77 : vector<32x1xf32> to vector<32x32xf32>
    %79 = vector.broadcast %68 : vector<1x32xf32> to vector<32x32xf32>
    %80 = arith.mulf %78, %79 : vector<32x32xf32>
    %81 = vector.broadcast %76 : vector<32x1xf32> to vector<32x32xf32>
    %82 = arith.addf %81, %80 : vector<32x32xf32>
    %83 = vector.shape_cast %18 : vector<1x32xi1> to vector<1x32xi1>
    %84 = vector.broadcast %83 : vector<1x32xi1> to vector<32x32xi1>
    %85 = arith.select %84, %82, %75 : vector<32x32xi1>, vector<32x32xf32>
    %86 = arith.mulf %63, %85 : vector<32x32xf32>
    %c0_i32 = arith.constant 0 : i32
    %87 = vector.broadcast %c0_i32 : i32 to vector<1x32xi32>
    %88 = arith.shrsi %16, %87 : vector<1x32xi32>
    %c1_i32_11 = arith.constant 1 : i32
    %89 = vector.broadcast %c1_i32_11 : i32 to vector<1x32xi32>
    %90 = arith.andi %88, %89 : vector<1x32xi32>
    %91 = arith.sitofp %90 : vector<1x32xi32> to vector<1x32xf32>
    %92 = vector.extract_strided_slice %9 {offsets = [0, 3], sizes = [32, 1], strides = [1, 1]} : vector<32x8xf32> to vector<32x1xf32>
    %93 = vector.extract_strided_slice %13 {offsets = [0, 3], sizes = [32, 1], strides = [1, 1]} : vector<32x8xf32> to vector<32x1xf32>
    %94 = vector.broadcast %93 : vector<32x1xf32> to vector<32x32xf32>
    %95 = vector.broadcast %91 : vector<1x32xf32> to vector<32x32xf32>
    %96 = arith.mulf %94, %95 : vector<32x32xf32>
    %97 = vector.broadcast %92 : vector<32x1xf32> to vector<32x32xf32>
    %98 = arith.addf %97, %96 : vector<32x32xf32>
    %99 = vector.extract_strided_slice %9 {offsets = [0, 7], sizes = [32, 1], strides = [1, 1]} : vector<32x8xf32> to vector<32x1xf32>
    %100 = vector.extract_strided_slice %13 {offsets = [0, 7], sizes = [32, 1], strides = [1, 1]} : vector<32x8xf32> to vector<32x1xf32>
    %101 = vector.broadcast %100 : vector<32x1xf32> to vector<32x32xf32>
    %102 = vector.broadcast %91 : vector<1x32xf32> to vector<32x32xf32>
    %103 = arith.mulf %101, %102 : vector<32x32xf32>
    %104 = vector.broadcast %99 : vector<32x1xf32> to vector<32x32xf32>
    %105 = arith.addf %104, %103 : vector<32x32xf32>
    %106 = vector.shape_cast %18 : vector<1x32xi1> to vector<1x32xi1>
    %107 = vector.broadcast %106 : vector<1x32xi1> to vector<32x32xi1>
    %108 = arith.select %107, %105, %98 : vector<32x32xi1>, vector<32x32xf32>
    %109 = arith.mulf %86, %108 : vector<32x32xf32>
    %c0_12 = arith.constant 0 : index
    %c0_13 = arith.constant 0 : index
    %110 = vector.load %arg4[%c0_12, %c0_13] : memref<32x64xf32, #tpu.memory_space<vmem>>, vector<32x64xf32>
    %cst_14 = arith.constant dense<0.000000e+00> : vector<32x64xf32>
    %111 = tpu.matmul %109, %110, %cst_14 {dimension_numbers = #tpu.dot_dimension_numbers<[1], [0], [0], [1], [0, 0, 1, 1], [], []>} : vector<32x32xf32>, vector<32x64xf32>, vector<32x64xf32> -> vector<32x64xf32>
    %112 = arith.mulf %111, %111 : vector<32x64xf32>
    %c0_15 = arith.constant 0 : index
    %c0_16 = arith.constant 0 : index
    %113 = vector.load %arg5[%c0_15, %c0_16] : memref<64x8xf32, #tpu.memory_space<vmem>>, vector<64x8xf32>
    %cst_17 = arith.constant dense<0.000000e+00> : vector<32x8xf32>
    %114 = tpu.matmul %112, %113, %cst_17 {dimension_numbers = #tpu.dot_dimension_numbers<[1], [0], [0], [1], [0, 0, 1, 1], [], []>} : vector<32x64xf32>, vector<64x8xf32>, vector<32x8xf32> -> vector<32x8xf32>
    %115 = vector.extract_strided_slice %114 {offsets = [0, 0], sizes = [32, 4], strides = [1, 1]} : vector<32x8xf32> to vector<32x4xf32>
    %116 = vector.shape_cast %115 : vector<32x4xf32> to vector<4x8x4xf32>
    %117 = vector.extract_strided_slice %114 {offsets = [0, 4], sizes = [32, 4], strides = [1, 1]} : vector<32x8xf32> to vector<32x4xf32>
    %118 = vector.shape_cast %117 : vector<32x4xf32> to vector<4x8x4xf32>
    "tpu.trace_start"() <{level = 10 : i32, message = "bqd,bkd->bqk"}> : () -> ()
    %cst_18 = arith.constant dense<0.000000e+00> : vector<4x8x8xf32>
    %119 = tpu.matmul %116, %118, %cst_18 {dimension_numbers = #tpu.dot_dimension_numbers<[2], [2], [1], [1], [0, 0, 0, 1, 1, 1], [0], [0]>} : vector<4x8x4xf32>, vector<4x8x4xf32>, vector<4x8x8xf32> -> vector<4x8x8xf32>
    "tpu.trace_stop"() : () -> ()
    %cst_19 = arith.constant dense<0xFF800000> : vector<4x8xf32>
    %120 = vector.multi_reduction <maximumf>, %119, %cst_19 [2] : vector<4x8x8xf32> to vector<4x8xf32>
    %121 = vector.shape_cast %120 : vector<4x8xf32> to vector<4x8x1xf32>
    %122 = vector.broadcast %121 : vector<4x8x1xf32> to vector<4x8x8xf32>
    %123 = arith.subf %119, %122 : vector<4x8x8xf32>
    %124 = math.exp %123 : vector<4x8x8xf32>
    %cst_20 = arith.constant dense<0.000000e+00> : vector<4x8xf32>
    %125 = vector.multi_reduction <add>, %124, %cst_20 [2] : vector<4x8x8xf32> to vector<4x8xf32>
    %126 = vector.shape_cast %125 : vector<4x8xf32> to vector<4x8x1xf32>
    %cst_21 = arith.constant 1.000000e+00 : f32
    %127 = vector.broadcast %cst_21 : f32 to vector<4x8x1xf32>
    %128 = arith.divf %127, %126 : vector<4x8x1xf32>
    %129 = vector.broadcast %128 : vector<4x8x1xf32> to vector<4x8x8xf32>
    %130 = arith.mulf %124, %129 : vector<4x8x8xf32>
    "tpu.trace_start"() <{level = 10 : i32, message = "bqk,bkh->bqh"}> : () -> ()
    %cst_22 = arith.constant dense<0.000000e+00> : vector<4x8x32xf32>
    %131 = tpu.matmul %130, %0, %cst_22 {dimension_numbers = #tpu.dot_dimension_numbers<[2], [1], [1], [2], [0, 0, 0, 1, 1, 2], [0], [0]>} : vector<4x8x8xf32>, vector<4x8x32xf32>, vector<4x8x32xf32> -> vector<4x8x32xf32>
    "tpu.trace_stop"() : () -> ()
    %132 = vector.shape_cast %131 : vector<4x8x32xf32> to vector<4x256xf32>
    %c0_23 = arith.constant 0 : index
    %c0_24 = arith.constant 0 : index
    %133 = vector.load %arg6[%c0_23, %c0_24] : memref<4x256xf32, #tpu.memory_space<vmem>>, vector<4x256xf32>
    tpu.vector_store %arg6[%c0_23, %c0_24], %132 {strides = array<i32>} : memref<4x256xf32, #tpu.memory_space<vmem>>, vector<4x256xf32>,
    return
  }
  func.func @transform_0(%arg0: i32) -> (i32, i32, i32) {
    %c0_i32 = arith.constant 0 : i32
    %c0_i32_0 = arith.constant 0 : i32
    %c0_i32_1 = arith.constant 0 : i32
    return %arg0, %c0_i32, %c0_i32_0 : i32, i32, i32
  }
  func.func @transform_1(%arg0: i32) -> (i32, i32) {
    %c0_i32 = arith.constant 0 : i32
    %c0_i32_0 = arith.constant 0 : i32
    %c0_i32_1 = arith.constant 0 : i32
    return %c0_i32, %c0_i32_0 : i32, i32
  }
  func.func @transform_2(%arg0: i32) -> (i32, i32) {
    %c0_i32 = arith.constant 0 : i32
    %c0_i32_0 = arith.constant 0 : i32
    %c0_i32_1 = arith.constant 0 : i32
    return %c0_i32, %c0_i32_0 : i32, i32
  }
  func.func @transform_3(%arg0: i32) -> (i32, i32) {
    %c0_i32 = arith.constant 0 : i32
    %c0_i32_0 = arith.constant 0 : i32
    %c0_i32_1 = arith.constant 0 : i32
    return %c0_i32, %c0_i32_0 : i32, i32
  }
  func.func @transform_4(%arg0: i32) -> (i32, i32) {
    %c0_i32 = arith.constant 0 : i32
    %c0_i32_0 = arith.constant 0 : i32
    %c0_i32_1 = arith.constant 0 : i32
    return %c0_i32, %c0_i32_0 : i32, i32
  }
  func.func @transform_5(%arg0: i32) -> (i32, i32) {
    %c0_i32 = arith.constant 0 : i32
    %c0_i32_0 = arith.constant 0 : i32
    return %arg0, %c0_i32 : i32, i32
  }
}

module attributes {stable_mosaic.version = 11 : i64} {
  func.func @_qattn_kernel(%arg0: i32, %arg1: memref<4x8x32xf32, #tpu.memory_space<vmem>>, %arg2: memref<32x8xf32, #tpu.memory_space<vmem>>, %arg3: memref<1x8xf32, #tpu.memory_space<vmem>>, %arg4: memref<32x64xf32, #tpu.memory_space<vmem>>, %arg5: memref<64x8xf32, #tpu.memory_space<vmem>>, %arg6: memref<4x8x32xf32, #tpu.memory_space<vmem>>) attributes {dimension_semantics = [#tpu.dimension_semantics<parallel>], iteration_bounds = array<i64: 1>, scalar_prefetch = 0 : i64, scratch_operands = 0 : i64, tpu.core_type = #tpu.core_type<tc>, window_params = [{transform_indices = @transform_0, window_bounds = array<i64: 4, 8, 32>}, {pipeline_mode = #tpu.pipeline_mode<synchronous>, transform_indices = @transform_1, window_bounds = array<i64: 32, 8>}, {pipeline_mode = #tpu.pipeline_mode<synchronous>, transform_indices = @transform_2, window_bounds = array<i64: 1, 8>}, {pipeline_mode = #tpu.pipeline_mode<synchronous>, transform_indices = @transform_3, window_bounds = array<i64: 32, 64>}, {pipeline_mode = #tpu.pipeline_mode<synchronous>, transform_indices = @transform_4, window_bounds = array<i64: 64, 8>}, {transform_indices = @transform_5, window_bounds = array<i64: 4, 8, 32>}]} {
    %c0 = arith.constant 0 : index
    %c0_0 = arith.constant 0 : index
    %c0_1 = arith.constant 0 : index
    %0 = vector.load %arg1[%c0, %c0_0, %c0_1] : memref<4x8x32xf32, #tpu.memory_space<vmem>>, vector<4x8x32xf32>
    %1 = vector.shape_cast %0 : vector<4x8x32xf32> to vector<32x32xf32>
    %c0_2 = arith.constant 0 : index
    %c0_3 = arith.constant 0 : index
    %2 = vector.load %arg2[%c0_2, %c0_3] : memref<32x8xf32, #tpu.memory_space<vmem>>, vector<32x8xf32>
    %cst = arith.constant dense<0.000000e+00> : vector<32x8xf32>
    %3 = tpu.matmul %1, %2, %cst {dimension_numbers = #tpu.dot_dimension_numbers<[1], [0], [0], [1], [0, 0, 1, 1], [], []>} : vector<32x32xf32>, vector<32x8xf32>, vector<32x8xf32> -> vector<32x8xf32>
    %c0_4 = arith.constant 0 : index
    %c0_5 = arith.constant 0 : index
    %4 = vector.load %arg3[%c0_4, %c0_5] : memref<1x8xf32, #tpu.memory_space<vmem>>, vector<1x8xf32>
    %5 = vector.broadcast %4 : vector<1x8xf32> to vector<32x8xf32>
    %6 = arith.addf %3, %5 : vector<32x8xf32>
    %cst_6 = arith.constant 5.000000e-01 : f32
    %7 = vector.broadcast %cst_6 : f32 to vector<32x8xf32>
    %8 = arith.mulf %7, %6 : vector<32x8xf32>
    %9 = math.cos %8 : vector<32x8xf32>
    %cst_7 = arith.constant 5.000000e-01 : f32
    %10 = vector.broadcast %cst_7 : f32 to vector<32x8xf32>
    %11 = arith.mulf %10, %6 : vector<32x8xf32>
    %12 = math.sin %11 : vector<32x8xf32>
    %13 = arith.subf %12, %9 : vector<32x8xf32>
    %14 = tpu.iota {dimensions = array<i32: 1>} : vector<1x32xi32>
    %c15_i32 = arith.constant 15 : i32
    %15 = vector.broadcast %c15_i32 : i32 to vector<1x32xi32>
    %16 = arith.andi %14, %15 : vector<1x32xi32>
    %c16_i32 = arith.constant 16 : i32
    %17 = vector.broadcast %c16_i32 : i32 to vector<1x32xi32>
    %18 = arith.cmpi sge, %14, %17 : vector<1x32xi32>
    %c3_i32 = arith.constant 3 : i32
    %19 = vector.broadcast %c3_i32 : i32 to vector<1x32xi32>
    %20 = arith.shrsi %16, %19 : vector<1x32xi32>
    %c1_i32 = arith.constant 1 : i32
    %21 = vector.broadcast %c1_i32 : i32 to vector<1x32xi32>
    %22 = arith.andi %20, %21 : vector<1x32xi32>
    %23 = arith.sitofp %22 : vector<1x32xi32> to vector<1x32xf32>
    %24 = vector.extract_strided_slice %9 {offsets = [0, 0], sizes = [32, 1], strides = [1, 1]} : vector<32x8xf32> to vector<32x1xf32>
    %25 = vector.extract_strided_slice %13 {offsets = [0, 0], sizes = [32, 1], strides = [1, 1]} : vector<32x8xf32> to vector<32x1xf32>
    %26 = vector.broadcast %25 : vector<32x1xf32> to vector<32x32xf32>
    %27 = vector.broadcast %23 : vector<1x32xf32> to vector<32x32xf32>
    %28 = arith.mulf %26, %27 : vector<32x32xf32>
    %29 = vector.broadcast %24 : vector<32x1xf32> to vector<32x32xf32>
    %30 = arith.addf %29, %28 : vector<32x32xf32>
    %31 = vector.extract_strided_slice %9 {offsets = [0, 4], sizes = [32, 1], strides = [1, 1]} : vector<32x8xf32> to vector<32x1xf32>
    %32 = vector.extract_strided_slice %13 {offsets = [0, 4], sizes = [32, 1], strides = [1, 1]} : vector<32x8xf32> to vector<32x1xf32>
    %33 = vector.broadcast %32 : vector<32x1xf32> to vector<32x32xf32>
    %34 = vector.broadcast %23 : vector<1x32xf32> to vector<32x32xf32>
    %35 = arith.mulf %33, %34 : vector<32x32xf32>
    %36 = vector.broadcast %31 : vector<32x1xf32> to vector<32x32xf32>
    %37 = arith.addf %36, %35 : vector<32x32xf32>
    %38 = vector.shape_cast %18 : vector<1x32xi1> to vector<1x32xi1>
    %39 = vector.broadcast %38 : vector<1x32xi1> to vector<32x32xi1>
    %40 = arith.select %39, %37, %30 : vector<32x32xi1>, vector<32x32xf32>
    %c2_i32 = arith.constant 2 : i32
    %41 = vector.broadcast %c2_i32 : i32 to vector<1x32xi32>
    %42 = arith.shrsi %16, %41 : vector<1x32xi32>
    %c1_i32_8 = arith.constant 1 : i32
    %43 = vector.broadcast %c1_i32_8 : i32 to vector<1x32xi32>
    %44 = arith.andi %42, %43 : vector<1x32xi32>
    %45 = arith.sitofp %44 : vector<1x32xi32> to vector<1x32xf32>
    %46 = vector.extract_strided_slice %9 {offsets = [0, 1], sizes = [32, 1], strides = [1, 1]} : vector<32x8xf32> to vector<32x1xf32>
    %47 = vector.extract_strided_slice %13 {offsets = [0, 1], sizes = [32, 1], strides = [1, 1]} : vector<32x8xf32> to vector<32x1xf32>
    %48 = vector.broadcast %47 : vector<32x1xf32> to vector<32x32xf32>
    %49 = vector.broadcast %45 : vector<1x32xf32> to vector<32x32xf32>
    %50 = arith.mulf %48, %49 : vector<32x32xf32>
    %51 = vector.broadcast %46 : vector<32x1xf32> to vector<32x32xf32>
    %52 = arith.addf %51, %50 : vector<32x32xf32>
    %53 = vector.extract_strided_slice %9 {offsets = [0, 5], sizes = [32, 1], strides = [1, 1]} : vector<32x8xf32> to vector<32x1xf32>
    %54 = vector.extract_strided_slice %13 {offsets = [0, 5], sizes = [32, 1], strides = [1, 1]} : vector<32x8xf32> to vector<32x1xf32>
    %55 = vector.broadcast %54 : vector<32x1xf32> to vector<32x32xf32>
    %56 = vector.broadcast %45 : vector<1x32xf32> to vector<32x32xf32>
    %57 = arith.mulf %55, %56 : vector<32x32xf32>
    %58 = vector.broadcast %53 : vector<32x1xf32> to vector<32x32xf32>
    %59 = arith.addf %58, %57 : vector<32x32xf32>
    %60 = vector.shape_cast %18 : vector<1x32xi1> to vector<1x32xi1>
    %61 = vector.broadcast %60 : vector<1x32xi1> to vector<32x32xi1>
    %62 = arith.select %61, %59, %52 : vector<32x32xi1>, vector<32x32xf32>
    %63 = arith.mulf %40, %62 : vector<32x32xf32>
    %c1_i32_9 = arith.constant 1 : i32
    %64 = vector.broadcast %c1_i32_9 : i32 to vector<1x32xi32>
    %65 = arith.shrsi %16, %64 : vector<1x32xi32>
    %c1_i32_10 = arith.constant 1 : i32
    %66 = vector.broadcast %c1_i32_10 : i32 to vector<1x32xi32>
    %67 = arith.andi %65, %66 : vector<1x32xi32>
    %68 = arith.sitofp %67 : vector<1x32xi32> to vector<1x32xf32>
    %69 = vector.extract_strided_slice %9 {offsets = [0, 2], sizes = [32, 1], strides = [1, 1]} : vector<32x8xf32> to vector<32x1xf32>
    %70 = vector.extract_strided_slice %13 {offsets = [0, 2], sizes = [32, 1], strides = [1, 1]} : vector<32x8xf32> to vector<32x1xf32>
    %71 = vector.broadcast %70 : vector<32x1xf32> to vector<32x32xf32>
    %72 = vector.broadcast %68 : vector<1x32xf32> to vector<32x32xf32>
    %73 = arith.mulf %71, %72 : vector<32x32xf32>
    %74 = vector.broadcast %69 : vector<32x1xf32> to vector<32x32xf32>
    %75 = arith.addf %74, %73 : vector<32x32xf32>
    %76 = vector.extract_strided_slice %9 {offsets = [0, 6], sizes = [32, 1], strides = [1, 1]} : vector<32x8xf32> to vector<32x1xf32>
    %77 = vector.extract_strided_slice %13 {offsets = [0, 6], sizes = [32, 1], strides = [1, 1]} : vector<32x8xf32> to vector<32x1xf32>
    %78 = vector.broadcast %77 : vector<32x1xf32> to vector<32x32xf32>
    %79 = vector.broadcast %68 : vector<1x32xf32> to vector<32x32xf32>
    %80 = arith.mulf %78, %79 : vector<32x32xf32>
    %81 = vector.broadcast %76 : vector<32x1xf32> to vector<32x32xf32>
    %82 = arith.addf %81, %80 : vector<32x32xf32>
    %83 = vector.shape_cast %18 : vector<1x32xi1> to vector<1x32xi1>
    %84 = vector.broadcast %83 : vector<1x32xi1> to vector<32x32xi1>
    %85 = arith.select %84, %82, %75 : vector<32x32xi1>, vector<32x32xf32>
    %86 = arith.mulf %63, %85 : vector<32x32xf32>
    %c0_i32 = arith.constant 0 : i32
    %87 = vector.broadcast %c0_i32 : i32 to vector<1x32xi32>
    %88 = arith.shrsi %16, %87 : vector<1x32xi32>
    %c1_i32_11 = arith.constant 1 : i32
    %89 = vector.broadcast %c1_i32_11 : i32 to vector<1x32xi32>
    %90 = arith.andi %88, %89 : vector<1x32xi32>
    %91 = arith.sitofp %90 : vector<1x32xi32> to vector<1x32xf32>
    %92 = vector.extract_strided_slice %9 {offsets = [0, 3], sizes = [32, 1], strides = [1, 1]} : vector<32x8xf32> to vector<32x1xf32>
    %93 = vector.extract_strided_slice %13 {offsets = [0, 3], sizes = [32, 1], strides = [1, 1]} : vector<32x8xf32> to vector<32x1xf32>
    %94 = vector.broadcast %93 : vector<32x1xf32> to vector<32x32xf32>
    %95 = vector.broadcast %91 : vector<1x32xf32> to vector<32x32xf32>
    %96 = arith.mulf %94, %95 : vector<32x32xf32>
    %97 = vector.broadcast %92 : vector<32x1xf32> to vector<32x32xf32>
    %98 = arith.addf %97, %96 : vector<32x32xf32>
    %99 = vector.extract_strided_slice %9 {offsets = [0, 7], sizes = [32, 1], strides = [1, 1]} : vector<32x8xf32> to vector<32x1xf32>
    %100 = vector.extract_strided_slice %13 {offsets = [0, 7], sizes = [32, 1], strides = [1, 1]} : vector<32x8xf32> to vector<32x1xf32>
    %101 = vector.broadcast %100 : vector<32x1xf32> to vector<32x32xf32>
    %102 = vector.broadcast %91 : vector<1x32xf32> to vector<32x32xf32>
    %103 = arith.mulf %101, %102 : vector<32x32xf32>
    %104 = vector.broadcast %99 : vector<32x1xf32> to vector<32x32xf32>
    %105 = arith.addf %104, %103 : vector<32x32xf32>
    %106 = vector.shape_cast %18 : vector<1x32xi1> to vector<1x32xi1>
    %107 = vector.broadcast %106 : vector<1x32xi1> to vector<32x32xi1>
    %108 = arith.select %107, %105, %98 : vector<32x32xi1>, vector<32x32xf32>
    %109 = arith.mulf %86, %108 : vector<32x32xf32>
    %c0_12 = arith.constant 0 : index
    %c0_13 = arith.constant 0 : index
    %110 = vector.load %arg4[%c0_12, %c0_13] : memref<32x64xf32, #tpu.memory_space<vmem>>, vector<32x64xf32>
    %cst_14 = arith.constant dense<0.000000e+00> : vector<32x64xf32>
    %111 = tpu.matmul %109, %110, %cst_14 {dimension_numbers = #tpu.dot_dimension_numbers<[1], [0], [0], [1], [0, 0, 1, 1], [], []>} : vector<32x32xf32>, vector<32x64xf32>, vector<32x64xf32> -> vector<32x64xf32>
    %112 = arith.mulf %111, %111 : vector<32x64xf32>
    %c0_15 = arith.constant 0 : index
    %c0_16 = arith.constant 0 : index
    %113 = vector.load %arg5[%c0_15, %c0_16] : memref<64x8xf32, #tpu.memory_space<vmem>>, vector<64x8xf32>
    %cst_17 = arith.constant dense<0.000000e+00> : vector<32x8xf32>
    %114 = tpu.matmul %112, %113, %cst_17 {dimension_numbers = #tpu.dot_dimension_numbers<[1], [0], [0], [1], [0, 0, 1, 1], [], []>} : vector<32x64xf32>, vector<64x8xf32>, vector<32x8xf32> -> vector<32x8xf32>
    %115 = vector.extract_strided_slice %114 {offsets = [0, 0], sizes = [32, 4], strides = [1, 1]} : vector<32x8xf32> to vector<32x4xf32>
    %116 = vector.shape_cast %115 : vector<32x4xf32> to vector<4x8x4xf32>
    %117 = vector.extract_strided_slice %114 {offsets = [0, 4], sizes = [32, 4], strides = [1, 1]} : vector<32x8xf32> to vector<32x4xf32>
    %118 = vector.shape_cast %117 : vector<32x4xf32> to vector<4x8x4xf32>
    "tpu.trace_start"() <{level = 10 : i32, message = "bqd,bkd->bqk"}> : () -> ()
    %cst_18 = arith.constant dense<0.000000e+00> : vector<4x8x8xf32>
    %119 = tpu.matmul %116, %118, %cst_18 {dimension_numbers = #tpu.dot_dimension_numbers<[2], [2], [1], [1], [0, 0, 0, 1, 1, 1], [0], [0]>} : vector<4x8x4xf32>, vector<4x8x4xf32>, vector<4x8x8xf32> -> vector<4x8x8xf32>
    "tpu.trace_stop"() : () -> ()
    %cst_19 = arith.constant dense<0xFF800000> : vector<4x8xf32>
    %120 = vector.multi_reduction <maximumf>, %119, %cst_19 [2] : vector<4x8x8xf32> to vector<4x8xf32>
    %121 = vector.shape_cast %120 : vector<4x8xf32> to vector<4x8x1xf32>
    %122 = vector.broadcast %121 : vector<4x8x1xf32> to vector<4x8x8xf32>
    %123 = arith.subf %119, %122 : vector<4x8x8xf32>
    %124 = math.exp %123 : vector<4x8x8xf32>
    %cst_20 = arith.constant dense<0.000000e+00> : vector<4x8xf32>
    %125 = vector.multi_reduction <add>, %124, %cst_20 [2] : vector<4x8x8xf32> to vector<4x8xf32>
    %126 = vector.shape_cast %125 : vector<4x8xf32> to vector<4x8x1xf32>
    %cst_21 = arith.constant 1.000000e+00 : f32
    %127 = vector.broadcast %cst_21 : f32 to vector<4x8x1xf32>
    %128 = arith.divf %127, %126 : vector<4x8x1xf32>
    %129 = vector.broadcast %128 : vector<4x8x1xf32> to vector<4x8x8xf32>
    %130 = arith.mulf %124, %129 : vector<4x8x8xf32>
    "tpu.trace_start"() <{level = 10 : i32, message = "bqk,bkh->bqh"}> : () -> ()
    %cst_22 = arith.constant dense<0.000000e+00> : vector<4x8x32xf32>
    %131 = tpu.matmul %130, %0, %cst_22 {dimension_numbers = #tpu.dot_dimension_numbers<[2], [1], [1], [2], [0, 0, 0, 1, 1, 2], [0], [0]>} : vector<4x8x8xf32>, vector<4x8x32xf32>, vector<4x8x32xf32> -> vector<4x8x32xf32>
    "tpu.trace_stop"() : () -> ()
    %c0_23 = arith.constant 0 : index
    %c0_24 = arith.constant 0 : index
    %c0_25 = arith.constant 0 : index
    %132 = vector.load %arg6[%c0_23, %c0_24, %c0_25] : memref<4x8x32xf32, #tpu.memory_space<vmem>>, vector<4x8x32xf32>
    tpu.vector_store %arg6[%c0_23, %c0_24, %c0_25], %131 {strides = array<i32>} : memref<4x8x32xf32, #tpu.memory_space<vmem>>, vector<4x8x32xf32>,
    return
  }
  func.func @transform_0(%arg0: i32) -> (i32, i32, i32) {
    %c0_i32 = arith.constant 0 : i32
    %c0_i32_0 = arith.constant 0 : i32
    %c0_i32_1 = arith.constant 0 : i32
    return %arg0, %c0_i32, %c0_i32_0 : i32, i32, i32
  }
  func.func @transform_1(%arg0: i32) -> (i32, i32) {
    %c0_i32 = arith.constant 0 : i32
    %c0_i32_0 = arith.constant 0 : i32
    %c0_i32_1 = arith.constant 0 : i32
    return %c0_i32, %c0_i32_0 : i32, i32
  }
  func.func @transform_2(%arg0: i32) -> (i32, i32) {
    %c0_i32 = arith.constant 0 : i32
    %c0_i32_0 = arith.constant 0 : i32
    %c0_i32_1 = arith.constant 0 : i32
    return %c0_i32, %c0_i32_0 : i32, i32
  }
  func.func @transform_3(%arg0: i32) -> (i32, i32) {
    %c0_i32 = arith.constant 0 : i32
    %c0_i32_0 = arith.constant 0 : i32
    %c0_i32_1 = arith.constant 0 : i32
    return %c0_i32, %c0_i32_0 : i32, i32
  }
  func.func @transform_4(%arg0: i32) -> (i32, i32) {
    %c0_i32 = arith.constant 0 : i32
    %c0_i32_0 = arith.constant 0 : i32
    %c0_i32_1 = arith.constant 0 : i32
    return %c0_i32, %c0_i32_0 : i32, i32
  }
  func.func @transform_5(%arg0: i32) -> (i32, i32, i32) {
    %c0_i32 = arith.constant 0 : i32
    %c0_i32_0 = arith.constant 0 : i32
    %c0_i32_1 = arith.constant 0 : i32
    return %arg0, %c0_i32, %c0_i32_0 : i32, i32, i32
  }
}

</mosaic_0001>

<llo_original>
// kernel: tpu_custom_call.1
$region0: #{tpu_custom_call.1}
  #allocation0 [shape = 'u32[]', space=smem, size = 0x4, offset = 0x4, fixed_abs, tag = 'smem constant byte address 0x4 - core index']
  #allocation1 [shape = 'u32[144,128]{1,0:T(1,128)}', space=vmem, size = 0x12000, scoped, tag = 'internal scratch']
  %s0 = inlined_call_operand.vmem [shape: f32[4,8,32], index: 0, kind: input, shape index: {}]
  %s1 = inlined_call_operand.vmem [shape: f32[32,8], index: 1, kind: input, shape index: {}]
  %s2 = inlined_call_operand.vmem [shape: f32[1,8], index: 2, kind: input, shape index: {}]
  %s3 = inlined_call_operand.vmem [shape: f32[32,64], index: 3, kind: input, shape index: {}]
  %s4 = inlined_call_operand.vmem [shape: f32[64,8], index: 4, kind: input, shape index: {}]
  %s5 = inlined_call_operand.hbm [shape: f32[4,256], index: 5, kind: output, shape index: {}]
  %s6 = sld [smem:[#allocation0]]
  $region30: #{tpu_custom_call.1} parent=0
    _
  %s8 = ssub.s32 1, %s6
  %s9 = scalar_select 0, %s8, %s6
  $region1: #{tpu_custom_call.1} parent=0
    #allocation2 [shape = 'u8[4096]{0}', space=vmem, size = 0x1000, scoped, tag = 'output window, operand 0, single buffered']
    #allocation3 [shape = 's32[1]{0}', space=sflag, size = 0x4, scoped, tag = 'scoped memory for tpu_custom_call.1']
    %10 = vsyncpa [#allocation3], 0
    // Predicated region
    $region2: #{tpu_custom_call.1} parent=1 // pred_check
      _
    $region3: #{tpu_custom_call.1} parent=1 // pred_check_branch
      %12 = sbr.rel (0) target = $region5
    $region4: #{tpu_custom_call.1} parent=1 // pred_region
      _
    $region5: #{tpu_custom_call.1} parent=1 // pred_fallthru
      _
    // Predicated region
    $region6: #{tpu_custom_call.1} parent=1 // pred_check
      _
    $region7: #{tpu_custom_call.1} parent=1 // pred_check_branch
      %14 = sbr.rel (0) target = $region9
    $region8: #{tpu_custom_call.1} parent=1 // pred_region
      _
    $region9: #{tpu_custom_call.1} parent=1 // pred_fallthru
      _
    // Predicated region
    $region10: #{tpu_custom_call.1} parent=1 // pred_check
      _
    $region11: #{tpu_custom_call.1} parent=1 // pred_check_branch
      %16 = sbr.rel (0) target = $region13
    $region12: #{tpu_custom_call.1} parent=1 // pred_region
      _
    $region13: #{tpu_custom_call.1} parent=1 // pred_fallthru
      _
    // Predicated region
    $region14: #{tpu_custom_call.1} parent=1 // pred_check
      _
    $region15: #{tpu_custom_call.1} parent=1 // pred_check_branch
      %18 = sbr.rel (0) target = $region17
    $region16: #{tpu_custom_call.1} parent=1 // pred_region
      _
    $region17: #{tpu_custom_call.1} parent=1 // pred_fallthru
      _
    // Predicated region
    $region18: #{tpu_custom_call.1} parent=1 // pred_check
      _
    $region19: #{tpu_custom_call.1} parent=1 // pred_check_branch
      %20 = sbr.rel (0) target = $region21
    $region20: #{tpu_custom_call.1} parent=1 // pred_region
      _
    $region21: #{tpu_custom_call.1} parent=1 // pred_fallthru
      _
    %v21 = vld [vmem:[%s0] sm:$0xff]
    %v22 = vld [vmem:[%s0 + $0x8] sm:$0xff]
    %v23 = vld [vmem:[%s0 + $0x10] sm:$0xff]
    %v24 = vld [vmem:[%s0 + $0x18] sm:$0xff]
    %v25 = vld [vmem:[%s1] sm:$0xff]
    %v26 = vld [vmem:[%s1 + $0x8] sm:$0xff]
    %v27 = vld [vmem:[%s1 + $0x10] sm:$0xff]
    %v28 = vld [vmem:[%s1 + $0x18] sm:$0xff]
    %v29 = vld [vmem:[%s2] sm:$0x1]
    %v31 = vlaneseq
    %v32 = vshrl.u32 %v31, 7
    %v33 = vsub.s32 0, %v32
    %v34 = vrot.slane %v29, %v33
    %vm36 = vcmask 261120
    %v38 = vsel %vm36, %v21, 0
    %v41 = vsel %vm36, %v22, 0
    %v44 = vsel %vm36, %v23, 0
    %v47 = vsel %vm36, %v24, 0
    %49 = vmatprep.subr.mxu0 0.0
    %50 = vmatpush1.msra.mxu0 0.0
    %51 = vmatprep.subr.mxu0 0.0
    %52 = vmatpush1.msra.mxu0 0.0
    %53 = vmatprep.subr.mxu0 0.0
    %54 = vmatpush1.msra.mxu0 0.0
    %55 = vmatprep.subr.mxu0 0.0
    %56 = vmatpush1.msra.mxu0 0.0
    %57 = vmatprep.subr.mxu0 0.0
    %58 = vmatpush1.msra.mxu0 0.0
    %59 = vmatprep.subr.mxu0 0.0
    %60 = vmatpush1.msra.mxu0 0.0
    %61 = vmatprep.subr.mxu0 0.0
    %62 = vmatpush1.msra.mxu0 0.0
    %63 = vmatprep.subr.mxu0 0.0
    %64 = vmatpush1.msra.mxu0 0.0
    %65 = vmatprep.subr.mxu0 0.0
    %66 = vmatpush1.msra.mxu0 0.0
    %67 = vmatprep.subr.mxu0 0.0
    %68 = vmatpush1.msra.mxu0 0.0
    %69 = vmatprep.subr.mxu0 0.0
    %70 = vmatpush1.msra.mxu0 0.0
    %71 = vmatprep.subr.mxu0 0.0
    %72 = vmatpush1.msra.mxu0 0.0
    %73 = vmatprep.subr.mxu0 0.0
    %74 = vmatpush1.msra.mxu0 %v28
    %75 = vmatprep.subr.mxu0 0.0
    %76 = vmatpush1.msra.mxu0 %v27
    %77 = vmatprep.subr.mxu0 0.0
    %78 = vmatpush1.msra.mxu0 %v26
    %79 = vmatprep.subr.mxu0 0.0
    %80 = vmatpush1.msra.mxu0 %v25
    %81 = vmatprep.subr.mxu0 0.0
    %82 = vmatpush2.msra.mxu0 0.0
    %83 = vmatprep.subr.mxu0 0.0
    %84 = vmatpush2.msra.mxu0 0.0
    %85 = vmatprep.subr.mxu0 0.0
    %86 = vmatpush2.msra.mxu0 0.0
    %87 = vmatprep.subr.mxu0 0.0
    %88 = vmatpush2.msra.mxu0 0.0
    %89 = vmatprep.subr.mxu0 0.0
    %90 = vmatpush2.msra.mxu0 0.0
    %91 = vmatprep.subr.mxu0 0.0
    %92 = vmatpush2.msra.mxu0 0.0
    %93 = vmatprep.subr.mxu0 0.0
    %94 = vmatpush2.msra.mxu0 0.0
    %95 = vmatprep.subr.mxu0 0.0
    %96 = vmatpush2.msra.mxu0 0.0
    %97 = vmatprep.subr.mxu0 0.0
    %98 = vmatpush2.msra.mxu0 0.0
    %99 = vmatprep.subr.mxu0 0.0
    %100 = vmatpush2.msra.mxu0 0.0
    %101 = vmatprep.subr.mxu0 0.0
    %102 = vmatpush2.msra.mxu0 0.0
    %103 = vmatprep.subr.mxu0 0.0
    %104 = vmatpush2.msra.mxu0 0.0
    %105 = vmatprep.subr.mxu0 0.0
    %106 = vmatpush2.msra.mxu0 0.0
    %107 = vmatprep.subr.mxu0 0.0
    %108 = vmatpush2.msra.mxu0 0.0
    %109 = vmatprep.subr.mxu0 0.0
    %110 = vmatpush2.msra.mxu0 0.0
    %111 = vmatprep.subr.mxu0 0.0
    %112 = vmatpush2.msra.mxu0 0.0
    %113 = vmatprep.mubr.f32.mxu0 0.0
    %114 = vmatmul.mubr.f32.gmra.mxu0 %v38
    %v115 = vpop.f32.mrf.mxu0
    %v116 = vadd.f32 %v34, %v115
    %v117 = vpop.f32.mrf.mxu0
    %118 = vmatprep.mubr.f32.mxu0 0.0
    %119 = vmatmul.mubr.f32.gmra.mxu0 %v41
    %v120 = vpop.f32.mrf.mxu0
    %v121 = vadd.f32 %v34, %v120
    %v122 = vpop.f32.mrf.mxu0
    %123 = vmatprep.mubr.f32.mxu0 0.0
    %124 = vmatmul.mubr.f32.gmra.mxu0 %v44
    %v125 = vpop.f32.mrf.mxu0
    %v126 = vadd.f32 %v34, %v125
    %v127 = vpop.f32.mrf.mxu0
    %128 = vmatprep.mubr.f32.mxu0 0.0
    %129 = vmatmul.mubr.f32.gmra.mxu0 %v47
    %v130 = vpop.f32.mrf.mxu0
    %v131 = vadd.f32 %v34, %v130
    %v132 = vpop.f32.mrf.mxu0
    %133 = vdwg.mxu0
    %v134 = vmul.f32 %v116, 0.5
    %v135 = vmul.f32 %v121, 0.5
    %v136 = vmul.f32 %v126, 0.5
    %v137 = vmul.f32 %v131, 0.5
    %v138 = vand.u32 2147483647, %v134
    %vm139 = vcmp.le.f32.partialorder %v138, 0.7853982
    %vm140 = vcmp.lt.s32.totalorder %v134, 0
    %v141 = vand.u32 %v134, 2139095040
    %v142 = vshrl.u32 %v141, 23
    %v143 = vsub.s32 %v142, 127
    %v144 = vand.u32 2147483647, %v134
    %v145 = vand.u32 %v144, 8388607
    %v146 = vor.u32 %v145, 8388608
    %v147 = vsub.s32 0, %v146
    %v148 = vadd.s32 %v143, 1
    %vm149 = vcmp.gt.s32.totalorder %v148, 0
    %v150 = vsel %vm149, %v148, 0
    %v151 = vshrl.u32 %v150, 5
    %v152 = vand.u32 %v150, 31
    %v153 = vsub.s32 32, %v152
    %v154 = vshrl.u32 683565275, %v153
    %v155 = vshll.u32 683565275, %v152
    %v156 = vshrl.u32 2475754826, %v153
    %v157 = vor.u32 %v155, %v156
    %v158 = vshll.u32 2475754826, %v152
    %v159 = vshrl.u32 2131351028, %v153
    %v160 = vor.u32 %v158, %v159
    %v161 = vshll.u32 2131351028, %v152
    %v162 = vshrl.u32 2102212464, %v153
    %v163 = vor.u32 %v161, %v162
    %v164 = vshll.u32 2102212464, %v152
    %v165 = vshrl.u32 920167782, %v153
    %v166 = vor.u32 %v164, %v165
    %v167 = vshll.u32 920167782, %v152
    %v168 = vshrl.u32 1326507024, %v153
    %v169 = vor.u32 %v167, %v168
    %vm170 = vcmp.lt.s32.totalorder %v151, 1
    %vm171 = vcmp.lt.s32.totalorder %v151, 2
    %vm172 = vcmp.lt.s32.totalorder %v151, 3
    %vm173 = vcmp.lt.s32.totalorder %v151, 4
    %v174 = vsel %vm170, %v154, %v157
    %v175 = vsel %vm173, %v163, 2102212464
    %v176 = vsel %vm172, %v160, %v175
    %v177 = vsel %vm171, %v174, %v176
    %v178 = vsel %vm170, %v157, %v160
    %v179 = vsel %vm173, %v166, 920167782
    %v180 = vsel %vm172, %v163, %v179
    %v181 = vsel %vm171, %v178, %v180
    %v182 = vsel %vm170, %v160, %v163
    %v183 = vsel %vm173, %v169, 1326507024
    %v184 = vsel %vm172, %v166, %v183
    %v185 = vsel %vm171, %v182, %v184
    %v186 = vshll.u32 %v146, 8
    %v187 = vmul.u32.u64.compose %v186, %v185
    %v188 = vextract.low.u32 %v187
    %v189 = vextract.high.u32 %v187
    %v190 = vmul.u32.u64.compose %v186, %v181
    %v191 = vextract.low.u32 %v190
    %v192 = vextract.high.u32 %v190
    %v193 = vmul.u32 %v186, %v177
    %v194 = vadd.s32 %v189, %v191
    %vm195 = vc.u32 %v189, %v191
    %v196 = vadd.s32 %v192, 1
    %v197 = vsel %vm195, %v196, %v192
    %v198 = vadd.s32 %v193, %v197
    %v199 = vadd.s32 %v198, 536870912
    %v200 = vshrl.u32 %v199, 30
    %v201 = vshll.u32 %v200, 30
    %v202 = vsub.s32 %v198, %v201
    %vm203 = vcmp.lt.s32.totalorder %v202, 0
    %v204 = vsub.s32 0, %v202
    %v205 = vsel %vm203, %v204, %v202
    %v206 = vclz %v205
    %v207 = vsub.s32 %v206, 2
    %vm208 = vcmp.gt.s32.totalorder 0, %v207
    %v209 = vsel %vm208, 0, %v207
    %v210 = vsub.s32 32, %v209
    %v211 = vshll.u32 %v202, %v209
    %v212 = vshrl.u32 %v194, %v210
    %v213 = vor.u32 %v211, %v212
    %v214 = vsub.s32 4294967266, %v209
    %v215 = vadd.s32 %v214, 127
    %v216 = vshll.u32 %v215, 23
    %v217 = vor.u32 4788187, %v216
    %v218 = vand.u32 2147483647, %v217
    %v220 = vcvt.s32.f32 %v213
    %v221 = vmul.f32 %v220, %v218
    %v222 = vxor.u32 %v221, 2147483648
    %v223 = vsel %vm140, %v222, %v221
    %v224 = vsub.s32 4, %v200
    %v225 = vsel %vm140, %v224, %v200
    %v226 = vsel %vm139, %v134, %v223
    %v227 = vsel %vm139, 0, %v225
    %v228 = vcosq.f32.pop %v226
    %v229 = vsinq.f32.pop %v226
    %vm230 = vweird.f32 %v134
    %v231 = vand.u32 %v227, 3
    %vm232 = vcmp.lt.s32.totalorder %v231, 2
    %vm233 = vcmp.eq.s32.totalorder %v231, 0
    %v234 = vxor.u32 %v229, 2147483648
    %v235 = vsel %vm233, %v228, %v234
    %vm236 = vcmp.eq.s32.totalorder %v231, 2
    %v237 = vxor.u32 %v228, 2147483648
    %v238 = vsel %vm236, %v237, %v229
    %v239 = vsel %vm232, %v235, %v238
    %v240 = vsel %vm230, nan, %v239
    %v241 = vand.u32 2147483647, %v135
    %vm242 = vcmp.le.f32.partialorder %v241, 0.7853982
    %vm243 = vcmp.lt.s32.totalorder %v135, 0
    %v244 = vand.u32 %v135, 2139095040
    %v245 = vshrl.u32 %v244, 23
    %v246 = vsub.s32 %v245, 127
    %v247 = vand.u32 2147483647, %v135
    %v248 = vand.u32 %v247, 8388607
    %v249 = vor.u32 %v248, 8388608
    %v250 = vsub.s32 0, %v249
    %v251 = vadd.s32 %v246, 1
    %vm252 = vcmp.gt.s32.totalorder %v251, 0
    %v253 = vsel %vm252, %v251, 0
    %v254 = vshrl.u32 %v253, 5
    %v255 = vand.u32 %v253, 31
    %v256 = vsub.s32 32, %v255
    %v257 = vshrl.u32 683565275, %v256
    %v258 = vshll.u32 683565275, %v255
    %v259 = vshrl.u32 2475754826, %v256
    %v260 = vor.u32 %v258, %v259
    %v261 = vshll.u32 2475754826, %v255
    %v262 = vshrl.u32 2131351028, %v256
    %v263 = vor.u32 %v261, %v262
    %v264 = vshll.u32 2131351028, %v255
    %v265 = vshrl.u32 2102212464, %v256
    %v266 = vor.u32 %v264, %v265
    %v267 = vshll.u32 2102212464, %v255
    %v268 = vshrl.u32 920167782, %v256
    %v269 = vor.u32 %v267, %v268
    %v270 = vshll.u32 920167782, %v255
    %v271 = vshrl.u32 1326507024, %v256
    %v272 = vor.u32 %v270, %v271
    %vm273 = vcmp.lt.s32.totalorder %v254, 1
    %vm274 = vcmp.lt.s32.totalorder %v254, 2
    %vm275 = vcmp.lt.s32.totalorder %v254, 3
    %vm276 = vcmp.lt.s32.totalorder %v254, 4
    %v277 = vsel %vm273, %v257, %v260
    %v278 = vsel %vm276, %v266, 2102212464
    %v279 = vsel %vm275, %v263, %v278
    %v280 = vsel %vm274, %v277, %v279
    %v281 = vsel %vm273, %v260, %v263
    %v282 = vsel %vm276, %v269, 920167782
    %v283 = vsel %vm275, %v266, %v282
    %v284 = vsel %vm274, %v281, %v283
    %v285 = vsel %vm273, %v263, %v266
    %v286 = vsel %vm276, %v272, 1326507024
    %v287 = vsel %vm275, %v269, %v286
    %v288 = vsel %vm274, %v285, %v287
    %v289 = vshll.u32 %v249, 8
    %v290 = vmul.u32.u64.compose %v289, %v288
    %v291 = vextract.low.u32 %v290
    %v292 = vextract.high.u32 %v290
    %v293 = vmul.u32.u64.compose %v289, %v284
    %v294 = vextract.low.u32 %v293
    %v295 = vextract.high.u32 %v293
    %v296 = vmul.u32 %v289, %v280
    %v297 = vadd.s32 %v292, %v294
    %vm298 = vc.u32 %v292, %v294
    %v299 = vadd.s32 %v295, 1
    %v300 = vsel %vm298, %v299, %v295
    %v301 = vadd.s32 %v296, %v300
    %v302 = vadd.s32 %v301, 536870912
    %v303 = vshrl.u32 %v302, 30
    %v304 = vshll.u32 %v303, 30
    %v305 = vsub.s32 %v301, %v304
    %vm306 = vcmp.lt.s32.totalorder %v305, 0
    %v307 = vsub.s32 0, %v305
    %v308 = vsel %vm306, %v307, %v305
    %v309 = vclz %v308
    %v310 = vsub.s32 %v309, 2
    %vm311 = vcmp.gt.s32.totalorder 0, %v310
    %v312 = vsel %vm311, 0, %v310
    %v313 = vsub.s32 32, %v312
    %v314 = vshll.u32 %v305, %v312
    %v315 = vshrl.u32 %v297, %v313
    %v316 = vor.u32 %v314, %v315
    %v317 = vsub.s32 4294967266, %v312
    %v318 = vadd.s32 %v317, 127
    %v319 = vshll.u32 %v318, 23
    %v320 = vor.u32 4788187, %v319
    %v321 = vand.u32 2147483647, %v320
    %v323 = vcvt.s32.f32 %v316
    %v324 = vmul.f32 %v323, %v321
    %v325 = vxor.u32 %v324, 2147483648
    %v326 = vsel %vm243, %v325, %v324
    %v327 = vsub.s32 4, %v303
    %v328 = vsel %vm243, %v327, %v303
    %v329 = vsel %vm242, %v135, %v326
    %v330 = vsel %vm242, 0, %v328
    %v331 = vcosq.f32.pop %v329
    %v332 = vsinq.f32.pop %v329
    %vm333 = vweird.f32 %v135
    %v334 = vand.u32 %v330, 3
    %vm335 = vcmp.lt.s32.totalorder %v334, 2
    %vm336 = vcmp.eq.s32.totalorder %v334, 0
    %v337 = vxor.u32 %v332, 2147483648
    %v338 = vsel %vm336, %v331, %v337
    %vm339 = vcmp.eq.s32.totalorder %v334, 2
    %v340 = vxor.u32 %v331, 2147483648
    %v341 = vsel %vm339, %v340, %v332
    %v342 = vsel %vm335, %v338, %v341
    %v343 = vsel %vm333, nan, %v342
    %v344 = vand.u32 2147483647, %v136
    %vm345 = vcmp.le.f32.partialorder %v344, 0.7853982
    %vm346 = vcmp.lt.s32.totalorder %v136, 0
    %v347 = vand.u32 %v136, 2139095040
    %v348 = vshrl.u32 %v347, 23
    %v349 = vsub.s32 %v348, 127
    %v350 = vand.u32 2147483647, %v136
    %v351 = vand.u32 %v350, 8388607
    %v352 = vor.u32 %v351, 8388608
    %v353 = vsub.s32 0, %v352
    %v354 = vadd.s32 %v349, 1
    %vm355 = vcmp.gt.s32.totalorder %v354, 0
    %v356 = vsel %vm355, %v354, 0
    %v357 = vshrl.u32 %v356, 5
    %v358 = vand.u32 %v356, 31
    %v359 = vsub.s32 32, %v358
    %v360 = vshrl.u32 683565275, %v359
    %v361 = vshll.u32 683565275, %v358
    %v362 = vshrl.u32 2475754826, %v359
    %v363 = vor.u32 %v361, %v362
    %v364 = vshll.u32 2475754826, %v358
    %v365 = vshrl.u32 2131351028, %v359
    %v366 = vor.u32 %v364, %v365
    %v367 = vshll.u32 2131351028, %v358
    %v368 = vshrl.u32 2102212464, %v359
    %v369 = vor.u32 %v367, %v368
    %v370 = vshll.u32 2102212464, %v358
    %v371 = vshrl.u32 920167782, %v359
    %v372 = vor.u32 %v370, %v371
    %v373 = vshll.u32 920167782, %v358
    %v374 = vshrl.u32 1326507024, %v359
    %v375 = vor.u32 %v373, %v374
    %vm376 = vcmp.lt.s32.totalorder %v357, 1
    %vm377 = vcmp.lt.s32.totalorder %v357, 2
    %vm378 = vcmp.lt.s32.totalorder %v357, 3
    %vm379 = vcmp.lt.s32.totalorder %v357, 4
    %v380 = vsel %vm376, %v360, %v363
    %v381 = vsel %vm379, %v369, 2102212464
    %v382 = vsel %vm378, %v366, %v381
    %v383 = vsel %vm377, %v380, %v382
    %v384 = vsel %vm376, %v363, %v366
    %v385 = vsel %vm379, %v372, 920167782
    %v386 = vsel %vm378, %v369, %v385
    %v387 = vsel %vm377, %v384, %v386
    %v388 = vsel %vm376, %v366, %v369
    %v389 = vsel %vm379, %v375, 1326507024
    %v390 = vsel %vm378, %v372, %v389
    %v391 = vsel %vm377, %v388, %v390
    %v392 = vshll.u32 %v352, 8
    %v393 = vmul.u32.u64.compose %v392, %v391
    %v394 = vextract.low.u32 %v393
    %v395 = vextract.high.u32 %v393
    %v396 = vmul.u32.u64.compose %v392, %v387
    %v397 = vextract.low.u32 %v396
    %v398 = vextract.high.u32 %v396
    %v399 = vmul.u32 %v392, %v383
    %v400 = vadd.s32 %v395, %v397
    %vm401 = vc.u32 %v395, %v397
    %v402 = vadd.s32 %v398, 1
    %v403 = vsel %vm401, %v402, %v398
    %v404 = vadd.s32 %v399, %v403
    %v405 = vadd.s32 %v404, 536870912
    %v406 = vshrl.u32 %v405, 30
    %v407 = vshll.u32 %v406, 30
    %v408 = vsub.s32 %v404, %v407
    %vm409 = vcmp.lt.s32.totalorder %v408, 0
    %v410 = vsub.s32 0, %v408
    %v411 = vsel %vm409, %v410, %v408
    %v412 = vclz %v411
    %v413 = vsub.s32 %v412, 2
    %vm414 = vcmp.gt.s32.totalorder 0, %v413
    %v415 = vsel %vm414, 0, %v413
    %v416 = vsub.s32 32, %v415
    %v417 = vshll.u32 %v408, %v415
    %v418 = vshrl.u32 %v400, %v416
    %v419 = vor.u32 %v417, %v418
    %v420 = vsub.s32 4294967266, %v415
    %v421 = vadd.s32 %v420, 127
    %v422 = vshll.u32 %v421, 23
    %v423 = vor.u32 4788187, %v422
    %v424 = vand.u32 2147483647, %v423
    %v426 = vcvt.s32.f32 %v419
    %v427 = vmul.f32 %v426, %v424
    %v428 = vxor.u32 %v427, 2147483648
    %v429 = vsel %vm346, %v428, %v427
    %v430 = vsub.s32 4, %v406
    %v431 = vsel %vm346, %v430, %v406
    %v432 = vsel %vm345, %v136, %v429
    %v433 = vsel %vm345, 0, %v431
    %v434 = vcosq.f32.pop %v432
    %v435 = vsinq.f32.pop %v432
    %vm436 = vweird.f32 %v136
    %v437 = vand.u32 %v433, 3
    %vm438 = vcmp.lt.s32.totalorder %v437, 2
    %vm439 = vcmp.eq.s32.totalorder %v437, 0
    %v440 = vxor.u32 %v435, 2147483648
    %v441 = vsel %vm439, %v434, %v440
    %vm442 = vcmp.eq.s32.totalorder %v437, 2
    %v443 = vxor.u32 %v434, 2147483648
    %v444 = vsel %vm442, %v443, %v435
    %v445 = vsel %vm438, %v441, %v444
    %v446 = vsel %vm436, nan, %v445
    %v447 = vand.u32 2147483647, %v137
    %vm448 = vcmp.le.f32.partialorder %v447, 0.7853982
    %vm449 = vcmp.lt.s32.totalorder %v137, 0
    %v450 = vand.u32 %v137, 2139095040
    %v451 = vshrl.u32 %v450, 23
    %v452 = vsub.s32 %v451, 127
    %v453 = vand.u32 2147483647, %v137
    %v454 = vand.u32 %v453, 8388607
    %v455 = vor.u32 %v454, 8388608
    %v456 = vsub.s32 0, %v455
    %v457 = vadd.s32 %v452, 1
    %vm458 = vcmp.gt.s32.totalorder %v457, 0
    %v459 = vsel %vm458, %v457, 0
    %v460 = vshrl.u32 %v459, 5
    %v461 = vand.u32 %v459, 31
    %v462 = vsub.s32 32, %v461
    %v463 = vshrl.u32 683565275, %v462
    %v464 = vshll.u32 683565275, %v461
    %v465 = vshrl.u32 2475754826, %v462
    %v466 = vor.u32 %v464, %v465
    %v467 = vshll.u32 2475754826, %v461
    %v468 = vshrl.u32 2131351028, %v462
    %v469 = vor.u32 %v467, %v468
    %v470 = vshll.u32 2131351028, %v461
    %v471 = vshrl.u32 2102212464, %v462
    %v472 = vor.u32 %v470, %v471
    %v473 = vshll.u32 2102212464, %v461
    %v474 = vshrl.u32 920167782, %v462
    %v475 = vor.u32 %v473, %v474
    %v476 = vshll.u32 920167782, %v461
    %v477 = vshrl.u32 1326507024, %v462
    %v478 = vor.u32 %v476, %v477
    %vm479 = vcmp.lt.s32.totalorder %v460, 1
    %vm480 = vcmp.lt.s32.totalorder %v460, 2
    %vm481 = vcmp.lt.s32.totalorder %v460, 3
    %vm482 = vcmp.lt.s32.totalorder %v460, 4
    %v483 = vsel %vm479, %v463, %v466
    %v484 = vsel %vm482, %v472, 2102212464
    %v485 = vsel %vm481, %v469, %v484
    %v486 = vsel %vm480, %v483, %v485
    %v487 = vsel %vm479, %v466, %v469
    %v488 = vsel %vm482, %v475, 920167782
    %v489 = vsel %vm481, %v472, %v488
    %v490 = vsel %vm480, %v487, %v489
    %v491 = vsel %vm479, %v469, %v472
    %v492 = vsel %vm482, %v478, 1326507024
    %v493 = vsel %vm481, %v475, %v492
    %v494 = vsel %vm480, %v491, %v493
    %v495 = vshll.u32 %v455, 8
    %v496 = vmul.u32.u64.compose %v495, %v494
    %v497 = vextract.low.u32 %v496
    %v498 = vextract.high.u32 %v496
    %v499 = vmul.u32.u64.compose %v495, %v490
    %v500 = vextract.low.u32 %v499
    %v501 = vextract.high.u32 %v499
    %v502 = vmul.u32 %v495, %v486
    %v503 = vadd.s32 %v498, %v500
    %vm504 = vc.u32 %v498, %v500
    %v505 = vadd.s32 %v501, 1
    %v506 = vsel %vm504, %v505, %v501
    %v507 = vadd.s32 %v502, %v506
    %v508 = vadd.s32 %v507, 536870912
    %v509 = vshrl.u32 %v508, 30
    %v510 = vshll.u32 %v509, 30
    %v511 = vsub.s32 %v507, %v510
    %vm512 = vcmp.lt.s32.totalorder %v511, 0
    %v513 = vsub.s32 0, %v511
    %v514 = vsel %vm512, %v513, %v511
    %v515 = vclz %v514
    %v516 = vsub.s32 %v515, 2
    %vm517 = vcmp.gt.s32.totalorder 0, %v516
    %v518 = vsel %vm517, 0, %v516
    %v519 = vsub.s32 32, %v518
    %v520 = vshll.u32 %v511, %v518
    %v521 = vshrl.u32 %v503, %v519
    %v522 = vor.u32 %v520, %v521
    %v523 = vsub.s32 4294967266, %v518
    %v524 = vadd.s32 %v523, 127
    %v525 = vshll.u32 %v524, 23
    %v526 = vor.u32 4788187, %v525
    %v527 = vand.u32 2147483647, %v526
    %v529 = vcvt.s32.f32 %v522
    %v530 = vmul.f32 %v529, %v527
    %v531 = vxor.u32 %v530, 2147483648
    %v532 = vsel %vm449, %v531, %v530
    %v533 = vsub.s32 4, %v509
    %v534 = vsel %vm449, %v533, %v509
    %v535 = vsel %vm448, %v137, %v532
    %v536 = vsel %vm448, 0, %v534
    %v537 = vcosq.f32.pop %v535
    %v538 = vsinq.f32.pop %v535
    %vm539 = vweird.f32 %v137
    %v540 = vand.u32 %v536, 3
    %vm541 = vcmp.lt.s32.totalorder %v540, 2
    %vm542 = vcmp.eq.s32.totalorder %v540, 0
    %v543 = vxor.u32 %v538, 2147483648
    %v544 = vsel %vm542, %v537, %v543
    %vm545 = vcmp.eq.s32.totalorder %v540, 2
    %v546 = vxor.u32 %v537, 2147483648
    %v547 = vsel %vm545, %v546, %v538
    %v548 = vsel %vm541, %v544, %v547
    %v549 = vsel %vm539, nan, %v548
    %v550 = vand.u32 2147483647, %v134
    %vm551 = vcmp.le.f32.partialorder %v550, 0.7853982
    %vm552 = vcmp.lt.s32.totalorder %v134, 0
    %v553 = vand.u32 %v134, 2139095040
    %v554 = vshrl.u32 %v553, 23
    %v555 = vsub.s32 %v554, 127
    %v556 = vand.u32 2147483647, %v134
    %v557 = vand.u32 %v556, 8388607
    %v558 = vor.u32 %v557, 8388608
    %v559 = vsub.s32 0, %v558
    %v560 = vadd.s32 %v555, 1
    %vm561 = vcmp.gt.s32.totalorder %v560, 0
    %v562 = vsel %vm561, %v560, 0
    %v563 = vshrl.u32 %v562, 5
    %v564 = vand.u32 %v562, 31
    %v565 = vsub.s32 32, %v564
    %v566 = vshrl.u32 683565275, %v565
    %v567 = vshll.u32 683565275, %v564
    %v568 = vshrl.u32 2475754826, %v565
    %v569 = vor.u32 %v567, %v568
    %v570 = vshll.u32 2475754826, %v564
    %v571 = vshrl.u32 2131351028, %v565
    %v572 = vor.u32 %v570, %v571
    %v573 = vshll.u32 2131351028, %v564
    %v574 = vshrl.u32 2102212464, %v565
    %v575 = vor.u32 %v573, %v574
    %v576 = vshll.u32 2102212464, %v564
    %v577 = vshrl.u32 920167782, %v565
    %v578 = vor.u32 %v576, %v577
    %v579 = vshll.u32 920167782, %v564
    %v580 = vshrl.u32 1326507024, %v565
    %v581 = vor.u32 %v579, %v580
    %vm582 = vcmp.lt.s32.totalorder %v563, 1
    %vm583 = vcmp.lt.s32.totalorder %v563, 2
    %vm584 = vcmp.lt.s32.totalorder %v563, 3
    %vm585 = vcmp.lt.s32.totalorder %v563, 4
    %v586 = vsel %vm582, %v566, %v569
    %v587 = vsel %vm585, %v575, 2102212464
    %v588 = vsel %vm584, %v572, %v587
    %v589 = vsel %vm583, %v586, %v588
    %v590 = vsel %vm582, %v569, %v572
    %v591 = vsel %vm585, %v578, 920167782
    %v592 = vsel %vm584, %v575, %v591
    %v593 = vsel %vm583, %v590, %v592
    %v594 = vsel %vm582, %v572, %v575
    %v595 = vsel %vm585, %v581, 1326507024
    %v596 = vsel %vm584, %v578, %v595
    %v597 = vsel %vm583, %v594, %v596
    %v598 = vshll.u32 %v558, 8
    %v599 = vmul.u32.u64.compose %v598, %v597
    %v600 = vextract.low.u32 %v599
    %v601 = vextract.high.u32 %v599
    %v602 = vmul.u32.u64.compose %v598, %v593
    %v603 = vextract.low.u32 %v602
    %v604 = vextract.high.u32 %v602
    %v605 = vmul.u32 %v598, %v589
    %v606 = vadd.s32 %v601, %v603
    %vm607 = vc.u32 %v601, %v603
    %v608 = vadd.s32 %v604, 1
    %v609 = vsel %vm607, %v608, %v604
    %v610 = vadd.s32 %v605, %v609
    %v611 = vadd.s32 %v610, 536870912
    %v612 = vshrl.u32 %v611, 30
    %v613 = vshll.u32 %v612, 30
    %v614 = vsub.s32 %v610, %v613
    %vm615 = vcmp.lt.s32.totalorder %v614, 0
    %v616 = vsub.s32 0, %v614
    %v617 = vsel %vm615, %v616, %v614
    %v618 = vclz %v617
    %v619 = vsub.s32 %v618, 2
    %vm620 = vcmp.gt.s32.totalorder 0, %v619
    %v621 = vsel %vm620, 0, %v619
    %v622 = vsub.s32 32, %v621
    %v623 = vshll.u32 %v614, %v621
    %v624 = vshrl.u32 %v606, %v622
    %v625 = vor.u32 %v623, %v624
    %v626 = vsub.s32 4294967266, %v621
    %v627 = vadd.s32 %v626, 127
    %v628 = vshll.u32 %v627, 23
    %v629 = vor.u32 4788187, %v628
    %v630 = vand.u32 2147483647, %v629
    %v632 = vcvt.s32.f32 %v625
    %v633 = vmul.f32 %v632, %v630
    %v634 = vxor.u32 %v633, 2147483648
    %v635 = vsel %vm552, %v634, %v633
    %v636 = vsub.s32 4, %v612
    %v637 = vsel %vm552, %v636, %v612
    %v638 = vsel %vm551, %v134, %v635
    %v639 = vsel %vm551, 0, %v637
    %v640 = vcosq.f32.pop %v638
    %v641 = vsinq.f32.pop %v638
    %vm642 = vweird.f32 %v134
    %v643 = vadd.s32 %v639, 3
    %v644 = vand.u32 %v643, 3
    %vm645 = vcmp.lt.s32.totalorder %v644, 2
    %vm646 = vcmp.eq.s32.totalorder %v644, 0
    %v647 = vxor.u32 %v641, 2147483648
    %v648 = vsel %vm646, %v640, %v647
    %vm649 = vcmp.eq.s32.totalorder %v644, 2
    %v650 = vxor.u32 %v640, 2147483648
    %v651 = vsel %vm649, %v650, %v641
    %v652 = vsel %vm645, %v648, %v651
    %v653 = vsel %vm642, nan, %v652
    %v654 = vand.u32 2147483647, %v135
    %vm655 = vcmp.le.f32.partialorder %v654, 0.7853982
    %vm656 = vcmp.lt.s32.totalorder %v135, 0
    %v657 = vand.u32 %v135, 2139095040
    %v658 = vshrl.u32 %v657, 23
    %v659 = vsub.s32 %v658, 127
    %v660 = vand.u32 2147483647, %v135
    %v661 = vand.u32 %v660, 8388607
    %v662 = vor.u32 %v661, 8388608
    %v663 = vsub.s32 0, %v662
    %v664 = vadd.s32 %v659, 1
    %vm665 = vcmp.gt.s32.totalorder %v664, 0
    %v666 = vsel %vm665, %v664, 0
    %v667 = vshrl.u32 %v666, 5
    %v668 = vand.u32 %v666, 31
    %v669 = vsub.s32 32, %v668
    %v670 = vshrl.u32 683565275, %v669
    %v671 = vshll.u32 683565275, %v668
    %v672 = vshrl.u32 2475754826, %v669
    %v673 = vor.u32 %v671, %v672
    %v674 = vshll.u32 2475754826, %v668
    %v675 = vshrl.u32 2131351028, %v669
    %v676 = vor.u32 %v674, %v675
    %v677 = vshll.u32 2131351028, %v668
    %v678 = vshrl.u32 2102212464, %v669
    %v679 = vor.u32 %v677, %v678
    %v680 = vshll.u32 2102212464, %v668
    %v681 = vshrl.u32 920167782, %v669
    %v682 = vor.u32 %v680, %v681
    %v683 = vshll.u32 920167782, %v668
    %v684 = vshrl.u32 1326507024, %v669
    %v685 = vor.u32 %v683, %v684
    %vm686 = vcmp.lt.s32.totalorder %v667, 1
    %vm687 = vcmp.lt.s32.totalorder %v667, 2
    %vm688 = vcmp.lt.s32.totalorder %v667, 3
    %vm689 = vcmp.lt.s32.totalorder %v667, 4
    %v690 = vsel %vm686, %v670, %v673
    %v691 = vsel %vm689, %v679, 2102212464
    %v692 = vsel %vm688, %v676, %v691
    %v693 = vsel %vm687, %v690, %v692
    %v694 = vsel %vm686, %v673, %v676
    %v695 = vsel %vm689, %v682, 920167782
    %v696 = vsel %vm688, %v679, %v695
    %v697 = vsel %vm687, %v694, %v696
    %v698 = vsel %vm686, %v676, %v679
    %v699 = vsel %vm689, %v685, 1326507024
    %v700 = vsel %vm688, %v682, %v699
    %v701 = vsel %vm687, %v698, %v700
    %v702 = vshll.u32 %v662, 8
    %v703 = vmul.u32.u64.compose %v702, %v701
    %v704 = vextract.low.u32 %v703
    %v705 = vextract.high.u32 %v703
    %v706 = vmul.u32.u64.compose %v702, %v697
    %v707 = vextract.low.u32 %v706
    %v708 = vextract.high.u32 %v706
    %v709 = vmul.u32 %v702, %v693
    %v710 = vadd.s32 %v705, %v707
    %vm711 = vc.u32 %v705, %v707
    %v712 = vadd.s32 %v708, 1
    %v713 = vsel %vm711, %v712, %v708
    %v714 = vadd.s32 %v709, %v713
    %v715 = vadd.s32 %v714, 536870912
    %v716 = vshrl.u32 %v715, 30
    %v717 = vshll.u32 %v716, 30
    %v718 = vsub.s32 %v714, %v717
    %vm719 = vcmp.lt.s32.totalorder %v718, 0
    %v720 = vsub.s32 0, %v718
    %v721 = vsel %vm719, %v720, %v718
    %v722 = vclz %v721
    %v723 = vsub.s32 %v722, 2
    %vm724 = vcmp.gt.s32.totalorder 0, %v723
    %v725 = vsel %vm724, 0, %v723
    %v726 = vsub.s32 32, %v725
    %v727 = vshll.u32 %v718, %v725
    %v728 = vshrl.u32 %v710, %v726
    %v729 = vor.u32 %v727, %v728
    %v730 = vsub.s32 4294967266, %v725
    %v731 = vadd.s32 %v730, 127
    %v732 = vshll.u32 %v731, 23
    %v733 = vor.u32 4788187, %v732
    %v734 = vand.u32 2147483647, %v733
    %v736 = vcvt.s32.f32 %v729
    %v737 = vmul.f32 %v736, %v734
    %v738 = vxor.u32 %v737, 2147483648
    %v739 = vsel %vm656, %v738, %v737
    %v740 = vsub.s32 4, %v716
    %v741 = vsel %vm656, %v740, %v716
    %v742 = vsel %vm655, %v135, %v739
    %v743 = vsel %vm655, 0, %v741
    %v744 = vcosq.f32.pop %v742
    %v745 = vsinq.f32.pop %v742
    %vm746 = vweird.f32 %v135
    %v747 = vadd.s32 %v743, 3
    %v748 = vand.u32 %v747, 3
    %vm749 = vcmp.lt.s32.totalorder %v748, 2
    %vm750 = vcmp.eq.s32.totalorder %v748, 0
    %v751 = vxor.u32 %v745, 2147483648
    %v752 = vsel %vm750, %v744, %v751
    %vm753 = vcmp.eq.s32.totalorder %v748, 2
    %v754 = vxor.u32 %v744, 2147483648
    %v755 = vsel %vm753, %v754, %v745
    %v756 = vsel %vm749, %v752, %v755
    %v757 = vsel %vm746, nan, %v756
    %v758 = vand.u32 2147483647, %v136
    %vm759 = vcmp.le.f32.partialorder %v758, 0.7853982
    %vm760 = vcmp.lt.s32.totalorder %v136, 0
    %v761 = vand.u32 %v136, 2139095040
    %v762 = vshrl.u32 %v761, 23
    %v763 = vsub.s32 %v762, 127
    %v764 = vand.u32 2147483647, %v136
    %v765 = vand.u32 %v764, 8388607
    %v766 = vor.u32 %v765, 8388608
    %v767 = vsub.s32 0, %v766
    %v768 = vadd.s32 %v763, 1
    %vm769 = vcmp.gt.s32.totalorder %v768, 0
    %v770 = vsel %vm769, %v768, 0
    %v771 = vshrl.u32 %v770, 5
    %v772 = vand.u32 %v770, 31
    %v773 = vsub.s32 32, %v772
    %v774 = vshrl.u32 683565275, %v773
    %v775 = vshll.u32 683565275, %v772
    %v776 = vshrl.u32 2475754826, %v773
    %v777 = vor.u32 %v775, %v776
    %v778 = vshll.u32 2475754826, %v772
    %v779 = vshrl.u32 2131351028, %v773
    %v780 = vor.u32 %v778, %v779
    %v781 = vshll.u32 2131351028, %v772
    %v782 = vshrl.u32 2102212464, %v773
    %v783 = vor.u32 %v781, %v782
    %v784 = vshll.u32 2102212464, %v772
    %v785 = vshrl.u32 920167782, %v773
    %v786 = vor.u32 %v784, %v785
    %v787 = vshll.u32 920167782, %v772
    %v788 = vshrl.u32 1326507024, %v773
    %v789 = vor.u32 %v787, %v788
    %vm790 = vcmp.lt.s32.totalorder %v771, 1
    %vm791 = vcmp.lt.s32.totalorder %v771, 2
    %vm792 = vcmp.lt.s32.totalorder %v771, 3
    %vm793 = vcmp.lt.s32.totalorder %v771, 4
    %v794 = vsel %vm790, %v774, %v777
    %v795 = vsel %vm793, %v783, 2102212464
    %v796 = vsel %vm792, %v780, %v795
    %v797 = vsel %vm791, %v794, %v796
    %v798 = vsel %vm790, %v777, %v780
    %v799 = vsel %vm793, %v786, 920167782
    %v800 = vsel %vm792, %v783, %v799
    %v801 = vsel %vm791, %v798, %v800
    %v802 = vsel %vm790, %v780, %v783
    %v803 = vsel %vm793, %v789, 1326507024
    %v804 = vsel %vm792, %v786, %v803
    %v805 = vsel %vm791, %v802, %v804
    %v806 = vshll.u32 %v766, 8
    %v807 = vmul.u32.u64.compose %v806, %v805
    %v808 = vextract.low.u32 %v807
    %v809 = vextract.high.u32 %v807
    %v810 = vmul.u32.u64.compose %v806, %v801
    %v811 = vextract.low.u32 %v810
    %v812 = vextract.high.u32 %v810
    %v813 = vmul.u32 %v806, %v797
    %v814 = vadd.s32 %v809, %v811
    %vm815 = vc.u32 %v809, %v811
    %v816 = vadd.s32 %v812, 1
    %v817 = vsel %vm815, %v816, %v812
    %v818 = vadd.s32 %v813, %v817
    %v819 = vadd.s32 %v818, 536870912
    %v820 = vshrl.u32 %v819, 30
    %v821 = vshll.u32 %v820, 30
    %v822 = vsub.s32 %v818, %v821
    %vm823 = vcmp.lt.s32.totalorder %v822, 0
    %v824 = vsub.s32 0, %v822
    %v825 = vsel %vm823, %v824, %v822
    %v826 = vclz %v825
    %v827 = vsub.s32 %v826, 2
    %vm828 = vcmp.gt.s32.totalorder 0, %v827
    %v829 = vsel %vm828, 0, %v827
    %v830 = vsub.s32 32, %v829
    %v831 = vshll.u32 %v822, %v829
    %v832 = vshrl.u32 %v814, %v830
    %v833 = vor.u32 %v831, %v832
    %v834 = vsub.s32 4294967266, %v829
    %v835 = vadd.s32 %v834, 127
    %v836 = vshll.u32 %v835, 23
    %v837 = vor.u32 4788187, %v836
    %v838 = vand.u32 2147483647, %v837
    %v840 = vcvt.s32.f32 %v833
    %v841 = vmul.f32 %v840, %v838
    %v842 = vxor.u32 %v841, 2147483648
    %v843 = vsel %vm760, %v842, %v841
    %v844 = vsub.s32 4, %v820
    %v845 = vsel %vm760, %v844, %v820
    %v846 = vsel %vm759, %v136, %v843
    %v847 = vsel %vm759, 0, %v845
    %v848 = vcosq.f32.pop %v846
    %v849 = vsinq.f32.pop %v846
    %vm850 = vweird.f32 %v136
    %v851 = vadd.s32 %v847, 3
    %v852 = vand.u32 %v851, 3
    %vm853 = vcmp.lt.s32.totalorder %v852, 2
    %vm854 = vcmp.eq.s32.totalorder %v852, 0
    %v855 = vxor.u32 %v849, 2147483648
    %v856 = vsel %vm854, %v848, %v855
    %vm857 = vcmp.eq.s32.totalorder %v852, 2
    %v858 = vxor.u32 %v848, 2147483648
    %v859 = vsel %vm857, %v858, %v849
    %v860 = vsel %vm853, %v856, %v859
    %v861 = vsel %vm850, nan, %v860
    %v862 = vand.u32 2147483647, %v137
    %vm863 = vcmp.le.f32.partialorder %v862, 0.7853982
    %vm864 = vcmp.lt.s32.totalorder %v137, 0
    %v865 = vand.u32 %v137, 2139095040
    %v866 = vshrl.u32 %v865, 23
    %v867 = vsub.s32 %v866, 127
    %v868 = vand.u32 2147483647, %v137
    %v869 = vand.u32 %v868, 8388607
    %v870 = vor.u32 %v869, 8388608
    %v871 = vsub.s32 0, %v870
    %v872 = vadd.s32 %v867, 1
    %vm873 = vcmp.gt.s32.totalorder %v872, 0
    %v874 = vsel %vm873, %v872, 0
    %v875 = vshrl.u32 %v874, 5
    %v876 = vand.u32 %v874, 31
    %v877 = vsub.s32 32, %v876
    %v878 = vshrl.u32 683565275, %v877
    %v879 = vshll.u32 683565275, %v876
    %v880 = vshrl.u32 2475754826, %v877
    %v881 = vor.u32 %v879, %v880
    %v882 = vshll.u32 2475754826, %v876
    %v883 = vshrl.u32 2131351028, %v877
    %v884 = vor.u32 %v882, %v883
    %v885 = vshll.u32 2131351028, %v876
    %v886 = vshrl.u32 2102212464, %v877
    %v887 = vor.u32 %v885, %v886
    %v888 = vshll.u32 2102212464, %v876
    %v889 = vshrl.u32 920167782, %v877
    %v890 = vor.u32 %v888, %v889
    %v891 = vshll.u32 920167782, %v876
    %v892 = vshrl.u32 1326507024, %v877
    %v893 = vor.u32 %v891, %v892
    %vm894 = vcmp.lt.s32.totalorder %v875, 1
    %vm895 = vcmp.lt.s32.totalorder %v875, 2
    %vm896 = vcmp.lt.s32.totalorder %v875, 3
    %vm897 = vcmp.lt.s32.totalorder %v875, 4
    %v898 = vsel %vm894, %v878, %v881
    %v899 = vsel %vm897, %v887, 2102212464
    %v900 = vsel %vm896, %v884, %v899
    %v901 = vsel %vm895, %v898, %v900
    %v902 = vsel %vm894, %v881, %v884
    %v903 = vsel %vm897, %v890, 920167782
    %v904 = vsel %vm896, %v887, %v903
    %v905 = vsel %vm895, %v902, %v904
    %v906 = vsel %vm894, %v884, %v887
    %v907 = vsel %vm897, %v893, 1326507024
    %v908 = vsel %vm896, %v890, %v907
    %v909 = vsel %vm895, %v906, %v908
    %v910 = vshll.u32 %v870, 8
    %v911 = vmul.u32.u64.compose %v910, %v909
    %v912 = vextract.low.u32 %v911
    %v913 = vextract.high.u32 %v911
    %v914 = vmul.u32.u64.compose %v910, %v905
    %v915 = vextract.low.u32 %v914
    %v916 = vextract.high.u32 %v914
    %v917 = vmul.u32 %v910, %v901
    %v918 = vadd.s32 %v913, %v915
    %vm919 = vc.u32 %v913, %v915
    %v920 = vadd.s32 %v916, 1
    %v921 = vsel %vm919, %v920, %v916
    %v922 = vadd.s32 %v917, %v921
    %v923 = vadd.s32 %v922, 536870912
    %v924 = vshrl.u32 %v923, 30
    %v925 = vshll.u32 %v924, 30
    %v926 = vsub.s32 %v922, %v925
    %vm927 = vcmp.lt.s32.totalorder %v926, 0
    %v928 = vsub.s32 0, %v926
    %v929 = vsel %vm927, %v928, %v926
    %v930 = vclz %v929
    %v931 = vsub.s32 %v930, 2
    %vm932 = vcmp.gt.s32.totalorder 0, %v931
    %v933 = vsel %vm932, 0, %v931
    %v934 = vsub.s32 32, %v933
    %v935 = vshll.u32 %v926, %v933
    %v936 = vshrl.u32 %v918, %v934
    %v937 = vor.u32 %v935, %v936
    %v938 = vsub.s32 4294967266, %v933
    %v939 = vadd.s32 %v938, 127
    %v940 = vshll.u32 %v939, 23
    %v941 = vor.u32 4788187, %v940
    %v942 = vand.u32 2147483647, %v941
    %v944 = vcvt.s32.f32 %v937
    %v945 = vmul.f32 %v944, %v942
    %v946 = vxor.u32 %v945, 2147483648
    %v947 = vsel %vm864, %v946, %v945
    %v948 = vsub.s32 4, %v924
    %v949 = vsel %vm864, %v948, %v924
    %v950 = vsel %vm863, %v137, %v947
    %v951 = vsel %vm863, 0, %v949
    %v952 = vcosq.f32.pop %v950
    %v953 = vsinq.f32.pop %v950
    %vm954 = vweird.f32 %v137
    %v955 = vadd.s32 %v951, 3
    %v956 = vand.u32 %v955, 3
    %vm957 = vcmp.lt.s32.totalorder %v956, 2
    %vm958 = vcmp.eq.s32.totalorder %v956, 0
    %v959 = vxor.u32 %v953, 2147483648
    %v960 = vsel %vm958, %v952, %v959
    %vm961 = vcmp.eq.s32.totalorder %v956, 2
    %v962 = vxor.u32 %v952, 2147483648
    %v963 = vsel %vm961, %v962, %v953
    %v964 = vsel %vm957, %v960, %v963
    %v965 = vsel %vm954, nan, %v964
    %v966 = vsub.f32 %v653, %v240
    %v967 = vsub.f32 %v757, %v343
    %v968 = vsub.f32 %v861, %v446
    %v969 = vsub.f32 %v965, %v549
    %v970 = vlaneseq
    %v971 = vand.u32 %v970, 127
    %v972 = vand.u32 %v971, 15
    %vm973 = vcmp.ge.s32.totalorder %v971, 16
    %v974 = vshra.s32 %v972, 3
    %v975 = vand.u32 %v974, 1
    %v976 = vcvt.s32.f32 %v975
    %978 = vset.pattern.permute.xlu0 0
    %979 = vperm.xlu0 %978, %v966
    %v980 = vpop.permute.xlu0 %979
    %983 = vset.pattern.permute.xlu0 0
    %984 = vperm.xlu0 %983, %v967
    %v985 = vpop.permute.xlu0 %984
    %988 = vset.pattern.permute.xlu0 0
    %989 = vperm.xlu0 %988, %v968
    %v990 = vpop.permute.xlu0 %989
    %993 = vset.pattern.permute.xlu0 0
    %994 = vperm.xlu0 %993, %v969
    %v995 = vpop.permute.xlu0 %994
    %v997 = vmul.f32 %v980, %v976
    %v998 = vmul.f32 %v985, %v976
    %v999 = vmul.f32 %v990, %v976
    %v1000 = vmul.f32 %v995, %v976
    %1002 = vset.pattern.permute.xlu0 0
    %1003 = vperm.xlu0 %1002, %v240
    %v1004 = vpop.permute.xlu0 %1003
    %1007 = vset.pattern.permute.xlu0 0
    %1008 = vperm.xlu0 %1007, %v343
    %v1009 = vpop.permute.xlu0 %1008
    %1012 = vset.pattern.permute.xlu0 0
    %1013 = vperm.xlu0 %1012, %v446
    %v1014 = vpop.permute.xlu0 %1013
    %1017 = vset.pattern.permute.xlu0 0
    %1018 = vperm.xlu0 %1017, %v549
    %v1019 = vpop.permute.xlu0 %1018
    %v1021 = vadd.f32 %v1004, %v997
    %v1022 = vadd.f32 %v1009, %v998
    %v1023 = vadd.f32 %v1014, %v999
    %v1024 = vadd.f32 %v1019, %v1000
    %1025 = vset.pattern.permute.xlu0 4
    %1026 = vperm.xlu0 %1025, %v966
    %v1027 = vpop.permute.xlu0 %1026
    %1029 = vset.pattern.permute.xlu0 4
    %1030 = vperm.xlu0 %1029, %v967
    %v1031 = vpop.permute.xlu0 %1030
    %1033 = vset.pattern.permute.xlu0 4
    %1034 = vperm.xlu0 %1033, %v968
    %v1035 = vpop.permute.xlu0 %1034
    %1037 = vset.pattern.permute.xlu0 4
    %1038 = vperm.xlu0 %1037, %v969
    %v1039 = vpop.permute.xlu0 %1038
    %v1041 = vmul.f32 %v1027, %v976
    %v1042 = vmul.f32 %v1031, %v976
    %v1043 = vmul.f32 %v1035, %v976
    %v1044 = vmul.f32 %v1039, %v976
    %1045 = vset.pattern.permute.xlu0 4
    %1046 = vperm.xlu0 %1045, %v240
    %v1047 = vpop.permute.xlu0 %1046
    %1049 = vset.pattern.permute.xlu0 4
    %1050 = vperm.xlu0 %1049, %v343
    %v1051 = vpop.permute.xlu0 %1050
    %1053 = vset.pattern.permute.xlu0 4
    %1054 = vperm.xlu0 %1053, %v446
    %v1055 = vpop.permute.xlu0 %1054
    %1057 = vset.pattern.permute.xlu0 4
    %1058 = vperm.xlu0 %1057, %v549
    %v1059 = vpop.permute.xlu0 %1058
    %v1061 = vadd.f32 %v1047, %v1041
    %v1062 = vadd.f32 %v1051, %v1042
    %v1063 = vadd.f32 %v1055, %v1043
    %v1064 = vadd.f32 %v1059, %v1044
    %v1065 = vsel %vm973, 1, 0
    %vm1066 = vcmp.eq.s32.totalorder %v1065, 1
    %v1067 = vsel %vm1066, %v1061, %v1021
    %v1068 = vsel %vm1066, %v1062, %v1022
    %v1069 = vsel %vm1066, %v1063, %v1023
    %v1070 = vsel %vm1066, %v1064, %v1024
    %v1071 = vshra.s32 %v972, 2
    %v1072 = vand.u32 %v1071, 1
    %v1073 = vcvt.s32.f32 %v1072
    %1074 = vset.pattern.permute.xlu0 1
    %1075 = vperm.xlu0 %1074, %v966
    %v1076 = vpop.permute.xlu0 %1075
    %1078 = vset.pattern.permute.xlu0 1
    %1079 = vperm.xlu0 %1078, %v967
    %v1080 = vpop.permute.xlu0 %1079
    %1082 = vset.pattern.permute.xlu0 1
    %1083 = vperm.xlu0 %1082, %v968
    %v1084 = vpop.permute.xlu0 %1083
    %1086 = vset.pattern.permute.xlu0 1
    %1087 = vperm.xlu0 %1086, %v969
    %v1088 = vpop.permute.xlu0 %1087
    %v1090 = vmul.f32 %v1076, %v1073
    %v1091 = vmul.f32 %v1080, %v1073
    %v1092 = vmul.f32 %v1084, %v1073
    %v1093 = vmul.f32 %v1088, %v1073
    %1094 = vset.pattern.permute.xlu0 1
    %1095 = vperm.xlu0 %1094, %v240
    %v1096 = vpop.permute.xlu0 %1095
    %1098 = vset.pattern.permute.xlu0 1
    %1099 = vperm.xlu0 %1098, %v343
    %v1100 = vpop.permute.xlu0 %1099
    %1102 = vset.pattern.permute.xlu0 1
    %1103 = vperm.xlu0 %1102, %v446
    %v1104 = vpop.permute.xlu0 %1103
    %1106 = vset.pattern.permute.xlu0 1
    %1107 = vperm.xlu0 %1106, %v549
    %v1108 = vpop.permute.xlu0 %1107
    %v1110 = vadd.f32 %v1096, %v1090
    %v1111 = vadd.f32 %v1100, %v1091
    %v1112 = vadd.f32 %v1104, %v1092
    %v1113 = vadd.f32 %v1108, %v1093
    %1114 = vset.pattern.permute.xlu0 5
    %1115 = vperm.xlu0 %1114, %v966
    %v1116 = vpop.permute.xlu0 %1115
    %1118 = vset.pattern.permute.xlu0 5
    %1119 = vperm.xlu0 %1118, %v967
    %v1120 = vpop.permute.xlu0 %1119
    %1122 = vset.pattern.permute.xlu0 5
    %1123 = vperm.xlu0 %1122, %v968
    %v1124 = vpop.permute.xlu0 %1123
    %1126 = vset.pattern.permute.xlu0 5
    %1127 = vperm.xlu0 %1126, %v969
    %v1128 = vpop.permute.xlu0 %1127
    %v1130 = vmul.f32 %v1116, %v1073
    %v1131 = vmul.f32 %v1120, %v1073
    %v1132 = vmul.f32 %v1124, %v1073
    %v1133 = vmul.f32 %v1128, %v1073
    %1134 = vset.pattern.permute.xlu0 5
    %1135 = vperm.xlu0 %1134, %v240
    %v1136 = vpop.permute.xlu0 %1135
    %1138 = vset.pattern.permute.xlu0 5
    %1139 = vperm.xlu0 %1138, %v343
    %v1140 = vpop.permute.xlu0 %1139
    %1142 = vset.pattern.permute.xlu0 5
    %1143 = vperm.xlu0 %1142, %v446
    %v1144 = vpop.permute.xlu0 %1143
    %1146 = vset.pattern.permute.xlu0 5
    %1147 = vperm.xlu0 %1146, %v549
    %v1148 = vpop.permute.xlu0 %1147
    %v1150 = vadd.f32 %v1136, %v1130
    %v1151 = vadd.f32 %v1140, %v1131
    %v1152 = vadd.f32 %v1144, %v1132
    %v1153 = vadd.f32 %v1148, %v1133
    %v1154 = vsel %vm1066, %v1150, %v1110
    %v1155 = vsel %vm1066, %v1151, %v1111
    %v1156 = vsel %vm1066, %v1152, %v1112
    %v1157 = vsel %vm1066, %v1153, %v1113
    %v1158 = vmul.f32 %v1067, %v1154
    %v1159 = vmul.f32 %v1068, %v1155
    %v1160 = vmul.f32 %v1069, %v1156
    %v1161 = vmul.f32 %v1070, %v1157
    %v1162 = vshra.s32 %v972, 1
    %v1163 = vand.u32 %v1162, 1
    %v1164 = vcvt.s32.f32 %v1163
    %1165 = vset.pattern.permute.xlu0 2
    %1166 = vperm.xlu0 %1165, %v966
    %v1167 = vpop.permute.xlu0 %1166
    %1169 = vset.pattern.permute.xlu0 2
    %1170 = vperm.xlu0 %1169, %v967
    %v1171 = vpop.permute.xlu0 %1170
    %1173 = vset.pattern.permute.xlu0 2
    %1174 = vperm.xlu0 %1173, %v968
    %v1175 = vpop.permute.xlu0 %1174
    %1177 = vset.pattern.permute.xlu0 2
    %1178 = vperm.xlu0 %1177, %v969
    %v1179 = vpop.permute.xlu0 %1178
    %v1181 = vmul.f32 %v1167, %v1164
    %v1182 = vmul.f32 %v1171, %v1164
    %v1183 = vmul.f32 %v1175, %v1164
    %v1184 = vmul.f32 %v1179, %v1164
    %1185 = vset.pattern.permute.xlu0 2
    %1186 = vperm.xlu0 %1185, %v240
    %v1187 = vpop.permute.xlu0 %1186
    %1189 = vset.pattern.permute.xlu0 2
    %1190 = vperm.xlu0 %1189, %v343
    %v1191 = vpop.permute.xlu0 %1190
    %1193 = vset.pattern.permute.xlu0 2
    %1194 = vperm.xlu0 %1193, %v446
    %v1195 = vpop.permute.xlu0 %1194
    %1197 = vset.pattern.permute.xlu0 2
    %1198 = vperm.xlu0 %1197, %v549
    %v1199 = vpop.permute.xlu0 %1198
    %v1201 = vadd.f32 %v1187, %v1181
    %v1202 = vadd.f32 %v1191, %v1182
    %v1203 = vadd.f32 %v1195, %v1183
    %v1204 = vadd.f32 %v1199, %v1184
    %1205 = vset.pattern.permute.xlu0 6
    %1206 = vperm.xlu0 %1205, %v966
    %v1207 = vpop.permute.xlu0 %1206
    %1209 = vset.pattern.permute.xlu0 6
    %1210 = vperm.xlu0 %1209, %v967
    %v1211 = vpop.permute.xlu0 %1210
    %1213 = vset.pattern.permute.xlu0 6
    %1214 = vperm.xlu0 %1213, %v968
    %v1215 = vpop.permute.xlu0 %1214
    %1217 = vset.pattern.permute.xlu0 6
    %1218 = vperm.xlu0 %1217, %v969
    %v1219 = vpop.permute.xlu0 %1218
    %v1221 = vmul.f32 %v1207, %v1164
    %v1222 = vmul.f32 %v1211, %v1164
    %v1223 = vmul.f32 %v1215, %v1164
    %v1224 = vmul.f32 %v1219, %v1164
    %1225 = vset.pattern.permute.xlu0 6
    %1226 = vperm.xlu0 %1225, %v240
    %v1227 = vpop.permute.xlu0 %1226
    %1229 = vset.pattern.permute.xlu0 6
    %1230 = vperm.xlu0 %1229, %v343
    %v1231 = vpop.permute.xlu0 %1230
    %1233 = vset.pattern.permute.xlu0 6
    %1234 = vperm.xlu0 %1233, %v446
    %v1235 = vpop.permute.xlu0 %1234
    %1237 = vset.pattern.permute.xlu0 6
    %1238 = vperm.xlu0 %1237, %v549
    %v1239 = vpop.permute.xlu0 %1238
    %v1241 = vadd.f32 %v1227, %v1221
    %v1242 = vadd.f32 %v1231, %v1222
    %v1243 = vadd.f32 %v1235, %v1223
    %v1244 = vadd.f32 %v1239, %v1224
    %v1245 = vsel %vm1066, %v1241, %v1201
    %v1246 = vsel %vm1066, %v1242, %v1202
    %v1247 = vsel %vm1066, %v1243, %v1203
    %v1248 = vsel %vm1066, %v1244, %v1204
    %v1249 = vmul.f32 %v1158, %v1245
    %v1250 = vmul.f32 %v1159, %v1246
    %v1251 = vmul.f32 %v1160, %v1247
    %v1252 = vmul.f32 %v1161, %v1248
    %v1253 = vand.u32 %v972, 1
    %v1254 = vcvt.s32.f32 %v1253
    %1255 = vset.pattern.permute.xlu0 3
    %1256 = vperm.xlu0 %1255, %v966
    %v1257 = vpop.permute.xlu0 %1256
    %1259 = vset.pattern.permute.xlu0 3
    %1260 = vperm.xlu0 %1259, %v967
    %v1261 = vpop.permute.xlu0 %1260
    %1263 = vset.pattern.permute.xlu0 3
    %1264 = vperm.xlu0 %1263, %v968
    %v1265 = vpop.permute.xlu0 %1264
    %1267 = vset.pattern.permute.xlu0 3
    %1268 = vperm.xlu0 %1267, %v969
    %v1269 = vpop.permute.xlu0 %1268
    %v1271 = vmul.f32 %v1257, %v1254
    %v1272 = vmul.f32 %v1261, %v1254
    %v1273 = vmul.f32 %v1265, %v1254
    %v1274 = vmul.f32 %v1269, %v1254
    %1275 = vset.pattern.permute.xlu0 3
    %1276 = vperm.xlu0 %1275, %v240
    %v1277 = vpop.permute.xlu0 %1276
    %1279 = vset.pattern.permute.xlu0 3
    %1280 = vperm.xlu0 %1279, %v343
    %v1281 = vpop.permute.xlu0 %1280
    %1283 = vset.pattern.permute.xlu0 3
    %1284 = vperm.xlu0 %1283, %v446
    %v1285 = vpop.permute.xlu0 %1284
    %1287 = vset.pattern.permute.xlu0 3
    %1288 = vperm.xlu0 %1287, %v549
    %v1289 = vpop.permute.xlu0 %1288
    %v1291 = vadd.f32 %v1277, %v1271
    %v1292 = vadd.f32 %v1281, %v1272
    %v1293 = vadd.f32 %v1285, %v1273
    %v1294 = vadd.f32 %v1289, %v1274
    %1295 = vset.pattern.permute.xlu0 7
    %1296 = vperm.xlu0 %1295, %v966
    %v1297 = vpop.permute.xlu0 %1296
    %1299 = vset.pattern.permute.xlu0 7
    %1300 = vperm.xlu0 %1299, %v967
    %v1301 = vpop.permute.xlu0 %1300
    %1303 = vset.pattern.permute.xlu0 7
    %1304 = vperm.xlu0 %1303, %v968
    %v1305 = vpop.permute.xlu0 %1304
    %1307 = vset.pattern.permute.xlu0 7
    %1308 = vperm.xlu0 %1307, %v969
    %v1309 = vpop.permute.xlu0 %1308
    %v1311 = vmul.f32 %v1297, %v1254
    %v1312 = vmul.f32 %v1301, %v1254
    %v1313 = vmul.f32 %v1305, %v1254
    %v1314 = vmul.f32 %v1309, %v1254
    %1315 = vset.pattern.permute.xlu0 7
    %1316 = vperm.xlu0 %1315, %v240
    %v1317 = vpop.permute.xlu0 %1316
    %1319 = vset.pattern.permute.xlu0 7
    %1320 = vperm.xlu0 %1319, %v343
    %v1321 = vpop.permute.xlu0 %1320
    %1323 = vset.pattern.permute.xlu0 7
    %1324 = vperm.xlu0 %1323, %v446
    %v1325 = vpop.permute.xlu0 %1324
    %1327 = vset.pattern.permute.xlu0 7
    %1328 = vperm.xlu0 %1327, %v549
    %v1329 = vpop.permute.xlu0 %1328
    %v1331 = vadd.f32 %v1317, %v1311
    %v1332 = vadd.f32 %v1321, %v1312
    %v1333 = vadd.f32 %v1325, %v1313
    %v1334 = vadd.f32 %v1329, %v1314
    %v1335 = vsel %vm1066, %v1331, %v1291
    %v1336 = vsel %vm1066, %v1332, %v1292
    %v1337 = vsel %vm1066, %v1333, %v1293
    %v1338 = vsel %vm1066, %v1334, %v1294
    %v1339 = vmul.f32 %v1249, %v1335
    %v1340 = vmul.f32 %v1250, %v1336
    %v1341 = vmul.f32 %v1251, %v1337
    %v1342 = vmul.f32 %v1252, %v1338
    %v1343 = vld [vmem:[%s3] sm:$0xff]
    %v1344 = vld [vmem:[%s3 + $0x8] sm:$0xff]
    %v1345 = vld [vmem:[%s3 + $0x10] sm:$0xff]
    %v1346 = vld [vmem:[%s3 + $0x18] sm:$0xff]
    %v1348 = vsel %vm36, %v1339, 0
    %v1351 = vsel %vm36, %v1340, 0
    %v1354 = vsel %vm36, %v1341, 0
    %v1357 = vsel %vm36, %v1342, 0
    %1359 = vmatprep.subr.mxu0 0.0
    %1360 = vmatpush1.msra.mxu0 0.0
    %1361 = vmatprep.subr.mxu0 0.0
    %1362 = vmatpush1.msra.mxu0 0.0
    %1363 = vmatprep.subr.mxu0 0.0
    %1364 = vmatpush1.msra.mxu0 0.0
    %1365 = vmatprep.subr.mxu0 0.0
    %1366 = vmatpush1.msra.mxu0 0.0
    %1367 = vmatprep.subr.mxu0 0.0
    %1368 = vmatpush1.msra.mxu0 0.0
    %1369 = vmatprep.subr.mxu0 0.0
    %1370 = vmatpush1.msra.mxu0 0.0
    %1371 = vmatprep.subr.mxu0 0.0
    %1372 = vmatpush1.msra.mxu0 0.0
    %1373 = vmatprep.subr.mxu0 0.0
    %1374 = vmatpush1.msra.mxu0 0.0
    %1375 = vmatprep.subr.mxu0 0.0
    %1376 = vmatpush1.msra.mxu0 0.0
    %1377 = vmatprep.subr.mxu0 0.0
    %1378 = vmatpush1.msra.mxu0 0.0
    %1379 = vmatprep.subr.mxu0 0.0
    %1380 = vmatpush1.msra.mxu0 0.0
    %1381 = vmatprep.subr.mxu0 0.0
    %1382 = vmatpush1.msra.mxu0 0.0
    %1383 = vmatprep.subr.mxu0 0.0
    %1384 = vmatpush1.msra.mxu0 %v1346
    %1385 = vmatprep.subr.mxu0 0.0
    %1386 = vmatpush1.msra.mxu0 %v1345
    %1387 = vmatprep.subr.mxu0 0.0
    %1388 = vmatpush1.msra.mxu0 %v1344
    %1389 = vmatprep.subr.mxu0 0.0
    %1390 = vmatpush1.msra.mxu0 %v1343
    %1391 = vmatprep.subr.mxu0 0.0
    %1392 = vmatpush2.msra.mxu0 0.0
    %1393 = vmatprep.subr.mxu0 0.0
    %1394 = vmatpush2.msra.mxu0 0.0
    %1395 = vmatprep.subr.mxu0 0.0
    %1396 = vmatpush2.msra.mxu0 0.0
    %1397 = vmatprep.subr.mxu0 0.0
    %1398 = vmatpush2.msra.mxu0 0.0
    %1399 = vmatprep.subr.mxu0 0.0
    %1400 = vmatpush2.msra.mxu0 0.0
    %1401 = vmatprep.subr.mxu0 0.0
    %1402 = vmatpush2.msra.mxu0 0.0
    %1403 = vmatprep.subr.mxu0 0.0
    %1404 = vmatpush2.msra.mxu0 0.0
    %1405 = vmatprep.subr.mxu0 0.0
    %1406 = vmatpush2.msra.mxu0 0.0
    %1407 = vmatprep.subr.mxu0 0.0
    %1408 = vmatpush2.msra.mxu0 0.0
    %1409 = vmatprep.subr.mxu0 0.0
    %1410 = vmatpush2.msra.mxu0 0.0
    %1411 = vmatprep.subr.mxu0 0.0
    %1412 = vmatpush2.msra.mxu0 0.0
    %1413 = vmatprep.subr.mxu0 0.0
    %1414 = vmatpush2.msra.mxu0 0.0
    %1415 = vmatprep.subr.mxu0 0.0
    %1416 = vmatpush2.msra.mxu0 0.0
    %1417 = vmatprep.subr.mxu0 0.0
    %1418 = vmatpush2.msra.mxu0 0.0
    %1419 = vmatprep.subr.mxu0 0.0
    %1420 = vmatpush2.msra.mxu0 0.0
    %1421 = vmatprep.subr.mxu0 0.0
    %1422 = vmatpush2.msra.mxu0 0.0
    %1423 = vmatprep.mubr.f32.mxu0 0.0
    %1424 = vmatmul.mubr.f32.gmra.mxu0 %v1348
    %v1425 = vpop.f32.mrf.mxu0
    %v1426 = vadd.f32 0.0, %v1425
    %v1427 = vpop.f32.mrf.mxu0
    %1428 = vmatprep.mubr.f32.mxu0 0.0
    %1429 = vmatmul.mubr.f32.gmra.mxu0 %v1351
    %v1430 = vpop.f32.mrf.mxu0
    %v1431 = vadd.f32 0.0, %v1430
    %v1432 = vpop.f32.mrf.mxu0
    %1433 = vmatprep.mubr.f32.mxu0 0.0
    %1434 = vmatmul.mubr.f32.gmra.mxu0 %v1354
    %v1435 = vpop.f32.mrf.mxu0
    %v1436 = vadd.f32 0.0, %v1435
    %v1437 = vpop.f32.mrf.mxu0
    %1438 = vmatprep.mubr.f32.mxu0 0.0
    %1439 = vmatmul.mubr.f32.gmra.mxu0 %v1357
    %v1440 = vpop.f32.mrf.mxu0
    %v1441 = vadd.f32 0.0, %v1440
    %v1442 = vpop.f32.mrf.mxu0
    %1443 = vdwg.mxu0
    %v1444 = vmul.f32 %v1426, %v1426
    %v1445 = vmul.f32 %v1431, %v1431
    %v1446 = vmul.f32 %v1436, %v1436
    %v1447 = vmul.f32 %v1441, %v1441
    %v1448 = vld [vmem:[%s4] sm:$0xff]
    %v1449 = vld [vmem:[%s4 + $0x8] sm:$0xff]
    %v1450 = vld [vmem:[%s4 + $0x10] sm:$0xff]
    %v1451 = vld [vmem:[%s4 + $0x18] sm:$0xff]
    %v1452 = vld [vmem:[%s4 + $0x20] sm:$0xff]
    %v1453 = vld [vmem:[%s4 + $0x28] sm:$0xff]
    %v1454 = vld [vmem:[%s4 + $0x30] sm:$0xff]
    %v1455 = vld [vmem:[%s4 + $0x38] sm:$0xff]
    %vm1456 = vcmask 523264
    %v1458 = vsel %vm1456, %v1444, 0
    %v1461 = vsel %vm1456, %v1445, 0
    %v1464 = vsel %vm1456, %v1446, 0
    %v1467 = vsel %vm1456, %v1447, 0
    %1469 = vmatprep.subr.mxu0 0.0
    %1470 = vmatpush1.msra.mxu0 0.0
    %1471 = vmatprep.subr.mxu0 0.0
    %1472 = vmatpush1.msra.mxu0 0.0
    %1473 = vmatprep.subr.mxu0 0.0
    %1474 = vmatpush1.msra.mxu0 0.0
    %1475 = vmatprep.subr.mxu0 0.0
    %1476 = vmatpush1.msra.mxu0 0.0
    %1477 = vmatprep.subr.mxu0 0.0
    %1478 = vmatpush1.msra.mxu0 0.0
    %1479 = vmatprep.subr.mxu0 0.0
    %1480 = vmatpush1.msra.mxu0 0.0
    %1481 = vmatprep.subr.mxu0 0.0
    %1482 = vmatpush1.msra.mxu0 0.0
    %1483 = vmatprep.subr.mxu0 0.0
    %1484 = vmatpush1.msra.mxu0 0.0
    %1485 = vmatprep.subr.mxu0 0.0
    %1486 = vmatpush1.msra.mxu0 %v1455
    %1487 = vmatprep.subr.mxu0 0.0
    %1488 = vmatpush1.msra.mxu0 %v1454
    %1489 = vmatprep.subr.mxu0 0.0
    %1490 = vmatpush1.msra.mxu0 %v1453
    %1491 = vmatprep.subr.mxu0 0.0
    %1492 = vmatpush1.msra.mxu0 %v1452
    %1493 = vmatprep.subr.mxu0 0.0
    %1494 = vmatpush1.msra.mxu0 %v1451
    %1495 = vmatprep.subr.mxu0 0.0
    %1496 = vmatpush1.msra.mxu0 %v1450
    %1497 = vmatprep.subr.mxu0 0.0
    %1498 = vmatpush1.msra.mxu0 %v1449
    %1499 = vmatprep.subr.mxu0 0.0
    %1500 = vmatpush1.msra.mxu0 %v1448
    %1501 = vmatprep.subr.mxu0 0.0
    %1502 = vmatpush2.msra.mxu0 0.0
    %1503 = vmatprep.subr.mxu0 0.0
    %1504 = vmatpush2.msra.mxu0 0.0
    %1505 = vmatprep.subr.mxu0 0.0
    %1506 = vmatpush2.msra.mxu0 0.0
    %1507 = vmatprep.subr.mxu0 0.0
    %1508 = vmatpush2.msra.mxu0 0.0
    %1509 = vmatprep.subr.mxu0 0.0
    %1510 = vmatpush2.msra.mxu0 0.0
    %1511 = vmatprep.subr.mxu0 0.0
    %1512 = vmatpush2.msra.mxu0 0.0
    %1513 = vmatprep.subr.mxu0 0.0
    %1514 = vmatpush2.msra.mxu0 0.0
    %1515 = vmatprep.subr.mxu0 0.0
    %1516 = vmatpush2.msra.mxu0 0.0
    %1517 = vmatprep.subr.mxu0 0.0
    %1518 = vmatpush2.msra.mxu0 0.0
    %1519 = vmatprep.subr.mxu0 0.0
    %1520 = vmatpush2.msra.mxu0 0.0
    %1521 = vmatprep.subr.mxu0 0.0
    %1522 = vmatpush2.msra.mxu0 0.0
    %1523 = vmatprep.subr.mxu0 0.0
    %1524 = vmatpush2.msra.mxu0 0.0
    %1525 = vmatprep.subr.mxu0 0.0
    %1526 = vmatpush2.msra.mxu0 0.0
    %1527 = vmatprep.subr.mxu0 0.0
    %1528 = vmatpush2.msra.mxu0 0.0
    %1529 = vmatprep.subr.mxu0 0.0
    %1530 = vmatpush2.msra.mxu0 0.0
    %1531 = vmatprep.subr.mxu0 0.0
    %1532 = vmatpush2.msra.mxu0 0.0
    %1533 = vmatprep.mubr.f32.mxu0 0.0
    %1534 = vmatmul.mubr.f32.gmra.mxu0 %v1458
    %v1535 = vpop.f32.mrf.mxu0
    %v1536 = vadd.f32 0.0, %v1535
    %v1537 = vpop.f32.mrf.mxu0
    %1538 = vmatprep.mubr.f32.mxu0 0.0
    %1539 = vmatmul.mubr.f32.gmra.mxu0 %v1461
    %v1540 = vpop.f32.mrf.mxu0
    %v1541 = vadd.f32 0.0, %v1540
    %v1542 = vpop.f32.mrf.mxu0
    %1543 = vmatprep.mubr.f32.mxu0 0.0
    %1544 = vmatmul.mubr.f32.gmra.mxu0 %v1464
    %v1545 = vpop.f32.mrf.mxu0
    %v1546 = vadd.f32 0.0, %v1545
    %v1547 = vpop.f32.mrf.mxu0
    %1548 = vmatprep.mubr.f32.mxu0 0.0
    %1549 = vmatmul.mubr.f32.gmra.mxu0 %v1467
    %v1550 = vpop.f32.mrf.mxu0
    %v1551 = vadd.f32 0.0, %v1550
    %v1552 = vpop.f32.mrf.mxu0
    %1553 = vdwg.mxu0
    %1555 = vrot.lane.b32.xlu0 %v1536, 124
    %v1556 = vpop.permute.xlu0 %1555
    %vm1557 = vcmask 31744
    %v1558 = vsel %vm1557, %v1536, 0
    %v1560 = vsel %vm1557, %v1556, 0
    %1562 = vmatprep.subr.mxu0 0.0
    %1563 = vmatpush1.xpose.msra.mxu0 0.0
    %1564 = vmatprep.subr.mxu0 0.0
    %1565 = vmatpush1.xpose.msra.mxu0 0.0
    %1566 = vmatprep.subr.mxu0 0.0
    %1567 = vmatpush1.xpose.msra.mxu0 0.0
    %1568 = vmatprep.subr.mxu0 0.0
    %1569 = vmatpush1.xpose.msra.mxu0 0.0
    %1570 = vmatprep.subr.mxu0 0.0
    %1571 = vmatpush1.xpose.msra.mxu0 0.0
    %1572 = vmatprep.subr.mxu0 0.0
    %1573 = vmatpush1.xpose.msra.mxu0 0.0
    %1574 = vmatprep.subr.mxu0 0.0
    %1575 = vmatpush1.xpose.msra.mxu0 0.0
    %1576 = vmatprep.subr.mxu0 0.0
    %1577 = vmatpush1.xpose.msra.mxu0 0.0
    %1578 = vmatprep.subr.mxu0 0.0
    %1579 = vmatpush1.xpose.msra.mxu0 0.0
    %1580 = vmatprep.subr.mxu0 0.0
    %1581 = vmatpush1.xpose.msra.mxu0 0.0
    %1582 = vmatprep.subr.mxu0 0.0
    %1583 = vmatpush1.xpose.msra.mxu0 0.0
    %1584 = vmatprep.subr.mxu0 0.0
    %1585 = vmatpush1.xpose.msra.mxu0 0.0
    %1586 = vmatprep.subr.mxu0 0.0
    %1587 = vmatpush1.xpose.msra.mxu0 0.0
    %1588 = vmatprep.subr.mxu0 0.0
    %1589 = vmatpush1.xpose.msra.mxu0 0.0
    %1590 = vmatprep.subr.mxu0 0.0
    %1591 = vmatpush1.xpose.msra.mxu0 0.0
    %1592 = vmatprep.subr.mxu0 0.0
    %1593 = vmatpush1.xpose.msra.mxu0 %v1560
    %1594 = vmatprep.subr.mxu0 0.0
    %1595 = vmatpush2.xpose.msra.mxu0 0.0
    %1596 = vmatprep.subr.mxu0 0.0
    %1597 = vmatpush2.xpose.msra.mxu0 0.0
    %1598 = vmatprep.subr.mxu0 0.0
    %1599 = vmatpush2.xpose.msra.mxu0 0.0
    %1600 = vmatprep.subr.mxu0 0.0
    %1601 = vmatpush2.xpose.msra.mxu0 0.0
    %1602 = vmatprep.subr.mxu0 0.0
    %1603 = vmatpush2.xpose.msra.mxu0 0.0
    %1604 = vmatprep.subr.mxu0 0.0
    %1605 = vmatpush2.xpose.msra.mxu0 0.0
    %1606 = vmatprep.subr.mxu0 0.0
    %1607 = vmatpush2.xpose.msra.mxu0 0.0
    %1608 = vmatprep.subr.mxu0 0.0
    %1609 = vmatpush2.xpose.msra.mxu0 0.0
    %1610 = vmatprep.subr.mxu0 0.0
    %1611 = vmatpush2.xpose.msra.mxu0 0.0
    %1612 = vmatprep.subr.mxu0 0.0
    %1613 = vmatpush2.xpose.msra.mxu0 0.0
    %1614 = vmatprep.subr.mxu0 0.0
    %1615 = vmatpush2.xpose.msra.mxu0 0.0
    %1616 = vmatprep.subr.mxu0 0.0
    %1617 = vmatpush2.xpose.msra.mxu0 0.0
    %1618 = vmatprep.subr.mxu0 0.0
    %1619 = vmatpush2.xpose.msra.mxu0 0.0
    %1620 = vmatprep.subr.mxu0 0.0
    %1621 = vmatpush2.xpose.msra.mxu0 0.0
    %1622 = vmatprep.subr.mxu0 0.0
    %1623 = vmatpush2.xpose.msra.mxu0 0.0
    %1624 = vmatprep.subr.mxu0 0.0
    %1625 = vmatpush2.xpose.msra.mxu0 0.0
    %1626 = vmatprep.mubr.f32.mxu0 0.0
    %1627 = vmatmul.mubr.f32.gmra.mxu0 %v1558
    %v1628 = vpop.f32.mrf.mxu0
    %v1629 = vadd.f32 0.0, %v1628
    %v1630 = vpop.f32.mrf.mxu0
    %1631 = vdwg.mxu0
    %1633 = vrot.lane.b32.xlu0 %v1541, 124
    %v1634 = vpop.permute.xlu0 %1633
    %v1635 = vsel %vm1557, %v1541, 0
    %v1637 = vsel %vm1557, %v1634, 0
    %1639 = vmatprep.subr.mxu0 0.0
    %1640 = vmatpush1.xpose.msra.mxu0 0.0
    %1641 = vmatprep.subr.mxu0 0.0
    %1642 = vmatpush1.xpose.msra.mxu0 0.0
    %1643 = vmatprep.subr.mxu0 0.0
    %1644 = vmatpush1.xpose.msra.mxu0 0.0
    %1645 = vmatprep.subr.mxu0 0.0
    %1646 = vmatpush1.xpose.msra.mxu0 0.0
    %1647 = vmatprep.subr.mxu0 0.0
    %1648 = vmatpush1.xpose.msra.mxu0 0.0
    %1649 = vmatprep.subr.mxu0 0.0
    %1650 = vmatpush1.xpose.msra.mxu0 0.0
    %1651 = vmatprep.subr.mxu0 0.0
    %1652 = vmatpush1.xpose.msra.mxu0 0.0
    %1653 = vmatprep.subr.mxu0 0.0
    %1654 = vmatpush1.xpose.msra.mxu0 0.0
    %1655 = vmatprep.subr.mxu0 0.0
    %1656 = vmatpush1.xpose.msra.mxu0 0.0
    %1657 = vmatprep.subr.mxu0 0.0
    %1658 = vmatpush1.xpose.msra.mxu0 0.0
    %1659 = vmatprep.subr.mxu0 0.0
    %1660 = vmatpush1.xpose.msra.mxu0 0.0
    %1661 = vmatprep.subr.mxu0 0.0
    %1662 = vmatpush1.xpose.msra.mxu0 0.0
    %1663 = vmatprep.subr.mxu0 0.0
    %1664 = vmatpush1.xpose.msra.mxu0 0.0
    %1665 = vmatprep.subr.mxu0 0.0
    %1666 = vmatpush1.xpose.msra.mxu0 0.0
    %1667 = vmatprep.subr.mxu0 0.0
    %1668 = vmatpush1.xpose.msra.mxu0 0.0
    %1669 = vmatprep.subr.mxu0 0.0
    %1670 = vmatpush1.xpose.msra.mxu0 %v1637
    %1671 = vmatprep.subr.mxu0 0.0
    %1672 = vmatpush2.xpose.msra.mxu0 0.0
    %1673 = vmatprep.subr.mxu0 0.0
    %1674 = vmatpush2.xpose.msra.mxu0 0.0
    %1675 = vmatprep.subr.mxu0 0.0
    %1676 = vmatpush2.xpose.msra.mxu0 0.0
    %1677 = vmatprep.subr.mxu0 0.0
    %1678 = vmatpush2.xpose.msra.mxu0 0.0
    %1679 = vmatprep.subr.mxu0 0.0
    %1680 = vmatpush2.xpose.msra.mxu0 0.0
    %1681 = vmatprep.subr.mxu0 0.0
    %1682 = vmatpush2.xpose.msra.mxu0 0.0
    %1683 = vmatprep.subr.mxu0 0.0
    %1684 = vmatpush2.xpose.msra.mxu0 0.0
    %1685 = vmatprep.subr.mxu0 0.0
    %1686 = vmatpush2.xpose.msra.mxu0 0.0
    %1687 = vmatprep.subr.mxu0 0.0
    %1688 = vmatpush2.xpose.msra.mxu0 0.0
    %1689 = vmatprep.subr.mxu0 0.0
    %1690 = vmatpush2.xpose.msra.mxu0 0.0
    %1691 = vmatprep.subr.mxu0 0.0
    %1692 = vmatpush2.xpose.msra.mxu0 0.0
    %1693 = vmatprep.subr.mxu0 0.0
    %1694 = vmatpush2.xpose.msra.mxu0 0.0
    %1695 = vmatprep.subr.mxu0 0.0
    %1696 = vmatpush2.xpose.msra.mxu0 0.0
    %1697 = vmatprep.subr.mxu0 0.0
    %1698 = vmatpush2.xpose.msra.mxu0 0.0
    %1699 = vmatprep.subr.mxu0 0.0
    %1700 = vmatpush2.xpose.msra.mxu0 0.0
    %1701 = vmatprep.subr.mxu0 0.0
    %1702 = vmatpush2.xpose.msra.mxu0 0.0
    %1703 = vmatprep.mubr.f32.mxu0 0.0
    %1704 = vmatmul.mubr.f32.gmra.mxu0 %v1635
    %v1705 = vpop.f32.mrf.mxu0
    %v1706 = vadd.f32 0.0, %v1705
    %v1707 = vpop.f32.mrf.mxu0
    %1708 = vdwg.mxu0
    %1710 = vrot.lane.b32.xlu0 %v1546, 124
    %v1711 = vpop.permute.xlu0 %1710
    %v1712 = vsel %vm1557, %v1546, 0
    %v1714 = vsel %vm1557, %v1711, 0
    %1716 = vmatprep.subr.mxu0 0.0
    %1717 = vmatpush1.xpose.msra.mxu0 0.0
    %1718 = vmatprep.subr.mxu0 0.0
    %1719 = vmatpush1.xpose.msra.mxu0 0.0
    %1720 = vmatprep.subr.mxu0 0.0
    %1721 = vmatpush1.xpose.msra.mxu0 0.0
    %1722 = vmatprep.subr.mxu0 0.0
    %1723 = vmatpush1.xpose.msra.mxu0 0.0
    %1724 = vmatprep.subr.mxu0 0.0
    %1725 = vmatpush1.xpose.msra.mxu0 0.0
    %1726 = vmatprep.subr.mxu0 0.0
    %1727 = vmatpush1.xpose.msra.mxu0 0.0
    %1728 = vmatprep.subr.mxu0 0.0
    %1729 = vmatpush1.xpose.msra.mxu0 0.0
    %1730 = vmatprep.subr.mxu0 0.0
    %1731 = vmatpush1.xpose.msra.mxu0 0.0
    %1732 = vmatprep.subr.mxu0 0.0
    %1733 = vmatpush1.xpose.msra.mxu0 0.0
    %1734 = vmatprep.subr.mxu0 0.0
    %1735 = vmatpush1.xpose.msra.mxu0 0.0
    %1736 = vmatprep.subr.mxu0 0.0
    %1737 = vmatpush1.xpose.msra.mxu0 0.0
    %1738 = vmatprep.subr.mxu0 0.0
    %1739 = vmatpush1.xpose.msra.mxu0 0.0
    %1740 = vmatprep.subr.mxu0 0.0
    %1741 = vmatpush1.xpose.msra.mxu0 0.0
    %1742 = vmatprep.subr.mxu0 0.0
    %1743 = vmatpush1.xpose.msra.mxu0 0.0
    %1744 = vmatprep.subr.mxu0 0.0
    %1745 = vmatpush1.xpose.msra.mxu0 0.0
    %1746 = vmatprep.subr.mxu0 0.0
    %1747 = vmatpush1.xpose.msra.mxu0 %v1714
    %1748 = vmatprep.subr.mxu0 0.0
    %1749 = vmatpush2.xpose.msra.mxu0 0.0
    %1750 = vmatprep.subr.mxu0 0.0
    %1751 = vmatpush2.xpose.msra.mxu0 0.0
    %1752 = vmatprep.subr.mxu0 0.0
    %1753 = vmatpush2.xpose.msra.mxu0 0.0
    %1754 = vmatprep.subr.mxu0 0.0
    %1755 = vmatpush2.xpose.msra.mxu0 0.0
    %1756 = vmatprep.subr.mxu0 0.0
    %1757 = vmatpush2.xpose.msra.mxu0 0.0
    %1758 = vmatprep.subr.mxu0 0.0
    %1759 = vmatpush2.xpose.msra.mxu0 0.0
    %1760 = vmatprep.subr.mxu0 0.0
    %1761 = vmatpush2.xpose.msra.mxu0 0.0
    %1762 = vmatprep.subr.mxu0 0.0
    %1763 = vmatpush2.xpose.msra.mxu0 0.0
    %1764 = vmatprep.subr.mxu0 0.0
    %1765 = vmatpush2.xpose.msra.mxu0 0.0
    %1766 = vmatprep.subr.mxu0 0.0
    %1767 = vmatpush2.xpose.msra.mxu0 0.0
    %1768 = vmatprep.subr.mxu0 0.0
    %1769 = vmatpush2.xpose.msra.mxu0 0.0
    %1770 = vmatprep.subr.mxu0 0.0
    %1771 = vmatpush2.xpose.msra.mxu0 0.0
    %1772 = vmatprep.subr.mxu0 0.0
    %1773 = vmatpush2.xpose.msra.mxu0 0.0
    %1774 = vmatprep.subr.mxu0 0.0
    %1775 = vmatpush2.xpose.msra.mxu0 0.0
    %1776 = vmatprep.subr.mxu0 0.0
    %1777 = vmatpush2.xpose.msra.mxu0 0.0
    %1778 = vmatprep.subr.mxu0 0.0
    %1779 = vmatpush2.xpose.msra.mxu0 0.0
    %1780 = vmatprep.mubr.f32.mxu0 0.0
    %1781 = vmatmul.mubr.f32.gmra.mxu0 %v1712
    %v1782 = vpop.f32.mrf.mxu0
    %v1783 = vadd.f32 0.0, %v1782
    %v1784 = vpop.f32.mrf.mxu0
    %1785 = vdwg.mxu0
    %1787 = vrot.lane.b32.xlu0 %v1551, 124
    %v1788 = vpop.permute.xlu0 %1787
    %v1789 = vsel %vm1557, %v1551, 0
    %v1791 = vsel %vm1557, %v1788, 0
    %1793 = vmatprep.subr.mxu0 0.0
    %1794 = vmatpush1.xpose.msra.mxu0 0.0
    %1795 = vmatprep.subr.mxu0 0.0
    %1796 = vmatpush1.xpose.msra.mxu0 0.0
    %1797 = vmatprep.subr.mxu0 0.0
    %1798 = vmatpush1.xpose.msra.mxu0 0.0
    %1799 = vmatprep.subr.mxu0 0.0
    %1800 = vmatpush1.xpose.msra.mxu0 0.0
    %1801 = vmatprep.subr.mxu0 0.0
    %1802 = vmatpush1.xpose.msra.mxu0 0.0
    %1803 = vmatprep.subr.mxu0 0.0
    %1804 = vmatpush1.xpose.msra.mxu0 0.0
    %1805 = vmatprep.subr.mxu0 0.0
    %1806 = vmatpush1.xpose.msra.mxu0 0.0
    %1807 = vmatprep.subr.mxu0 0.0
    %1808 = vmatpush1.xpose.msra.mxu0 0.0
    %1809 = vmatprep.subr.mxu0 0.0
    %1810 = vmatpush1.xpose.msra.mxu0 0.0
    %1811 = vmatprep.subr.mxu0 0.0
    %1812 = vmatpush1.xpose.msra.mxu0 0.0
    %1813 = vmatprep.subr.mxu0 0.0
    %1814 = vmatpush1.xpose.msra.mxu0 0.0
    %1815 = vmatprep.subr.mxu0 0.0
    %1816 = vmatpush1.xpose.msra.mxu0 0.0
    %1817 = vmatprep.subr.mxu0 0.0
    %1818 = vmatpush1.xpose.msra.mxu0 0.0
    %1819 = vmatprep.subr.mxu0 0.0
    %1820 = vmatpush1.xpose.msra.mxu0 0.0
    %1821 = vmatprep.subr.mxu0 0.0
    %1822 = vmatpush1.xpose.msra.mxu0 0.0
    %1823 = vmatprep.subr.mxu0 0.0
    %1824 = vmatpush1.xpose.msra.mxu0 %v1791
    %1825 = vmatprep.subr.mxu0 0.0
    %1826 = vmatpush2.xpose.msra.mxu0 0.0
    %1827 = vmatprep.subr.mxu0 0.0
    %1828 = vmatpush2.xpose.msra.mxu0 0.0
    %1829 = vmatprep.subr.mxu0 0.0
    %1830 = vmatpush2.xpose.msra.mxu0 0.0
    %1831 = vmatprep.subr.mxu0 0.0
    %1832 = vmatpush2.xpose.msra.mxu0 0.0
    %1833 = vmatprep.subr.mxu0 0.0
    %1834 = vmatpush2.xpose.msra.mxu0 0.0
    %1835 = vmatprep.subr.mxu0 0.0
    %1836 = vmatpush2.xpose.msra.mxu0 0.0
    %1837 = vmatprep.subr.mxu0 0.0
    %1838 = vmatpush2.xpose.msra.mxu0 0.0
    %1839 = vmatprep.subr.mxu0 0.0
    %1840 = vmatpush2.xpose.msra.mxu0 0.0
    %1841 = vmatprep.subr.mxu0 0.0
    %1842 = vmatpush2.xpose.msra.mxu0 0.0
    %1843 = vmatprep.subr.mxu0 0.0
    %1844 = vmatpush2.xpose.msra.mxu0 0.0
    %1845 = vmatprep.subr.mxu0 0.0
    %1846 = vmatpush2.xpose.msra.mxu0 0.0
    %1847 = vmatprep.subr.mxu0 0.0
    %1848 = vmatpush2.xpose.msra.mxu0 0.0
    %1849 = vmatprep.subr.mxu0 0.0
    %1850 = vmatpush2.xpose.msra.mxu0 0.0
    %1851 = vmatprep.subr.mxu0 0.0
    %1852 = vmatpush2.xpose.msra.mxu0 0.0
    %1853 = vmatprep.subr.mxu0 0.0
    %1854 = vmatpush2.xpose.msra.mxu0 0.0
    %1855 = vmatprep.subr.mxu0 0.0
    %1856 = vmatpush2.xpose.msra.mxu0 0.0
    %1857 = vmatprep.mubr.f32.mxu0 0.0
    %1858 = vmatmul.mubr.f32.gmra.mxu0 %v1789
    %v1859 = vpop.f32.mrf.mxu0
    %v1860 = vadd.f32 0.0, %v1859
    %v1861 = vpop.f32.mrf.mxu0
    %1862 = vdwg.mxu0
    %vm1863 = vcmask 64512
    %v1864 = vsel %vm1863, %v1629, -inf
    %1865 = vmax.xlane.f32.xlu0 %v1864
    %v1866 = vpop.xlane.xlu0 %1865
    %v1867 = vsel %vm1863, %v1706, -inf
    %1868 = vmax.xlane.f32.xlu0 %v1867
    %v1869 = vpop.xlane.xlu0 %1868
    %v1870 = vsel %vm1863, %v1783, -inf
    %1871 = vmax.xlane.f32.xlu0 %v1870
    %v1872 = vpop.xlane.xlu0 %1871
    %v1873 = vsel %vm1863, %v1860, -inf
    %1874 = vmax.xlane.f32.xlu0 %v1873
    %v1875 = vpop.xlane.xlu0 %1874
    %v1876 = vsub.f32 %v1629, %v1866
    %v1877 = vsub.f32 %v1706, %v1869
    %v1878 = vsub.f32 %v1783, %v1872
    %v1879 = vsub.f32 %v1860, %v1875
    %v1880 = vmul.f32 %v1876, 1.442695
    %v1881 = vpow.pop %v1880
    %v1882 = vmul.f32 %v1877, 1.442695
    %v1883 = vpow.pop %v1882
    %v1884 = vmul.f32 %v1878, 1.442695
    %v1885 = vpow.pop %v1884
    %v1886 = vmul.f32 %v1879, 1.442695
    %v1887 = vpow.pop %v1886
    %v1888 = vsel %vm1863, %v1881, 0.0
    %1889 = vadd.xlane.f32.xlu0 %v1888
    %v1890 = vpop.xlane.xlu0 %1889
    %v1891 = vsel %vm1863, %v1883, 0.0
    %1892 = vadd.xlane.f32.xlu0 %v1891
    %v1893 = vpop.xlane.xlu0 %1892
    %v1894 = vsel %vm1863, %v1885, 0.0
    %1895 = vadd.xlane.f32.xlu0 %v1894
    %v1896 = vpop.xlane.xlu0 %1895
    %v1897 = vsel %vm1863, %v1887, 0.0
    %1898 = vadd.xlane.f32.xlu0 %v1897
    %v1899 = vpop.xlane.xlu0 %1898
    %v1900 = vrcp.pop %v1890
    %v1901 = vmul.f32 1.0, %v1900
    %v1902 = vrcp.pop %v1893
    %v1903 = vmul.f32 1.0, %v1902
    %v1904 = vrcp.pop %v1896
    %v1905 = vmul.f32 1.0, %v1904
    %v1906 = vrcp.pop %v1899
    %v1907 = vmul.f32 1.0, %v1906
    %v1908 = vmul.f32 %v1881, %v1901
    %v1909 = vmul.f32 %v1883, %v1903
    %v1910 = vmul.f32 %v1885, %v1905
    %v1911 = vmul.f32 %v1887, %v1907
    %v1913 = vsel %vm1863, %v1908, 0
    %1915 = vmatprep.subr.mxu0 0.0
    %1916 = vmatpush1.msra.mxu0 0.0
    %1917 = vmatprep.subr.mxu0 0.0
    %1918 = vmatpush1.msra.mxu0 0.0
    %1919 = vmatprep.subr.mxu0 0.0
    %1920 = vmatpush1.msra.mxu0 0.0
    %1921 = vmatprep.subr.mxu0 0.0
    %1922 = vmatpush1.msra.mxu0 0.0
    %1923 = vmatprep.subr.mxu0 0.0
    %1924 = vmatpush1.msra.mxu0 0.0
    %1925 = vmatprep.subr.mxu0 0.0
    %1926 = vmatpush1.msra.mxu0 0.0
    %1927 = vmatprep.subr.mxu0 0.0
    %1928 = vmatpush1.msra.mxu0 0.0
    %1929 = vmatprep.subr.mxu0 0.0
    %1930 = vmatpush1.msra.mxu0 0.0
    %1931 = vmatprep.subr.mxu0 0.0
    %1932 = vmatpush1.msra.mxu0 0.0
    %1933 = vmatprep.subr.mxu0 0.0
    %1934 = vmatpush1.msra.mxu0 0.0
    %1935 = vmatprep.subr.mxu0 0.0
    %1936 = vmatpush1.msra.mxu0 0.0
    %1937 = vmatprep.subr.mxu0 0.0
    %1938 = vmatpush1.msra.mxu0 0.0
    %1939 = vmatprep.subr.mxu0 0.0
    %1940 = vmatpush1.msra.mxu0 0.0
    %1941 = vmatprep.subr.mxu0 0.0
    %1942 = vmatpush1.msra.mxu0 0.0
    %1943 = vmatprep.subr.mxu0 0.0
    %1944 = vmatpush1.msra.mxu0 0.0
    %1945 = vmatprep.subr.mxu0 0.0
    %1946 = vmatpush1.msra.mxu0 %v21
    %1947 = vmatprep.subr.mxu0 0.0
    %1948 = vmatpush2.msra.mxu0 0.0
    %1949 = vmatprep.subr.mxu0 0.0
    %1950 = vmatpush2.msra.mxu0 0.0
    %1951 = vmatprep.subr.mxu0 0.0
    %1952 = vmatpush2.msra.mxu0 0.0
    %1953 = vmatprep.subr.mxu0 0.0
    %1954 = vmatpush2.msra.mxu0 0.0
    %1955 = vmatprep.subr.mxu0 0.0
    %1956 = vmatpush2.msra.mxu0 0.0
    %1957 = vmatprep.subr.mxu0 0.0
    %1958 = vmatpush2.msra.mxu0 0.0
    %1959 = vmatprep.subr.mxu0 0.0
    %1960 = vmatpush2.msra.mxu0 0.0
    %1961 = vmatprep.subr.mxu0 0.0
    %1962 = vmatpush2.msra.mxu0 0.0
    %1963 = vmatprep.subr.mxu0 0.0
    %1964 = vmatpush2.msra.mxu0 0.0
    %1965 = vmatprep.subr.mxu0 0.0
    %1966 = vmatpush2.msra.mxu0 0.0
    %1967 = vmatprep.subr.mxu0 0.0
    %1968 = vmatpush2.msra.mxu0 0.0
    %1969 = vmatprep.subr.mxu0 0.0
    %1970 = vmatpush2.msra.mxu0 0.0
    %1971 = vmatprep.subr.mxu0 0.0
    %1972 = vmatpush2.msra.mxu0 0.0
    %1973 = vmatprep.subr.mxu0 0.0
    %1974 = vmatpush2.msra.mxu0 0.0
    %1975 = vmatprep.subr.mxu0 0.0
    %1976 = vmatpush2.msra.mxu0 0.0
    %1977 = vmatprep.subr.mxu0 0.0
    %1978 = vmatpush2.msra.mxu0 0.0
    %1979 = vmatprep.mubr.f32.mxu0 0.0
    %1980 = vmatmul.mubr.f32.gmra.mxu0 %v1913
    %v1981 = vpop.f32.mrf.mxu0
    %v1982 = vadd.f32 0.0, %v1981
    %v1983 = vpop.f32.mrf.mxu0
    %1984 = vdwg.mxu0
    %v1986 = vsel %vm1863, %v1909, 0
    %1988 = vmatprep.subr.mxu0 0.0
    %1989 = vmatpush1.msra.mxu0 0.0
    %1990 = vmatprep.subr.mxu0 0.0
    %1991 = vmatpush1.msra.mxu0 0.0
    %1992 = vmatprep.subr.mxu0 0.0
    %1993 = vmatpush1.msra.mxu0 0.0
    %1994 = vmatprep.subr.mxu0 0.0
    %1995 = vmatpush1.msra.mxu0 0.0
    %1996 = vmatprep.subr.mxu0 0.0
    %1997 = vmatpush1.msra.mxu0 0.0
    %1998 = vmatprep.subr.mxu0 0.0
    %1999 = vmatpush1.msra.mxu0 0.0
    %2000 = vmatprep.subr.mxu0 0.0
    %2001 = vmatpush1.msra.mxu0 0.0
    %2002 = vmatprep.subr.mxu0 0.0
    %2003 = vmatpush1.msra.mxu0 0.0
    %2004 = vmatprep.subr.mxu0 0.0
    %2005 = vmatpush1.msra.mxu0 0.0
    %2006 = vmatprep.subr.mxu0 0.0
    %2007 = vmatpush1.msra.mxu0 0.0
    %2008 = vmatprep.subr.mxu0 0.0
    %2009 = vmatpush1.msra.mxu0 0.0
    %2010 = vmatprep.subr.mxu0 0.0
    %2011 = vmatpush1.msra.mxu0 0.0
    %2012 = vmatprep.subr.mxu0 0.0
    %2013 = vmatpush1.msra.mxu0 0.0
    %2014 = vmatprep.subr.mxu0 0.0
    %2015 = vmatpush1.msra.mxu0 0.0
    %2016 = vmatprep.subr.mxu0 0.0
    %2017 = vmatpush1.msra.mxu0 0.0
    %2018 = vmatprep.subr.mxu0 0.0
    %2019 = vmatpush1.msra.mxu0 %v22
    %2020 = vmatprep.subr.mxu0 0.0
    %2021 = vmatpush2.msra.mxu0 0.0
    %2022 = vmatprep.subr.mxu0 0.0
    %2023 = vmatpush2.msra.mxu0 0.0
    %2024 = vmatprep.subr.mxu0 0.0
    %2025 = vmatpush2.msra.mxu0 0.0
    %2026 = vmatprep.subr.mxu0 0.0
    %2027 = vmatpush2.msra.mxu0 0.0
    %2028 = vmatprep.subr.mxu0 0.0
    %2029 = vmatpush2.msra.mxu0 0.0
    %2030 = vmatprep.subr.mxu0 0.0
    %2031 = vmatpush2.msra.mxu0 0.0
    %2032 = vmatprep.subr.mxu0 0.0
    %2033 = vmatpush2.msra.mxu0 0.0
    %2034 = vmatprep.subr.mxu0 0.0
    %2035 = vmatpush2.msra.mxu0 0.0
    %2036 = vmatprep.subr.mxu0 0.0
    %2037 = vmatpush2.msra.mxu0 0.0
    %2038 = vmatprep.subr.mxu0 0.0
    %2039 = vmatpush2.msra.mxu0 0.0
    %2040 = vmatprep.subr.mxu0 0.0
    %2041 = vmatpush2.msra.mxu0 0.0
    %2042 = vmatprep.subr.mxu0 0.0
    %2043 = vmatpush2.msra.mxu0 0.0
    %2044 = vmatprep.subr.mxu0 0.0
    %2045 = vmatpush2.msra.mxu0 0.0
    %2046 = vmatprep.subr.mxu0 0.0
    %2047 = vmatpush2.msra.mxu0 0.0
    %2048 = vmatprep.subr.mxu0 0.0
    %2049 = vmatpush2.msra.mxu0 0.0
    %2050 = vmatprep.subr.mxu0 0.0
    %2051 = vmatpush2.msra.mxu0 0.0
    %2052 = vmatprep.mubr.f32.mxu0 0.0
    %2053 = vmatmul.mubr.f32.gmra.mxu0 %v1986
    %v2054 = vpop.f32.mrf.mxu0
    %v2055 = vadd.f32 0.0, %v2054
    %v2056 = vpop.f32.mrf.mxu0
    %2057 = vdwg.mxu0
    %v2059 = vsel %vm1863, %v1910, 0
    %2061 = vmatprep.subr.mxu0 0.0
    %2062 = vmatpush1.msra.mxu0 0.0
    %2063 = vmatprep.subr.mxu0 0.0
    %2064 = vmatpush1.msra.mxu0 0.0
    %2065 = vmatprep.subr.mxu0 0.0
    %2066 = vmatpush1.msra.mxu0 0.0
    %2067 = vmatprep.subr.mxu0 0.0
    %2068 = vmatpush1.msra.mxu0 0.0
    %2069 = vmatprep.subr.mxu0 0.0
    %2070 = vmatpush1.msra.mxu0 0.0
    %2071 = vmatprep.subr.mxu0 0.0
    %2072 = vmatpush1.msra.mxu0 0.0
    %2073 = vmatprep.subr.mxu0 0.0
    %2074 = vmatpush1.msra.mxu0 0.0
    %2075 = vmatprep.subr.mxu0 0.0
    %2076 = vmatpush1.msra.mxu0 0.0
    %2077 = vmatprep.subr.mxu0 0.0
    %2078 = vmatpush1.msra.mxu0 0.0
    %2079 = vmatprep.subr.mxu0 0.0
    %2080 = vmatpush1.msra.mxu0 0.0
    %2081 = vmatprep.subr.mxu0 0.0
    %2082 = vmatpush1.msra.mxu0 0.0
    %2083 = vmatprep.subr.mxu0 0.0
    %2084 = vmatpush1.msra.mxu0 0.0
    %2085 = vmatprep.subr.mxu0 0.0
    %2086 = vmatpush1.msra.mxu0 0.0
    %2087 = vmatprep.subr.mxu0 0.0
    %2088 = vmatpush1.msra.mxu0 0.0
    %2089 = vmatprep.subr.mxu0 0.0
    %2090 = vmatpush1.msra.mxu0 0.0
    %2091 = vmatprep.subr.mxu0 0.0
    %2092 = vmatpush1.msra.mxu0 %v23
    %2093 = vmatprep.subr.mxu0 0.0
    %2094 = vmatpush2.msra.mxu0 0.0
    %2095 = vmatprep.subr.mxu0 0.0
    %2096 = vmatpush2.msra.mxu0 0.0
    %2097 = vmatprep.subr.mxu0 0.0
    %2098 = vmatpush2.msra.mxu0 0.0
    %2099 = vmatprep.subr.mxu0 0.0
    %2100 = vmatpush2.msra.mxu0 0.0
    %2101 = vmatprep.subr.mxu0 0.0
    %2102 = vmatpush2.msra.mxu0 0.0
    %2103 = vmatprep.subr.mxu0 0.0
    %2104 = vmatpush2.msra.mxu0 0.0
    %2105 = vmatprep.subr.mxu0 0.0
    %2106 = vmatpush2.msra.mxu0 0.0
    %2107 = vmatprep.subr.mxu0 0.0
    %2108 = vmatpush2.msra.mxu0 0.0
    %2109 = vmatprep.subr.mxu0 0.0
    %2110 = vmatpush2.msra.mxu0 0.0
    %2111 = vmatprep.subr.mxu0 0.0
    %2112 = vmatpush2.msra.mxu0 0.0
    %2113 = vmatprep.subr.mxu0 0.0
    %2114 = vmatpush2.msra.mxu0 0.0
    %2115 = vmatprep.subr.mxu0 0.0
    %2116 = vmatpush2.msra.mxu0 0.0
    %2117 = vmatprep.subr.mxu0 0.0
    %2118 = vmatpush2.msra.mxu0 0.0
    %2119 = vmatprep.subr.mxu0 0.0
    %2120 = vmatpush2.msra.mxu0 0.0
    %2121 = vmatprep.subr.mxu0 0.0
    %2122 = vmatpush2.msra.mxu0 0.0
    %2123 = vmatprep.subr.mxu0 0.0
    %2124 = vmatpush2.msra.mxu0 0.0
    %2125 = vmatprep.mubr.f32.mxu0 0.0
    %2126 = vmatmul.mubr.f32.gmra.mxu0 %v2059
    %v2127 = vpop.f32.mrf.mxu0
    %v2128 = vadd.f32 0.0, %v2127
    %v2129 = vpop.f32.mrf.mxu0
    %2130 = vdwg.mxu0
    %v2132 = vsel %vm1863, %v1911, 0
    %2134 = vmatprep.subr.mxu0 0.0
    %2135 = vmatpush1.msra.mxu0 0.0
    %2136 = vmatprep.subr.mxu0 0.0
    %2137 = vmatpush1.msra.mxu0 0.0
    %2138 = vmatprep.subr.mxu0 0.0
    %2139 = vmatpush1.msra.mxu0 0.0
    %2140 = vmatprep.subr.mxu0 0.0
    %2141 = vmatpush1.msra.mxu0 0.0
    %2142 = vmatprep.subr.mxu0 0.0
    %2143 = vmatpush1.msra.mxu0 0.0
    %2144 = vmatprep.subr.mxu0 0.0
    %2145 = vmatpush1.msra.mxu0 0.0
    %2146 = vmatprep.subr.mxu0 0.0
    %2147 = vmatpush1.msra.mxu0 0.0
    %2148 = vmatprep.subr.mxu0 0.0
    %2149 = vmatpush1.msra.mxu0 0.0
    %2150 = vmatprep.subr.mxu0 0.0
    %2151 = vmatpush1.msra.mxu0 0.0
    %2152 = vmatprep.subr.mxu0 0.0
    %2153 = vmatpush1.msra.mxu0 0.0
    %2154 = vmatprep.subr.mxu0 0.0
    %2155 = vmatpush1.msra.mxu0 0.0
    %2156 = vmatprep.subr.mxu0 0.0
    %2157 = vmatpush1.msra.mxu0 0.0
    %2158 = vmatprep.subr.mxu0 0.0
    %2159 = vmatpush1.msra.mxu0 0.0
    %2160 = vmatprep.subr.mxu0 0.0
    %2161 = vmatpush1.msra.mxu0 0.0
    %2162 = vmatprep.subr.mxu0 0.0
    %2163 = vmatpush1.msra.mxu0 0.0
    %2164 = vmatprep.subr.mxu0 0.0
    %2165 = vmatpush1.msra.mxu0 %v24
    %2166 = vmatprep.subr.mxu0 0.0
    %2167 = vmatpush2.msra.mxu0 0.0
    %2168 = vmatprep.subr.mxu0 0.0
    %2169 = vmatpush2.msra.mxu0 0.0
    %2170 = vmatprep.subr.mxu0 0.0
    %2171 = vmatpush2.msra.mxu0 0.0
    %2172 = vmatprep.subr.mxu0 0.0
    %2173 = vmatpush2.msra.mxu0 0.0
    %2174 = vmatprep.subr.mxu0 0.0
    %2175 = vmatpush2.msra.mxu0 0.0
    %2176 = vmatprep.subr.mxu0 0.0
    %2177 = vmatpush2.msra.mxu0 0.0
    %2178 = vmatprep.subr.mxu0 0.0
    %2179 = vmatpush2.msra.mxu0 0.0
    %2180 = vmatprep.subr.mxu0 0.0
    %2181 = vmatpush2.msra.mxu0 0.0
    %2182 = vmatprep.subr.mxu0 0.0
    %2183 = vmatpush2.msra.mxu0 0.0
    %2184 = vmatprep.subr.mxu0 0.0
    %2185 = vmatpush2.msra.mxu0 0.0
    %2186 = vmatprep.subr.mxu0 0.0
    %2187 = vmatpush2.msra.mxu0 0.0
    %2188 = vmatprep.subr.mxu0 0.0
    %2189 = vmatpush2.msra.mxu0 0.0
    %2190 = vmatprep.subr.mxu0 0.0
    %2191 = vmatpush2.msra.mxu0 0.0
    %2192 = vmatprep.subr.mxu0 0.0
    %2193 = vmatpush2.msra.mxu0 0.0
    %2194 = vmatprep.subr.mxu0 0.0
    %2195 = vmatpush2.msra.mxu0 0.0
    %2196 = vmatprep.subr.mxu0 0.0
    %2197 = vmatpush2.msra.mxu0 0.0
    %2198 = vmatprep.mubr.f32.mxu0 0.0
    %2199 = vmatmul.mubr.f32.gmra.mxu0 %v2132
    %v2200 = vpop.f32.mrf.mxu0
    %v2201 = vadd.f32 0.0, %v2200
    %v2202 = vpop.f32.mrf.mxu0
    %2203 = vdwg.mxu0
    %v2204 = vcombine.low %v1982, %v2128
    %v2205 = vcombine.high %v1982, %v2128
    %v2207 = vunpack.c.l.s4 1983009808
    %v2208 = vunpack.c.0.s8 %v2207
    %v2209 = vlaneseq
    %v2210 = vshrl.u32 %v2209, 7
    %v2211 = vsub.s32 %v2208, %v2210
    %v2212 = vrot.slane %v2204, %v2211
    %v2214 = vunpack.c.l.s4 1983009808
    %v2215 = vunpack.c.0.s8 %v2214
    %v2216 = vlaneseq
    %v2217 = vshrl.u32 %v2216, 7
    %v2218 = vsub.s32 %v2215, %v2217
    %v2219 = vrot.slane %v2205, %v2218
    %v2220 = vcombine.low %v2055, %v2201
    %v2221 = vcombine.high %v2055, %v2201
    %v2223 = vunpack.c.l.s4 1983009808
    %v2224 = vunpack.c.0.s8 %v2223
    %v2225 = vlaneseq
    %v2226 = vshrl.u32 %v2225, 7
    %v2227 = vsub.s32 %v2224, %v2226
    %v2228 = vrot.slane %v2220, %v2227
    %v2230 = vunpack.c.l.s4 1983009808
    %v2231 = vunpack.c.0.s8 %v2230
    %v2232 = vlaneseq
    %v2233 = vshrl.u32 %v2232, 7
    %v2234 = vsub.s32 %v2231, %v2233
    %v2235 = vrot.slane %v2221, %v2234
    %v2236 = vcombine.low %v2212, %v2228
    %v2237 = vcombine.high %v2212, %v2228
    %v2239 = vunpack.c.l.s4 1934713408
    %v2240 = vunpack.c.0.s8 %v2239
    %v2241 = vlaneseq
    %v2242 = vshrl.u32 %v2241, 7
    %v2243 = vsub.s32 %v2240, %v2242
    %v2244 = vrot.slane %v2236, %v2243
    %v2246 = vunpack.c.l.s4 1934713408
    %v2247 = vunpack.c.0.s8 %v2246
    %v2248 = vlaneseq
    %v2249 = vshrl.u32 %v2248, 7
    %v2250 = vsub.s32 %v2247, %v2249
    %v2251 = vrot.slane %v2237, %v2250
    %v2252 = vcombine.low %v2219, %v2235
    %v2253 = vcombine.high %v2219, %v2235
    %v2255 = vunpack.c.l.s4 1934713408
    %v2256 = vunpack.c.0.s8 %v2255
    %v2257 = vlaneseq
    %v2258 = vshrl.u32 %v2257, 7
    %v2259 = vsub.s32 %v2256, %v2258
    %v2260 = vrot.slane %v2252, %v2259
    %v2262 = vunpack.c.l.s4 1934713408
    %v2263 = vunpack.c.0.s8 %v2262
    %v2264 = vlaneseq
    %v2265 = vshrl.u32 %v2264, 7
    %v2266 = vsub.s32 %v2263, %v2265
    %v2267 = vrot.slane %v2253, %v2266
    %v2268 = vcombine.high %v2244, 0.0
    %v2269 = vcombine.high %v2251, 0.0
    %v2270 = vcombine.high %v2260, 0.0
    %v2271 = vcombine.high %v2267, 0.0
    %2273 = vrot.lane.b32.xlu0 %v2268, 32
    %v2274 = vpop.permute.xlu0 %2273
    %2277 = vrot.lane.b32.xlu0 %v2251, 64
    %v2278 = vpop.permute.xlu0 %2277
    %2281 = vrot.lane.b32.xlu0 %v2269, 96
    %v2282 = vpop.permute.xlu0 %2281
    %2285 = vrot.lane.b32.xlu0 %v2270, 32
    %v2286 = vpop.permute.xlu0 %2285
    %2289 = vrot.lane.b32.xlu0 %v2267, 64
    %v2290 = vpop.permute.xlu0 %2289
    %2293 = vrot.lane.b32.xlu0 %v2271, 96
    %v2294 = vpop.permute.xlu0 %2293
    %v2296 = vsel %vm36, %v2244, %v2274
    %v2297 = vsel %vm1456, %v2296, %v2278
    %vm2298 = vcmask 785408
    %v2299 = vsel %vm2298, %v2297, %v2282
    %v2300 = vsel %vm36, %v2260, %v2286
    %v2301 = vsel %vm1456, %v2300, %v2290
    %v2302 = vsel %vm2298, %v2301, %v2294
    %v2305 = vcombine.low %v2299, %v2302
    %2307 = vst [vmem:[#allocation2] sm:$0xff] %v2305
    // Predicated region
    $region22: #{tpu_custom_call.1} parent=1 // pred_check
      _
    $region23: #{tpu_custom_call.1} parent=1 // pred_check_branch
      %2309 = sbr.rel (0) target = $region25
    $region24: #{tpu_custom_call.1} parent=1 // pred_region
      %s2311 = ssub.s32 128, 128
      %2312 = vsyncadd [#allocation3], %s2311
      %s2314 = sshll.u32 [#allocation2], 4
      %s2315 = int_to_ptr.vmem [resolvable:$true] %s2314
      %2317 = dma.vmem_to_hbm [thread:$0]  %s2315, 128, %s5, [#allocation3]
    $region25: #{tpu_custom_call.1} parent=1 // pred_fallthru
      _
    // Predicated region
    $region26: #{tpu_custom_call.1} parent=1 // pred_check
      _
    $region27: #{tpu_custom_call.1} parent=1 // pred_check_branch
      %2319 = sbr.rel (0) target = $region29
    $region28: #{tpu_custom_call.1} parent=1 // pred_region
      %2320 = dma.done [#allocation3], 128
    $region29: #{tpu_custom_call.1} parent=1 // pred_fallthru
      _
    %2321 = vsyncpa [#allocation3], 1

// kernel: tpu_custom_call.1
$region0: #{tpu_custom_call.1}
  #allocation0 [shape = 'u32[]', space=smem, size = 0x4, offset = 0x4, fixed_abs, tag = 'smem constant byte address 0x4 - core index']
  #allocation1 [shape = 'u32[144,128]{1,0:T(1,128)}', space=vmem, size = 0x12000, scoped, tag = 'internal scratch']
  %s0 = inlined_call_operand.vmem [shape: f32[4,8,32], index: 0, kind: input, shape index: {}]
  %s1 = inlined_call_operand.vmem [shape: f32[32,8], index: 1, kind: input, shape index: {}]
  %s2 = inlined_call_operand.vmem [shape: f32[1,8], index: 2, kind: input, shape index: {}]
  %s3 = inlined_call_operand.vmem [shape: f32[32,64], index: 3, kind: input, shape index: {}]
  %s4 = inlined_call_operand.vmem [shape: f32[64,8], index: 4, kind: input, shape index: {}]
  %s5 = inlined_call_operand.hbm [shape: f32[4,8,32], index: 5, kind: output, shape index: {}]
  %s6 = sld [smem:[#allocation0]]
  $region30: #{tpu_custom_call.1} parent=0
    _
  %s8 = ssub.s32 1, %s6
  %s9 = scalar_select 0, %s8, %s6
  $region1: #{tpu_custom_call.1} parent=0
    #allocation2 [shape = 'u8[16384]{0}', space=vmem, size = 0x4000, scoped, tag = 'output window, operand 0, single buffered']
    #allocation3 [shape = 's32[1]{0}', space=sflag, size = 0x4, scoped, tag = 'scoped memory for tpu_custom_call.1']
    %10 = vsyncpa [#allocation3], 0
    // Predicated region
    $region2: #{tpu_custom_call.1} parent=1 // pred_check
      _
    $region3: #{tpu_custom_call.1} parent=1 // pred_check_branch
      %12 = sbr.rel (0) target = $region5
    $region4: #{tpu_custom_call.1} parent=1 // pred_region
      _
    $region5: #{tpu_custom_call.1} parent=1 // pred_fallthru
      _
    // Predicated region
    $region6: #{tpu_custom_call.1} parent=1 // pred_check
      _
    $region7: #{tpu_custom_call.1} parent=1 // pred_check_branch
      %14 = sbr.rel (0) target = $region9
    $region8: #{tpu_custom_call.1} parent=1 // pred_region
      _
    $region9: #{tpu_custom_call.1} parent=1 // pred_fallthru
      _
    // Predicated region
    $region10: #{tpu_custom_call.1} parent=1 // pred_check
      _
    $region11: #{tpu_custom_call.1} parent=1 // pred_check_branch
      %16 = sbr.rel (0) target = $region13
    $region12: #{tpu_custom_call.1} parent=1 // pred_region
      _
    $region13: #{tpu_custom_call.1} parent=1 // pred_fallthru
      _
    // Predicated region
    $region14: #{tpu_custom_call.1} parent=1 // pred_check
      _
    $region15: #{tpu_custom_call.1} parent=1 // pred_check_branch
      %18 = sbr.rel (0) target = $region17
    $region16: #{tpu_custom_call.1} parent=1 // pred_region
      _
    $region17: #{tpu_custom_call.1} parent=1 // pred_fallthru
      _
    // Predicated region
    $region18: #{tpu_custom_call.1} parent=1 // pred_check
      _
    $region19: #{tpu_custom_call.1} parent=1 // pred_check_branch
      %20 = sbr.rel (0) target = $region21
    $region20: #{tpu_custom_call.1} parent=1 // pred_region
      _
    $region21: #{tpu_custom_call.1} parent=1 // pred_fallthru
      _
    %v21 = vld [vmem:[%s0] sm:$0xff]
    %v22 = vld [vmem:[%s0 + $0x8] sm:$0xff]
    %v23 = vld [vmem:[%s0 + $0x10] sm:$0xff]
    %v24 = vld [vmem:[%s0 + $0x18] sm:$0xff]
    %v25 = vld [vmem:[%s1] sm:$0xff]
    %v26 = vld [vmem:[%s1 + $0x8] sm:$0xff]
    %v27 = vld [vmem:[%s1 + $0x10] sm:$0xff]
    %v28 = vld [vmem:[%s1 + $0x18] sm:$0xff]
    %v29 = vld [vmem:[%s2] sm:$0x1]
    %v31 = vlaneseq
    %v32 = vshrl.u32 %v31, 7
    %v33 = vsub.s32 0, %v32
    %v34 = vrot.slane %v29, %v33
    %vm36 = vcmask 261120
    %v38 = vsel %vm36, %v21, 0
    %v41 = vsel %vm36, %v22, 0
    %v44 = vsel %vm36, %v23, 0
    %v47 = vsel %vm36, %v24, 0
    %49 = vmatprep.subr.mxu0 0.0
    %50 = vmatpush1.msra.mxu0 0.0
    %51 = vmatprep.subr.mxu0 0.0
    %52 = vmatpush1.msra.mxu0 0.0
    %53 = vmatprep.subr.mxu0 0.0
    %54 = vmatpush1.msra.mxu0 0.0
    %55 = vmatprep.subr.mxu0 0.0
    %56 = vmatpush1.msra.mxu0 0.0
    %57 = vmatprep.subr.mxu0 0.0
    %58 = vmatpush1.msra.mxu0 0.0
    %59 = vmatprep.subr.mxu0 0.0
    %60 = vmatpush1.msra.mxu0 0.0
    %61 = vmatprep.subr.mxu0 0.0
    %62 = vmatpush1.msra.mxu0 0.0
    %63 = vmatprep.subr.mxu0 0.0
    %64 = vmatpush1.msra.mxu0 0.0
    %65 = vmatprep.subr.mxu0 0.0
    %66 = vmatpush1.msra.mxu0 0.0
    %67 = vmatprep.subr.mxu0 0.0
    %68 = vmatpush1.msra.mxu0 0.0
    %69 = vmatprep.subr.mxu0 0.0
    %70 = vmatpush1.msra.mxu0 0.0
    %71 = vmatprep.subr.mxu0 0.0
    %72 = vmatpush1.msra.mxu0 0.0
    %73 = vmatprep.subr.mxu0 0.0
    %74 = vmatpush1.msra.mxu0 %v28
    %75 = vmatprep.subr.mxu0 0.0
    %76 = vmatpush1.msra.mxu0 %v27
    %77 = vmatprep.subr.mxu0 0.0
    %78 = vmatpush1.msra.mxu0 %v26
    %79 = vmatprep.subr.mxu0 0.0
    %80 = vmatpush1.msra.mxu0 %v25
    %81 = vmatprep.subr.mxu0 0.0
    %82 = vmatpush2.msra.mxu0 0.0
    %83 = vmatprep.subr.mxu0 0.0
    %84 = vmatpush2.msra.mxu0 0.0
    %85 = vmatprep.subr.mxu0 0.0
    %86 = vmatpush2.msra.mxu0 0.0
    %87 = vmatprep.subr.mxu0 0.0
    %88 = vmatpush2.msra.mxu0 0.0
    %89 = vmatprep.subr.mxu0 0.0
    %90 = vmatpush2.msra.mxu0 0.0
    %91 = vmatprep.subr.mxu0 0.0
    %92 = vmatpush2.msra.mxu0 0.0
    %93 = vmatprep.subr.mxu0 0.0
    %94 = vmatpush2.msra.mxu0 0.0
    %95 = vmatprep.subr.mxu0 0.0
    %96 = vmatpush2.msra.mxu0 0.0
    %97 = vmatprep.subr.mxu0 0.0
    %98 = vmatpush2.msra.mxu0 0.0
    %99 = vmatprep.subr.mxu0 0.0
    %100 = vmatpush2.msra.mxu0 0.0
    %101 = vmatprep.subr.mxu0 0.0
    %102 = vmatpush2.msra.mxu0 0.0
    %103 = vmatprep.subr.mxu0 0.0
    %104 = vmatpush2.msra.mxu0 0.0
    %105 = vmatprep.subr.mxu0 0.0
    %106 = vmatpush2.msra.mxu0 0.0
    %107 = vmatprep.subr.mxu0 0.0
    %108 = vmatpush2.msra.mxu0 0.0
    %109 = vmatprep.subr.mxu0 0.0
    %110 = vmatpush2.msra.mxu0 0.0
    %111 = vmatprep.subr.mxu0 0.0
    %112 = vmatpush2.msra.mxu0 0.0
    %113 = vmatprep.mubr.f32.mxu0 0.0
    %114 = vmatmul.mubr.f32.gmra.mxu0 %v38
    %v115 = vpop.f32.mrf.mxu0
    %v116 = vadd.f32 %v34, %v115
    %v117 = vpop.f32.mrf.mxu0
    %118 = vmatprep.mubr.f32.mxu0 0.0
    %119 = vmatmul.mubr.f32.gmra.mxu0 %v41
    %v120 = vpop.f32.mrf.mxu0
    %v121 = vadd.f32 %v34, %v120
    %v122 = vpop.f32.mrf.mxu0
    %123 = vmatprep.mubr.f32.mxu0 0.0
    %124 = vmatmul.mubr.f32.gmra.mxu0 %v44
    %v125 = vpop.f32.mrf.mxu0
    %v126 = vadd.f32 %v34, %v125
    %v127 = vpop.f32.mrf.mxu0
    %128 = vmatprep.mubr.f32.mxu0 0.0
    %129 = vmatmul.mubr.f32.gmra.mxu0 %v47
    %v130 = vpop.f32.mrf.mxu0
    %v131 = vadd.f32 %v34, %v130
    %v132 = vpop.f32.mrf.mxu0
    %133 = vdwg.mxu0
    %v134 = vmul.f32 %v116, 0.5
    %v135 = vmul.f32 %v121, 0.5
    %v136 = vmul.f32 %v126, 0.5
    %v137 = vmul.f32 %v131, 0.5
    %v138 = vand.u32 2147483647, %v134
    %vm139 = vcmp.le.f32.partialorder %v138, 0.7853982
    %vm140 = vcmp.lt.s32.totalorder %v134, 0
    %v141 = vand.u32 %v134, 2139095040
    %v142 = vshrl.u32 %v141, 23
    %v143 = vsub.s32 %v142, 127
    %v144 = vand.u32 2147483647, %v134
    %v145 = vand.u32 %v144, 8388607
    %v146 = vor.u32 %v145, 8388608
    %v147 = vsub.s32 0, %v146
    %v148 = vadd.s32 %v143, 1
    %vm149 = vcmp.gt.s32.totalorder %v148, 0
    %v150 = vsel %vm149, %v148, 0
    %v151 = vshrl.u32 %v150, 5
    %v152 = vand.u32 %v150, 31
    %v153 = vsub.s32 32, %v152
    %v154 = vshrl.u32 683565275, %v153
    %v155 = vshll.u32 683565275, %v152
    %v156 = vshrl.u32 2475754826, %v153
    %v157 = vor.u32 %v155, %v156
    %v158 = vshll.u32 2475754826, %v152
    %v159 = vshrl.u32 2131351028, %v153
    %v160 = vor.u32 %v158, %v159
    %v161 = vshll.u32 2131351028, %v152
    %v162 = vshrl.u32 2102212464, %v153
    %v163 = vor.u32 %v161, %v162
    %v164 = vshll.u32 2102212464, %v152
    %v165 = vshrl.u32 920167782, %v153
    %v166 = vor.u32 %v164, %v165
    %v167 = vshll.u32 920167782, %v152
    %v168 = vshrl.u32 1326507024, %v153
    %v169 = vor.u32 %v167, %v168
    %vm170 = vcmp.lt.s32.totalorder %v151, 1
    %vm171 = vcmp.lt.s32.totalorder %v151, 2
    %vm172 = vcmp.lt.s32.totalorder %v151, 3
    %vm173 = vcmp.lt.s32.totalorder %v151, 4
    %v174 = vsel %vm170, %v154, %v157
    %v175 = vsel %vm173, %v163, 2102212464
    %v176 = vsel %vm172, %v160, %v175
    %v177 = vsel %vm171, %v174, %v176
    %v178 = vsel %vm170, %v157, %v160
    %v179 = vsel %vm173, %v166, 920167782
    %v180 = vsel %vm172, %v163, %v179
    %v181 = vsel %vm171, %v178, %v180
    %v182 = vsel %vm170, %v160, %v163
    %v183 = vsel %vm173, %v169, 1326507024
    %v184 = vsel %vm172, %v166, %v183
    %v185 = vsel %vm171, %v182, %v184
    %v186 = vshll.u32 %v146, 8
    %v187 = vmul.u32.u64.compose %v186, %v185
    %v188 = vextract.low.u32 %v187
    %v189 = vextract.high.u32 %v187
    %v190 = vmul.u32.u64.compose %v186, %v181
    %v191 = vextract.low.u32 %v190
    %v192 = vextract.high.u32 %v190
    %v193 = vmul.u32 %v186, %v177
    %v194 = vadd.s32 %v189, %v191
    %vm195 = vc.u32 %v189, %v191
    %v196 = vadd.s32 %v192, 1
    %v197 = vsel %vm195, %v196, %v192
    %v198 = vadd.s32 %v193, %v197
    %v199 = vadd.s32 %v198, 536870912
    %v200 = vshrl.u32 %v199, 30
    %v201 = vshll.u32 %v200, 30
    %v202 = vsub.s32 %v198, %v201
    %vm203 = vcmp.lt.s32.totalorder %v202, 0
    %v204 = vsub.s32 0, %v202
    %v205 = vsel %vm203, %v204, %v202
    %v206 = vclz %v205
    %v207 = vsub.s32 %v206, 2
    %vm208 = vcmp.gt.s32.totalorder 0, %v207
    %v209 = vsel %vm208, 0, %v207
    %v210 = vsub.s32 32, %v209
    %v211 = vshll.u32 %v202, %v209
    %v212 = vshrl.u32 %v194, %v210
    %v213 = vor.u32 %v211, %v212
    %v214 = vsub.s32 4294967266, %v209
    %v215 = vadd.s32 %v214, 127
    %v216 = vshll.u32 %v215, 23
    %v217 = vor.u32 4788187, %v216
    %v218 = vand.u32 2147483647, %v217
    %v220 = vcvt.s32.f32 %v213
    %v221 = vmul.f32 %v220, %v218
    %v222 = vxor.u32 %v221, 2147483648
    %v223 = vsel %vm140, %v222, %v221
    %v224 = vsub.s32 4, %v200
    %v225 = vsel %vm140, %v224, %v200
    %v226 = vsel %vm139, %v134, %v223
    %v227 = vsel %vm139, 0, %v225
    %v228 = vcosq.f32.pop %v226
    %v229 = vsinq.f32.pop %v226
    %vm230 = vweird.f32 %v134
    %v231 = vand.u32 %v227, 3
    %vm232 = vcmp.lt.s32.totalorder %v231, 2
    %vm233 = vcmp.eq.s32.totalorder %v231, 0
    %v234 = vxor.u32 %v229, 2147483648
    %v235 = vsel %vm233, %v228, %v234
    %vm236 = vcmp.eq.s32.totalorder %v231, 2
    %v237 = vxor.u32 %v228, 2147483648
    %v238 = vsel %vm236, %v237, %v229
    %v239 = vsel %vm232, %v235, %v238
    %v240 = vsel %vm230, nan, %v239
    %v241 = vand.u32 2147483647, %v135
    %vm242 = vcmp.le.f32.partialorder %v241, 0.7853982
    %vm243 = vcmp.lt.s32.totalorder %v135, 0
    %v244 = vand.u32 %v135, 2139095040
    %v245 = vshrl.u32 %v244, 23
    %v246 = vsub.s32 %v245, 127
    %v247 = vand.u32 2147483647, %v135
    %v248 = vand.u32 %v247, 8388607
    %v249 = vor.u32 %v248, 8388608
    %v250 = vsub.s32 0, %v249
    %v251 = vadd.s32 %v246, 1
    %vm252 = vcmp.gt.s32.totalorder %v251, 0
    %v253 = vsel %vm252, %v251, 0
    %v254 = vshrl.u32 %v253, 5
    %v255 = vand.u32 %v253, 31
    %v256 = vsub.s32 32, %v255
    %v257 = vshrl.u32 683565275, %v256
    %v258 = vshll.u32 683565275, %v255
    %v259 = vshrl.u32 2475754826, %v256
    %v260 = vor.u32 %v258, %v259
    %v261 = vshll.u32 2475754826, %v255
    %v262 = vshrl.u32 2131351028, %v256
    %v263 = vor.u32 %v261, %v262
    %v264 = vshll.u32 2131351028, %v255
    %v265 = vshrl.u32 2102212464, %v256
    %v266 = vor.u32 %v264, %v265
    %v267 = vshll.u32 2102212464, %v255
    %v268 = vshrl.u32 920167782, %v256
    %v269 = vor.u32 %v267, %v268
    %v270 = vshll.u32 920167782, %v255
    %v271 = vshrl.u32 1326507024, %v256
    %v272 = vor.u32 %v270, %v271
    %vm273 = vcmp.lt.s32.totalorder %v254, 1
    %vm274 = vcmp.lt.s32.totalorder %v254, 2
    %vm275 = vcmp.lt.s32.totalorder %v254, 3
    %vm276 = vcmp.lt.s32.totalorder %v254, 4
    %v277 = vsel %vm273, %v257, %v260
    %v278 = vsel %vm276, %v266, 2102212464
    %v279 = vsel %vm275, %v263, %v278
    %v280 = vsel %vm274, %v277, %v279
    %v281 = vsel %vm273, %v260, %v263
    %v282 = vsel %vm276, %v269, 920167782
    %v283 = vsel %vm275, %v266, %v282
    %v284 = vsel %vm274, %v281, %v283
    %v285 = vsel %vm273, %v263, %v266
    %v286 = vsel %vm276, %v272, 1326507024
    %v287 = vsel %vm275, %v269, %v286
    %v288 = vsel %vm274, %v285, %v287
    %v289 = vshll.u32 %v249, 8
    %v290 = vmul.u32.u64.compose %v289, %v288
    %v291 = vextract.low.u32 %v290
    %v292 = vextract.high.u32 %v290
    %v293 = vmul.u32.u64.compose %v289, %v284
    %v294 = vextract.low.u32 %v293
    %v295 = vextract.high.u32 %v293
    %v296 = vmul.u32 %v289, %v280
    %v297 = vadd.s32 %v292, %v294
    %vm298 = vc.u32 %v292, %v294
    %v299 = vadd.s32 %v295, 1
    %v300 = vsel %vm298, %v299, %v295
    %v301 = vadd.s32 %v296, %v300
    %v302 = vadd.s32 %v301, 536870912
    %v303 = vshrl.u32 %v302, 30
    %v304 = vshll.u32 %v303, 30
    %v305 = vsub.s32 %v301, %v304
    %vm306 = vcmp.lt.s32.totalorder %v305, 0
    %v307 = vsub.s32 0, %v305
    %v308 = vsel %vm306, %v307, %v305
    %v309 = vclz %v308
    %v310 = vsub.s32 %v309, 2
    %vm311 = vcmp.gt.s32.totalorder 0, %v310
    %v312 = vsel %vm311, 0, %v310
    %v313 = vsub.s32 32, %v312
    %v314 = vshll.u32 %v305, %v312
    %v315 = vshrl.u32 %v297, %v313
    %v316 = vor.u32 %v314, %v315
    %v317 = vsub.s32 4294967266, %v312
    %v318 = vadd.s32 %v317, 127
    %v319 = vshll.u32 %v318, 23
    %v320 = vor.u32 4788187, %v319
    %v321 = vand.u32 2147483647, %v320
    %v323 = vcvt.s32.f32 %v316
    %v324 = vmul.f32 %v323, %v321
    %v325 = vxor.u32 %v324, 2147483648
    %v326 = vsel %vm243, %v325, %v324
    %v327 = vsub.s32 4, %v303
    %v328 = vsel %vm243, %v327, %v303
    %v329 = vsel %vm242, %v135, %v326
    %v330 = vsel %vm242, 0, %v328
    %v331 = vcosq.f32.pop %v329
    %v332 = vsinq.f32.pop %v329
    %vm333 = vweird.f32 %v135
    %v334 = vand.u32 %v330, 3
    %vm335 = vcmp.lt.s32.totalorder %v334, 2
    %vm336 = vcmp.eq.s32.totalorder %v334, 0
    %v337 = vxor.u32 %v332, 2147483648
    %v338 = vsel %vm336, %v331, %v337
    %vm339 = vcmp.eq.s32.totalorder %v334, 2
    %v340 = vxor.u32 %v331, 2147483648
    %v341 = vsel %vm339, %v340, %v332
    %v342 = vsel %vm335, %v338, %v341
    %v343 = vsel %vm333, nan, %v342
    %v344 = vand.u32 2147483647, %v136
    %vm345 = vcmp.le.f32.partialorder %v344, 0.7853982
    %vm346 = vcmp.lt.s32.totalorder %v136, 0
    %v347 = vand.u32 %v136, 2139095040
    %v348 = vshrl.u32 %v347, 23
    %v349 = vsub.s32 %v348, 127
    %v350 = vand.u32 2147483647, %v136
    %v351 = vand.u32 %v350, 8388607
    %v352 = vor.u32 %v351, 8388608
    %v353 = vsub.s32 0, %v352
    %v354 = vadd.s32 %v349, 1
    %vm355 = vcmp.gt.s32.totalorder %v354, 0
    %v356 = vsel %vm355, %v354, 0
    %v357 = vshrl.u32 %v356, 5
    %v358 = vand.u32 %v356, 31
    %v359 = vsub.s32 32, %v358
    %v360 = vshrl.u32 683565275, %v359
    %v361 = vshll.u32 683565275, %v358
    %v362 = vshrl.u32 2475754826, %v359
    %v363 = vor.u32 %v361, %v362
    %v364 = vshll.u32 2475754826, %v358
    %v365 = vshrl.u32 2131351028, %v359
    %v366 = vor.u32 %v364, %v365
    %v367 = vshll.u32 2131351028, %v358
    %v368 = vshrl.u32 2102212464, %v359
    %v369 = vor.u32 %v367, %v368
    %v370 = vshll.u32 2102212464, %v358
    %v371 = vshrl.u32 920167782, %v359
    %v372 = vor.u32 %v370, %v371
    %v373 = vshll.u32 920167782, %v358
    %v374 = vshrl.u32 1326507024, %v359
    %v375 = vor.u32 %v373, %v374
    %vm376 = vcmp.lt.s32.totalorder %v357, 1
    %vm377 = vcmp.lt.s32.totalorder %v357, 2
    %vm378 = vcmp.lt.s32.totalorder %v357, 3
    %vm379 = vcmp.lt.s32.totalorder %v357, 4
    %v380 = vsel %vm376, %v360, %v363
    %v381 = vsel %vm379, %v369, 2102212464
    %v382 = vsel %vm378, %v366, %v381
    %v383 = vsel %vm377, %v380, %v382
    %v384 = vsel %vm376, %v363, %v366
    %v385 = vsel %vm379, %v372, 920167782
    %v386 = vsel %vm378, %v369, %v385
    %v387 = vsel %vm377, %v384, %v386
    %v388 = vsel %vm376, %v366, %v369
    %v389 = vsel %vm379, %v375, 1326507024
    %v390 = vsel %vm378, %v372, %v389
    %v391 = vsel %vm377, %v388, %v390
    %v392 = vshll.u32 %v352, 8
    %v393 = vmul.u32.u64.compose %v392, %v391
    %v394 = vextract.low.u32 %v393
    %v395 = vextract.high.u32 %v393
    %v396 = vmul.u32.u64.compose %v392, %v387
    %v397 = vextract.low.u32 %v396
    %v398 = vextract.high.u32 %v396
    %v399 = vmul.u32 %v392, %v383
    %v400 = vadd.s32 %v395, %v397
    %vm401 = vc.u32 %v395, %v397
    %v402 = vadd.s32 %v398, 1
    %v403 = vsel %vm401, %v402, %v398
    %v404 = vadd.s32 %v399, %v403
    %v405 = vadd.s32 %v404, 536870912
    %v406 = vshrl.u32 %v405, 30
    %v407 = vshll.u32 %v406, 30
    %v408 = vsub.s32 %v404, %v407
    %vm409 = vcmp.lt.s32.totalorder %v408, 0
    %v410 = vsub.s32 0, %v408
    %v411 = vsel %vm409, %v410, %v408
    %v412 = vclz %v411
    %v413 = vsub.s32 %v412, 2
    %vm414 = vcmp.gt.s32.totalorder 0, %v413
    %v415 = vsel %vm414, 0, %v413
    %v416 = vsub.s32 32, %v415
    %v417 = vshll.u32 %v408, %v415
    %v418 = vshrl.u32 %v400, %v416
    %v419 = vor.u32 %v417, %v418
    %v420 = vsub.s32 4294967266, %v415
    %v421 = vadd.s32 %v420, 127
    %v422 = vshll.u32 %v421, 23
    %v423 = vor.u32 4788187, %v422
    %v424 = vand.u32 2147483647, %v423
    %v426 = vcvt.s32.f32 %v419
    %v427 = vmul.f32 %v426, %v424
    %v428 = vxor.u32 %v427, 2147483648
    %v429 = vsel %vm346, %v428, %v427
    %v430 = vsub.s32 4, %v406
    %v431 = vsel %vm346, %v430, %v406
    %v432 = vsel %vm345, %v136, %v429
    %v433 = vsel %vm345, 0, %v431
    %v434 = vcosq.f32.pop %v432
    %v435 = vsinq.f32.pop %v432
    %vm436 = vweird.f32 %v136
    %v437 = vand.u32 %v433, 3
    %vm438 = vcmp.lt.s32.totalorder %v437, 2
    %vm439 = vcmp.eq.s32.totalorder %v437, 0
    %v440 = vxor.u32 %v435, 2147483648
    %v441 = vsel %vm439, %v434, %v440
    %vm442 = vcmp.eq.s32.totalorder %v437, 2
    %v443 = vxor.u32 %v434, 2147483648
    %v444 = vsel %vm442, %v443, %v435
    %v445 = vsel %vm438, %v441, %v444
    %v446 = vsel %vm436, nan, %v445
    %v447 = vand.u32 2147483647, %v137
    %vm448 = vcmp.le.f32.partialorder %v447, 0.7853982
    %vm449 = vcmp.lt.s32.totalorder %v137, 0
    %v450 = vand.u32 %v137, 2139095040
    %v451 = vshrl.u32 %v450, 23
    %v452 = vsub.s32 %v451, 127
    %v453 = vand.u32 2147483647, %v137
    %v454 = vand.u32 %v453, 8388607
    %v455 = vor.u32 %v454, 8388608
    %v456 = vsub.s32 0, %v455
    %v457 = vadd.s32 %v452, 1
    %vm458 = vcmp.gt.s32.totalorder %v457, 0
    %v459 = vsel %vm458, %v457, 0
    %v460 = vshrl.u32 %v459, 5
    %v461 = vand.u32 %v459, 31
    %v462 = vsub.s32 32, %v461
    %v463 = vshrl.u32 683565275, %v462
    %v464 = vshll.u32 683565275, %v461
    %v465 = vshrl.u32 2475754826, %v462
    %v466 = vor.u32 %v464, %v465
    %v467 = vshll.u32 2475754826, %v461
    %v468 = vshrl.u32 2131351028, %v462
    %v469 = vor.u32 %v467, %v468
    %v470 = vshll.u32 2131351028, %v461
    %v471 = vshrl.u32 2102212464, %v462
    %v472 = vor.u32 %v470, %v471
    %v473 = vshll.u32 2102212464, %v461
    %v474 = vshrl.u32 920167782, %v462
    %v475 = vor.u32 %v473, %v474
    %v476 = vshll.u32 920167782, %v461
    %v477 = vshrl.u32 1326507024, %v462
    %v478 = vor.u32 %v476, %v477
    %vm479 = vcmp.lt.s32.totalorder %v460, 1
    %vm480 = vcmp.lt.s32.totalorder %v460, 2
    %vm481 = vcmp.lt.s32.totalorder %v460, 3
    %vm482 = vcmp.lt.s32.totalorder %v460, 4
    %v483 = vsel %vm479, %v463, %v466
    %v484 = vsel %vm482, %v472, 2102212464
    %v485 = vsel %vm481, %v469, %v484
    %v486 = vsel %vm480, %v483, %v485
    %v487 = vsel %vm479, %v466, %v469
    %v488 = vsel %vm482, %v475, 920167782
    %v489 = vsel %vm481, %v472, %v488
    %v490 = vsel %vm480, %v487, %v489
    %v491 = vsel %vm479, %v469, %v472
    %v492 = vsel %vm482, %v478, 1326507024
    %v493 = vsel %vm481, %v475, %v492
    %v494 = vsel %vm480, %v491, %v493
    %v495 = vshll.u32 %v455, 8
    %v496 = vmul.u32.u64.compose %v495, %v494
    %v497 = vextract.low.u32 %v496
    %v498 = vextract.high.u32 %v496
    %v499 = vmul.u32.u64.compose %v495, %v490
    %v500 = vextract.low.u32 %v499
    %v501 = vextract.high.u32 %v499
    %v502 = vmul.u32 %v495, %v486
    %v503 = vadd.s32 %v498, %v500
    %vm504 = vc.u32 %v498, %v500
    %v505 = vadd.s32 %v501, 1
    %v506 = vsel %vm504, %v505, %v501
    %v507 = vadd.s32 %v502, %v506
    %v508 = vadd.s32 %v507, 536870912
    %v509 = vshrl.u32 %v508, 30
    %v510 = vshll.u32 %v509, 30
    %v511 = vsub.s32 %v507, %v510
    %vm512 = vcmp.lt.s32.totalorder %v511, 0
    %v513 = vsub.s32 0, %v511
    %v514 = vsel %vm512, %v513, %v511
    %v515 = vclz %v514
    %v516 = vsub.s32 %v515, 2
    %vm517 = vcmp.gt.s32.totalorder 0, %v516
    %v518 = vsel %vm517, 0, %v516
    %v519 = vsub.s32 32, %v518
    %v520 = vshll.u32 %v511, %v518
    %v521 = vshrl.u32 %v503, %v519
    %v522 = vor.u32 %v520, %v521
    %v523 = vsub.s32 4294967266, %v518
    %v524 = vadd.s32 %v523, 127
    %v525 = vshll.u32 %v524, 23
    %v526 = vor.u32 4788187, %v525
    %v527 = vand.u32 2147483647, %v526
    %v529 = vcvt.s32.f32 %v522
    %v530 = vmul.f32 %v529, %v527
    %v531 = vxor.u32 %v530, 2147483648
    %v532 = vsel %vm449, %v531, %v530
    %v533 = vsub.s32 4, %v509
    %v534 = vsel %vm449, %v533, %v509
    %v535 = vsel %vm448, %v137, %v532
    %v536 = vsel %vm448, 0, %v534
    %v537 = vcosq.f32.pop %v535
    %v538 = vsinq.f32.pop %v535
    %vm539 = vweird.f32 %v137
    %v540 = vand.u32 %v536, 3
    %vm541 = vcmp.lt.s32.totalorder %v540, 2
    %vm542 = vcmp.eq.s32.totalorder %v540, 0
    %v543 = vxor.u32 %v538, 2147483648
    %v544 = vsel %vm542, %v537, %v543
    %vm545 = vcmp.eq.s32.totalorder %v540, 2
    %v546 = vxor.u32 %v537, 2147483648
    %v547 = vsel %vm545, %v546, %v538
    %v548 = vsel %vm541, %v544, %v547
    %v549 = vsel %vm539, nan, %v548
    %v550 = vand.u32 2147483647, %v134
    %vm551 = vcmp.le.f32.partialorder %v550, 0.7853982
    %vm552 = vcmp.lt.s32.totalorder %v134, 0
    %v553 = vand.u32 %v134, 2139095040
    %v554 = vshrl.u32 %v553, 23
    %v555 = vsub.s32 %v554, 127
    %v556 = vand.u32 2147483647, %v134
    %v557 = vand.u32 %v556, 8388607
    %v558 = vor.u32 %v557, 8388608
    %v559 = vsub.s32 0, %v558
    %v560 = vadd.s32 %v555, 1
    %vm561 = vcmp.gt.s32.totalorder %v560, 0
    %v562 = vsel %vm561, %v560, 0
    %v563 = vshrl.u32 %v562, 5
    %v564 = vand.u32 %v562, 31
    %v565 = vsub.s32 32, %v564
    %v566 = vshrl.u32 683565275, %v565
    %v567 = vshll.u32 683565275, %v564
    %v568 = vshrl.u32 2475754826, %v565
    %v569 = vor.u32 %v567, %v568
    %v570 = vshll.u32 2475754826, %v564
    %v571 = vshrl.u32 2131351028, %v565
    %v572 = vor.u32 %v570, %v571
    %v573 = vshll.u32 2131351028, %v564
    %v574 = vshrl.u32 2102212464, %v565
    %v575 = vor.u32 %v573, %v574
    %v576 = vshll.u32 2102212464, %v564
    %v577 = vshrl.u32 920167782, %v565
    %v578 = vor.u32 %v576, %v577
    %v579 = vshll.u32 920167782, %v564
    %v580 = vshrl.u32 1326507024, %v565
    %v581 = vor.u32 %v579, %v580
    %vm582 = vcmp.lt.s32.totalorder %v563, 1
    %vm583 = vcmp.lt.s32.totalorder %v563, 2
    %vm584 = vcmp.lt.s32.totalorder %v563, 3
    %vm585 = vcmp.lt.s32.totalorder %v563, 4
    %v586 = vsel %vm582, %v566, %v569
    %v587 = vsel %vm585, %v575, 2102212464
    %v588 = vsel %vm584, %v572, %v587
    %v589 = vsel %vm583, %v586, %v588
    %v590 = vsel %vm582, %v569, %v572
    %v591 = vsel %vm585, %v578, 920167782
    %v592 = vsel %vm584, %v575, %v591
    %v593 = vsel %vm583, %v590, %v592
    %v594 = vsel %vm582, %v572, %v575
    %v595 = vsel %vm585, %v581, 1326507024
    %v596 = vsel %vm584, %v578, %v595
    %v597 = vsel %vm583, %v594, %v596
    %v598 = vshll.u32 %v558, 8
    %v599 = vmul.u32.u64.compose %v598, %v597
    %v600 = vextract.low.u32 %v599
    %v601 = vextract.high.u32 %v599
    %v602 = vmul.u32.u64.compose %v598, %v593
    %v603 = vextract.low.u32 %v602
    %v604 = vextract.high.u32 %v602
    %v605 = vmul.u32 %v598, %v589
    %v606 = vadd.s32 %v601, %v603
    %vm607 = vc.u32 %v601, %v603
    %v608 = vadd.s32 %v604, 1
    %v609 = vsel %vm607, %v608, %v604
    %v610 = vadd.s32 %v605, %v609
    %v611 = vadd.s32 %v610, 536870912
    %v612 = vshrl.u32 %v611, 30
    %v613 = vshll.u32 %v612, 30
    %v614 = vsub.s32 %v610, %v613
    %vm615 = vcmp.lt.s32.totalorder %v614, 0
    %v616 = vsub.s32 0, %v614
    %v617 = vsel %vm615, %v616, %v614
    %v618 = vclz %v617
    %v619 = vsub.s32 %v618, 2
    %vm620 = vcmp.gt.s32.totalorder 0, %v619
    %v621 = vsel %vm620, 0, %v619
    %v622 = vsub.s32 32, %v621
    %v623 = vshll.u32 %v614, %v621
    %v624 = vshrl.u32 %v606, %v622
    %v625 = vor.u32 %v623, %v624
    %v626 = vsub.s32 4294967266, %v621
    %v627 = vadd.s32 %v626, 127
    %v628 = vshll.u32 %v627, 23
    %v629 = vor.u32 4788187, %v628
    %v630 = vand.u32 2147483647, %v629
    %v632 = vcvt.s32.f32 %v625
    %v633 = vmul.f32 %v632, %v630
    %v634 = vxor.u32 %v633, 2147483648
    %v635 = vsel %vm552, %v634, %v633
    %v636 = vsub.s32 4, %v612
    %v637 = vsel %vm552, %v636, %v612
    %v638 = vsel %vm551, %v134, %v635
    %v639 = vsel %vm551, 0, %v637
    %v640 = vcosq.f32.pop %v638
    %v641 = vsinq.f32.pop %v638
    %vm642 = vweird.f32 %v134
    %v643 = vadd.s32 %v639, 3
    %v644 = vand.u32 %v643, 3
    %vm645 = vcmp.lt.s32.totalorder %v644, 2
    %vm646 = vcmp.eq.s32.totalorder %v644, 0
    %v647 = vxor.u32 %v641, 2147483648
    %v648 = vsel %vm646, %v640, %v647
    %vm649 = vcmp.eq.s32.totalorder %v644, 2
    %v650 = vxor.u32 %v640, 2147483648
    %v651 = vsel %vm649, %v650, %v641
    %v652 = vsel %vm645, %v648, %v651
    %v653 = vsel %vm642, nan, %v652
    %v654 = vand.u32 2147483647, %v135
    %vm655 = vcmp.le.f32.partialorder %v654, 0.7853982
    %vm656 = vcmp.lt.s32.totalorder %v135, 0
    %v657 = vand.u32 %v135, 2139095040
    %v658 = vshrl.u32 %v657, 23
    %v659 = vsub.s32 %v658, 127
    %v660 = vand.u32 2147483647, %v135
    %v661 = vand.u32 %v660, 8388607
    %v662 = vor.u32 %v661, 8388608
    %v663 = vsub.s32 0, %v662
    %v664 = vadd.s32 %v659, 1
    %vm665 = vcmp.gt.s32.totalorder %v664, 0
    %v666 = vsel %vm665, %v664, 0
    %v667 = vshrl.u32 %v666, 5
    %v668 = vand.u32 %v666, 31
    %v669 = vsub.s32 32, %v668
    %v670 = vshrl.u32 683565275, %v669
    %v671 = vshll.u32 683565275, %v668
    %v672 = vshrl.u32 2475754826, %v669
    %v673 = vor.u32 %v671, %v672
    %v674 = vshll.u32 2475754826, %v668
    %v675 = vshrl.u32 2131351028, %v669
    %v676 = vor.u32 %v674, %v675
    %v677 = vshll.u32 2131351028, %v668
    %v678 = vshrl.u32 2102212464, %v669
    %v679 = vor.u32 %v677, %v678
    %v680 = vshll.u32 2102212464, %v668
    %v681 = vshrl.u32 920167782, %v669
    %v682 = vor.u32 %v680, %v681
    %v683 = vshll.u32 920167782, %v668
    %v684 = vshrl.u32 1326507024, %v669
    %v685 = vor.u32 %v683, %v684
    %vm686 = vcmp.lt.s32.totalorder %v667, 1
    %vm687 = vcmp.lt.s32.totalorder %v667, 2
    %vm688 = vcmp.lt.s32.totalorder %v667, 3
    %vm689 = vcmp.lt.s32.totalorder %v667, 4
    %v690 = vsel %vm686, %v670, %v673
    %v691 = vsel %vm689, %v679, 2102212464
    %v692 = vsel %vm688, %v676, %v691
    %v693 = vsel %vm687, %v690, %v692
    %v694 = vsel %vm686, %v673, %v676
    %v695 = vsel %vm689, %v682, 920167782
    %v696 = vsel %vm688, %v679, %v695
    %v697 = vsel %vm687, %v694, %v696
    %v698 = vsel %vm686, %v676, %v679
    %v699 = vsel %vm689, %v685, 1326507024
    %v700 = vsel %vm688, %v682, %v699
    %v701 = vsel %vm687, %v698, %v700
    %v702 = vshll.u32 %v662, 8
    %v703 = vmul.u32.u64.compose %v702, %v701
    %v704 = vextract.low.u32 %v703
    %v705 = vextract.high.u32 %v703
    %v706 = vmul.u32.u64.compose %v702, %v697
    %v707 = vextract.low.u32 %v706
    %v708 = vextract.high.u32 %v706
    %v709 = vmul.u32 %v702, %v693
    %v710 = vadd.s32 %v705, %v707
    %vm711 = vc.u32 %v705, %v707
    %v712 = vadd.s32 %v708, 1
    %v713 = vsel %vm711, %v712, %v708
    %v714 = vadd.s32 %v709, %v713
    %v715 = vadd.s32 %v714, 536870912
    %v716 = vshrl.u32 %v715, 30
    %v717 = vshll.u32 %v716, 30
    %v718 = vsub.s32 %v714, %v717
    %vm719 = vcmp.lt.s32.totalorder %v718, 0
    %v720 = vsub.s32 0, %v718
    %v721 = vsel %vm719, %v720, %v718
    %v722 = vclz %v721
    %v723 = vsub.s32 %v722, 2
    %vm724 = vcmp.gt.s32.totalorder 0, %v723
    %v725 = vsel %vm724, 0, %v723
    %v726 = vsub.s32 32, %v725
    %v727 = vshll.u32 %v718, %v725
    %v728 = vshrl.u32 %v710, %v726
    %v729 = vor.u32 %v727, %v728
    %v730 = vsub.s32 4294967266, %v725
    %v731 = vadd.s32 %v730, 127
    %v732 = vshll.u32 %v731, 23
    %v733 = vor.u32 4788187, %v732
    %v734 = vand.u32 2147483647, %v733
    %v736 = vcvt.s32.f32 %v729
    %v737 = vmul.f32 %v736, %v734
    %v738 = vxor.u32 %v737, 2147483648
    %v739 = vsel %vm656, %v738, %v737
    %v740 = vsub.s32 4, %v716
    %v741 = vsel %vm656, %v740, %v716
    %v742 = vsel %vm655, %v135, %v739
    %v743 = vsel %vm655, 0, %v741
    %v744 = vcosq.f32.pop %v742
    %v745 = vsinq.f32.pop %v742
    %vm746 = vweird.f32 %v135
    %v747 = vadd.s32 %v743, 3
    %v748 = vand.u32 %v747, 3
    %vm749 = vcmp.lt.s32.totalorder %v748, 2
    %vm750 = vcmp.eq.s32.totalorder %v748, 0
    %v751 = vxor.u32 %v745, 2147483648
    %v752 = vsel %vm750, %v744, %v751
    %vm753 = vcmp.eq.s32.totalorder %v748, 2
    %v754 = vxor.u32 %v744, 2147483648
    %v755 = vsel %vm753, %v754, %v745
    %v756 = vsel %vm749, %v752, %v755
    %v757 = vsel %vm746, nan, %v756
    %v758 = vand.u32 2147483647, %v136
    %vm759 = vcmp.le.f32.partialorder %v758, 0.7853982
    %vm760 = vcmp.lt.s32.totalorder %v136, 0
    %v761 = vand.u32 %v136, 2139095040
    %v762 = vshrl.u32 %v761, 23
    %v763 = vsub.s32 %v762, 127
    %v764 = vand.u32 2147483647, %v136
    %v765 = vand.u32 %v764, 8388607
    %v766 = vor.u32 %v765, 8388608
    %v767 = vsub.s32 0, %v766
    %v768 = vadd.s32 %v763, 1
    %vm769 = vcmp.gt.s32.totalorder %v768, 0
    %v770 = vsel %vm769, %v768, 0
    %v771 = vshrl.u32 %v770, 5
    %v772 = vand.u32 %v770, 31
    %v773 = vsub.s32 32, %v772
    %v774 = vshrl.u32 683565275, %v773
    %v775 = vshll.u32 683565275, %v772
    %v776 = vshrl.u32 2475754826, %v773
    %v777 = vor.u32 %v775, %v776
    %v778 = vshll.u32 2475754826, %v772
    %v779 = vshrl.u32 2131351028, %v773
    %v780 = vor.u32 %v778, %v779
    %v781 = vshll.u32 2131351028, %v772
    %v782 = vshrl.u32 2102212464, %v773
    %v783 = vor.u32 %v781, %v782
    %v784 = vshll.u32 2102212464, %v772
    %v785 = vshrl.u32 920167782, %v773
    %v786 = vor.u32 %v784, %v785
    %v787 = vshll.u32 920167782, %v772
    %v788 = vshrl.u32 1326507024, %v773
    %v789 = vor.u32 %v787, %v788
    %vm790 = vcmp.lt.s32.totalorder %v771, 1
    %vm791 = vcmp.lt.s32.totalorder %v771, 2
    %vm792 = vcmp.lt.s32.totalorder %v771, 3
    %vm793 = vcmp.lt.s32.totalorder %v771, 4
    %v794 = vsel %vm790, %v774, %v777
    %v795 = vsel %vm793, %v783, 2102212464
    %v796 = vsel %vm792, %v780, %v795
    %v797 = vsel %vm791, %v794, %v796
    %v798 = vsel %vm790, %v777, %v780
    %v799 = vsel %vm793, %v786, 920167782
    %v800 = vsel %vm792, %v783, %v799
    %v801 = vsel %vm791, %v798, %v800
    %v802 = vsel %vm790, %v780, %v783
    %v803 = vsel %vm793, %v789, 1326507024
    %v804 = vsel %vm792, %v786, %v803
    %v805 = vsel %vm791, %v802, %v804
    %v806 = vshll.u32 %v766, 8
    %v807 = vmul.u32.u64.compose %v806, %v805
    %v808 = vextract.low.u32 %v807
    %v809 = vextract.high.u32 %v807
    %v810 = vmul.u32.u64.compose %v806, %v801
    %v811 = vextract.low.u32 %v810
    %v812 = vextract.high.u32 %v810
    %v813 = vmul.u32 %v806, %v797
    %v814 = vadd.s32 %v809, %v811
    %vm815 = vc.u32 %v809, %v811
    %v816 = vadd.s32 %v812, 1
    %v817 = vsel %vm815, %v816, %v812
    %v818 = vadd.s32 %v813, %v817
    %v819 = vadd.s32 %v818, 536870912
    %v820 = vshrl.u32 %v819, 30
    %v821 = vshll.u32 %v820, 30
    %v822 = vsub.s32 %v818, %v821
    %vm823 = vcmp.lt.s32.totalorder %v822, 0
    %v824 = vsub.s32 0, %v822
    %v825 = vsel %vm823, %v824, %v822
    %v826 = vclz %v825
    %v827 = vsub.s32 %v826, 2
    %vm828 = vcmp.gt.s32.totalorder 0, %v827
    %v829 = vsel %vm828, 0, %v827
    %v830 = vsub.s32 32, %v829
    %v831 = vshll.u32 %v822, %v829
    %v832 = vshrl.u32 %v814, %v830
    %v833 = vor.u32 %v831, %v832
    %v834 = vsub.s32 4294967266, %v829
    %v835 = vadd.s32 %v834, 127
    %v836 = vshll.u32 %v835, 23
    %v837 = vor.u32 4788187, %v836
    %v838 = vand.u32 2147483647, %v837
    %v840 = vcvt.s32.f32 %v833
    %v841 = vmul.f32 %v840, %v838
    %v842 = vxor.u32 %v841, 2147483648
    %v843 = vsel %vm760, %v842, %v841
    %v844 = vsub.s32 4, %v820
    %v845 = vsel %vm760, %v844, %v820
    %v846 = vsel %vm759, %v136, %v843
    %v847 = vsel %vm759, 0, %v845
    %v848 = vcosq.f32.pop %v846
    %v849 = vsinq.f32.pop %v846
    %vm850 = vweird.f32 %v136
    %v851 = vadd.s32 %v847, 3
    %v852 = vand.u32 %v851, 3
    %vm853 = vcmp.lt.s32.totalorder %v852, 2
    %vm854 = vcmp.eq.s32.totalorder %v852, 0
    %v855 = vxor.u32 %v849, 2147483648
    %v856 = vsel %vm854, %v848, %v855
    %vm857 = vcmp.eq.s32.totalorder %v852, 2
    %v858 = vxor.u32 %v848, 2147483648
    %v859 = vsel %vm857, %v858, %v849
    %v860 = vsel %vm853, %v856, %v859
    %v861 = vsel %vm850, nan, %v860
    %v862 = vand.u32 2147483647, %v137
    %vm863 = vcmp.le.f32.partialorder %v862, 0.7853982
    %vm864 = vcmp.lt.s32.totalorder %v137, 0
    %v865 = vand.u32 %v137, 2139095040
    %v866 = vshrl.u32 %v865, 23
    %v867 = vsub.s32 %v866, 127
    %v868 = vand.u32 2147483647, %v137
    %v869 = vand.u32 %v868, 8388607
    %v870 = vor.u32 %v869, 8388608
    %v871 = vsub.s32 0, %v870
    %v872 = vadd.s32 %v867, 1
    %vm873 = vcmp.gt.s32.totalorder %v872, 0
    %v874 = vsel %vm873, %v872, 0
    %v875 = vshrl.u32 %v874, 5
    %v876 = vand.u32 %v874, 31
    %v877 = vsub.s32 32, %v876
    %v878 = vshrl.u32 683565275, %v877
    %v879 = vshll.u32 683565275, %v876
    %v880 = vshrl.u32 2475754826, %v877
    %v881 = vor.u32 %v879, %v880
    %v882 = vshll.u32 2475754826, %v876
    %v883 = vshrl.u32 2131351028, %v877
    %v884 = vor.u32 %v882, %v883
    %v885 = vshll.u32 2131351028, %v876
    %v886 = vshrl.u32 2102212464, %v877
    %v887 = vor.u32 %v885, %v886
    %v888 = vshll.u32 2102212464, %v876
    %v889 = vshrl.u32 920167782, %v877
    %v890 = vor.u32 %v888, %v889
    %v891 = vshll.u32 920167782, %v876
    %v892 = vshrl.u32 1326507024, %v877
    %v893 = vor.u32 %v891, %v892
    %vm894 = vcmp.lt.s32.totalorder %v875, 1
    %vm895 = vcmp.lt.s32.totalorder %v875, 2
    %vm896 = vcmp.lt.s32.totalorder %v875, 3
    %vm897 = vcmp.lt.s32.totalorder %v875, 4
    %v898 = vsel %vm894, %v878, %v881
    %v899 = vsel %vm897, %v887, 2102212464
    %v900 = vsel %vm896, %v884, %v899
    %v901 = vsel %vm895, %v898, %v900
    %v902 = vsel %vm894, %v881, %v884
    %v903 = vsel %vm897, %v890, 920167782
    %v904 = vsel %vm896, %v887, %v903
    %v905 = vsel %vm895, %v902, %v904
    %v906 = vsel %vm894, %v884, %v887
    %v907 = vsel %vm897, %v893, 1326507024
    %v908 = vsel %vm896, %v890, %v907
    %v909 = vsel %vm895, %v906, %v908
    %v910 = vshll.u32 %v870, 8
    %v911 = vmul.u32.u64.compose %v910, %v909
    %v912 = vextract.low.u32 %v911
    %v913 = vextract.high.u32 %v911
    %v914 = vmul.u32.u64.compose %v910, %v905
    %v915 = vextract.low.u32 %v914
    %v916 = vextract.high.u32 %v914
    %v917 = vmul.u32 %v910, %v901
    %v918 = vadd.s32 %v913, %v915
    %vm919 = vc.u32 %v913, %v915
    %v920 = vadd.s32 %v916, 1
    %v921 = vsel %vm919, %v920, %v916
    %v922 = vadd.s32 %v917, %v921
    %v923 = vadd.s32 %v922, 536870912
    %v924 = vshrl.u32 %v923, 30
    %v925 = vshll.u32 %v924, 30
    %v926 = vsub.s32 %v922, %v925
    %vm927 = vcmp.lt.s32.totalorder %v926, 0
    %v928 = vsub.s32 0, %v926
    %v929 = vsel %vm927, %v928, %v926
    %v930 = vclz %v929
    %v931 = vsub.s32 %v930, 2
    %vm932 = vcmp.gt.s32.totalorder 0, %v931
    %v933 = vsel %vm932, 0, %v931
    %v934 = vsub.s32 32, %v933
    %v935 = vshll.u32 %v926, %v933
    %v936 = vshrl.u32 %v918, %v934
    %v937 = vor.u32 %v935, %v936
    %v938 = vsub.s32 4294967266, %v933
    %v939 = vadd.s32 %v938, 127
    %v940 = vshll.u32 %v939, 23
    %v941 = vor.u32 4788187, %v940
    %v942 = vand.u32 2147483647, %v941
    %v944 = vcvt.s32.f32 %v937
    %v945 = vmul.f32 %v944, %v942
    %v946 = vxor.u32 %v945, 2147483648
    %v947 = vsel %vm864, %v946, %v945
    %v948 = vsub.s32 4, %v924
    %v949 = vsel %vm864, %v948, %v924
    %v950 = vsel %vm863, %v137, %v947
    %v951 = vsel %vm863, 0, %v949
    %v952 = vcosq.f32.pop %v950
    %v953 = vsinq.f32.pop %v950
    %vm954 = vweird.f32 %v137
    %v955 = vadd.s32 %v951, 3
    %v956 = vand.u32 %v955, 3
    %vm957 = vcmp.lt.s32.totalorder %v956, 2
    %vm958 = vcmp.eq.s32.totalorder %v956, 0
    %v959 = vxor.u32 %v953, 2147483648
    %v960 = vsel %vm958, %v952, %v959
    %vm961 = vcmp.eq.s32.totalorder %v956, 2
    %v962 = vxor.u32 %v952, 2147483648
    %v963 = vsel %vm961, %v962, %v953
    %v964 = vsel %vm957, %v960, %v963
    %v965 = vsel %vm954, nan, %v964
    %v966 = vsub.f32 %v653, %v240
    %v967 = vsub.f32 %v757, %v343
    %v968 = vsub.f32 %v861, %v446
    %v969 = vsub.f32 %v965, %v549
    %v970 = vlaneseq
    %v971 = vand.u32 %v970, 127
    %v972 = vand.u32 %v971, 15
    %vm973 = vcmp.ge.s32.totalorder %v971, 16
    %v974 = vshra.s32 %v972, 3
    %v975 = vand.u32 %v974, 1
    %v976 = vcvt.s32.f32 %v975
    %978 = vset.pattern.permute.xlu0 0
    %979 = vperm.xlu0 %978, %v966
    %v980 = vpop.permute.xlu0 %979
    %983 = vset.pattern.permute.xlu0 0
    %984 = vperm.xlu0 %983, %v967
    %v985 = vpop.permute.xlu0 %984
    %988 = vset.pattern.permute.xlu0 0
    %989 = vperm.xlu0 %988, %v968
    %v990 = vpop.permute.xlu0 %989
    %993 = vset.pattern.permute.xlu0 0
    %994 = vperm.xlu0 %993, %v969
    %v995 = vpop.permute.xlu0 %994
    %v997 = vmul.f32 %v980, %v976
    %v998 = vmul.f32 %v985, %v976
    %v999 = vmul.f32 %v990, %v976
    %v1000 = vmul.f32 %v995, %v976
    %1002 = vset.pattern.permute.xlu0 0
    %1003 = vperm.xlu0 %1002, %v240
    %v1004 = vpop.permute.xlu0 %1003
    %1007 = vset.pattern.permute.xlu0 0
    %1008 = vperm.xlu0 %1007, %v343
    %v1009 = vpop.permute.xlu0 %1008
    %1012 = vset.pattern.permute.xlu0 0
    %1013 = vperm.xlu0 %1012, %v446
    %v1014 = vpop.permute.xlu0 %1013
    %1017 = vset.pattern.permute.xlu0 0
    %1018 = vperm.xlu0 %1017, %v549
    %v1019 = vpop.permute.xlu0 %1018
    %v1021 = vadd.f32 %v1004, %v997
    %v1022 = vadd.f32 %v1009, %v998
    %v1023 = vadd.f32 %v1014, %v999
    %v1024 = vadd.f32 %v1019, %v1000
    %1025 = vset.pattern.permute.xlu0 4
    %1026 = vperm.xlu0 %1025, %v966
    %v1027 = vpop.permute.xlu0 %1026
    %1029 = vset.pattern.permute.xlu0 4
    %1030 = vperm.xlu0 %1029, %v967
    %v1031 = vpop.permute.xlu0 %1030
    %1033 = vset.pattern.permute.xlu0 4
    %1034 = vperm.xlu0 %1033, %v968
    %v1035 = vpop.permute.xlu0 %1034
    %1037 = vset.pattern.permute.xlu0 4
    %1038 = vperm.xlu0 %1037, %v969
    %v1039 = vpop.permute.xlu0 %1038
    %v1041 = vmul.f32 %v1027, %v976
    %v1042 = vmul.f32 %v1031, %v976
    %v1043 = vmul.f32 %v1035, %v976
    %v1044 = vmul.f32 %v1039, %v976
    %1045 = vset.pattern.permute.xlu0 4
    %1046 = vperm.xlu0 %1045, %v240
    %v1047 = vpop.permute.xlu0 %1046
    %1049 = vset.pattern.permute.xlu0 4
    %1050 = vperm.xlu0 %1049, %v343
    %v1051 = vpop.permute.xlu0 %1050
    %1053 = vset.pattern.permute.xlu0 4
    %1054 = vperm.xlu0 %1053, %v446
    %v1055 = vpop.permute.xlu0 %1054
    %1057 = vset.pattern.permute.xlu0 4
    %1058 = vperm.xlu0 %1057, %v549
    %v1059 = vpop.permute.xlu0 %1058
    %v1061 = vadd.f32 %v1047, %v1041
    %v1062 = vadd.f32 %v1051, %v1042
    %v1063 = vadd.f32 %v1055, %v1043
    %v1064 = vadd.f32 %v1059, %v1044
    %v1065 = vsel %vm973, 1, 0
    %vm1066 = vcmp.eq.s32.totalorder %v1065, 1
    %v1067 = vsel %vm1066, %v1061, %v1021
    %v1068 = vsel %vm1066, %v1062, %v1022
    %v1069 = vsel %vm1066, %v1063, %v1023
    %v1070 = vsel %vm1066, %v1064, %v1024
    %v1071 = vshra.s32 %v972, 2
    %v1072 = vand.u32 %v1071, 1
    %v1073 = vcvt.s32.f32 %v1072
    %1074 = vset.pattern.permute.xlu0 1
    %1075 = vperm.xlu0 %1074, %v966
    %v1076 = vpop.permute.xlu0 %1075
    %1078 = vset.pattern.permute.xlu0 1
    %1079 = vperm.xlu0 %1078, %v967
    %v1080 = vpop.permute.xlu0 %1079
    %1082 = vset.pattern.permute.xlu0 1
    %1083 = vperm.xlu0 %1082, %v968
    %v1084 = vpop.permute.xlu0 %1083
    %1086 = vset.pattern.permute.xlu0 1
    %1087 = vperm.xlu0 %1086, %v969
    %v1088 = vpop.permute.xlu0 %1087
    %v1090 = vmul.f32 %v1076, %v1073
    %v1091 = vmul.f32 %v1080, %v1073
    %v1092 = vmul.f32 %v1084, %v1073
    %v1093 = vmul.f32 %v1088, %v1073
    %1094 = vset.pattern.permute.xlu0 1
    %1095 = vperm.xlu0 %1094, %v240
    %v1096 = vpop.permute.xlu0 %1095
    %1098 = vset.pattern.permute.xlu0 1
    %1099 = vperm.xlu0 %1098, %v343
    %v1100 = vpop.permute.xlu0 %1099
    %1102 = vset.pattern.permute.xlu0 1
    %1103 = vperm.xlu0 %1102, %v446
    %v1104 = vpop.permute.xlu0 %1103
    %1106 = vset.pattern.permute.xlu0 1
    %1107 = vperm.xlu0 %1106, %v549
    %v1108 = vpop.permute.xlu0 %1107
    %v1110 = vadd.f32 %v1096, %v1090
    %v1111 = vadd.f32 %v1100, %v1091
    %v1112 = vadd.f32 %v1104, %v1092
    %v1113 = vadd.f32 %v1108, %v1093
    %1114 = vset.pattern.permute.xlu0 5
    %1115 = vperm.xlu0 %1114, %v966
    %v1116 = vpop.permute.xlu0 %1115
    %1118 = vset.pattern.permute.xlu0 5
    %1119 = vperm.xlu0 %1118, %v967
    %v1120 = vpop.permute.xlu0 %1119
    %1122 = vset.pattern.permute.xlu0 5
    %1123 = vperm.xlu0 %1122, %v968
    %v1124 = vpop.permute.xlu0 %1123
    %1126 = vset.pattern.permute.xlu0 5
    %1127 = vperm.xlu0 %1126, %v969
    %v1128 = vpop.permute.xlu0 %1127
    %v1130 = vmul.f32 %v1116, %v1073
    %v1131 = vmul.f32 %v1120, %v1073
    %v1132 = vmul.f32 %v1124, %v1073
    %v1133 = vmul.f32 %v1128, %v1073
    %1134 = vset.pattern.permute.xlu0 5
    %1135 = vperm.xlu0 %1134, %v240
    %v1136 = vpop.permute.xlu0 %1135
    %1138 = vset.pattern.permute.xlu0 5
    %1139 = vperm.xlu0 %1138, %v343
    %v1140 = vpop.permute.xlu0 %1139
    %1142 = vset.pattern.permute.xlu0 5
    %1143 = vperm.xlu0 %1142, %v446
    %v1144 = vpop.permute.xlu0 %1143
    %1146 = vset.pattern.permute.xlu0 5
    %1147 = vperm.xlu0 %1146, %v549
    %v1148 = vpop.permute.xlu0 %1147
    %v1150 = vadd.f32 %v1136, %v1130
    %v1151 = vadd.f32 %v1140, %v1131
    %v1152 = vadd.f32 %v1144, %v1132
    %v1153 = vadd.f32 %v1148, %v1133
    %v1154 = vsel %vm1066, %v1150, %v1110
    %v1155 = vsel %vm1066, %v1151, %v1111
    %v1156 = vsel %vm1066, %v1152, %v1112
    %v1157 = vsel %vm1066, %v1153, %v1113
    %v1158 = vmul.f32 %v1067, %v1154
    %v1159 = vmul.f32 %v1068, %v1155
    %v1160 = vmul.f32 %v1069, %v1156
    %v1161 = vmul.f32 %v1070, %v1157
    %v1162 = vshra.s32 %v972, 1
    %v1163 = vand.u32 %v1162, 1
    %v1164 = vcvt.s32.f32 %v1163
    %1165 = vset.pattern.permute.xlu0 2
    %1166 = vperm.xlu0 %1165, %v966
    %v1167 = vpop.permute.xlu0 %1166
    %1169 = vset.pattern.permute.xlu0 2
    %1170 = vperm.xlu0 %1169, %v967
    %v1171 = vpop.permute.xlu0 %1170
    %1173 = vset.pattern.permute.xlu0 2
    %1174 = vperm.xlu0 %1173, %v968
    %v1175 = vpop.permute.xlu0 %1174
    %1177 = vset.pattern.permute.xlu0 2
    %1178 = vperm.xlu0 %1177, %v969
    %v1179 = vpop.permute.xlu0 %1178
    %v1181 = vmul.f32 %v1167, %v1164
    %v1182 = vmul.f32 %v1171, %v1164
    %v1183 = vmul.f32 %v1175, %v1164
    %v1184 = vmul.f32 %v1179, %v1164
    %1185 = vset.pattern.permute.xlu0 2
    %1186 = vperm.xlu0 %1185, %v240
    %v1187 = vpop.permute.xlu0 %1186
    %1189 = vset.pattern.permute.xlu0 2
    %1190 = vperm.xlu0 %1189, %v343
    %v1191 = vpop.permute.xlu0 %1190
    %1193 = vset.pattern.permute.xlu0 2
    %1194 = vperm.xlu0 %1193, %v446
    %v1195 = vpop.permute.xlu0 %1194
    %1197 = vset.pattern.permute.xlu0 2
    %1198 = vperm.xlu0 %1197, %v549
    %v1199 = vpop.permute.xlu0 %1198
    %v1201 = vadd.f32 %v1187, %v1181
    %v1202 = vadd.f32 %v1191, %v1182
    %v1203 = vadd.f32 %v1195, %v1183
    %v1204 = vadd.f32 %v1199, %v1184
    %1205 = vset.pattern.permute.xlu0 6
    %1206 = vperm.xlu0 %1205, %v966
    %v1207 = vpop.permute.xlu0 %1206
    %1209 = vset.pattern.permute.xlu0 6
    %1210 = vperm.xlu0 %1209, %v967
    %v1211 = vpop.permute.xlu0 %1210
    %1213 = vset.pattern.permute.xlu0 6
    %1214 = vperm.xlu0 %1213, %v968
    %v1215 = vpop.permute.xlu0 %1214
    %1217 = vset.pattern.permute.xlu0 6
    %1218 = vperm.xlu0 %1217, %v969
    %v1219 = vpop.permute.xlu0 %1218
    %v1221 = vmul.f32 %v1207, %v1164
    %v1222 = vmul.f32 %v1211, %v1164
    %v1223 = vmul.f32 %v1215, %v1164
    %v1224 = vmul.f32 %v1219, %v1164
    %1225 = vset.pattern.permute.xlu0 6
    %1226 = vperm.xlu0 %1225, %v240
    %v1227 = vpop.permute.xlu0 %1226
    %1229 = vset.pattern.permute.xlu0 6
    %1230 = vperm.xlu0 %1229, %v343
    %v1231 = vpop.permute.xlu0 %1230
    %1233 = vset.pattern.permute.xlu0 6
    %1234 = vperm.xlu0 %1233, %v446
    %v1235 = vpop.permute.xlu0 %1234
    %1237 = vset.pattern.permute.xlu0 6
    %1238 = vperm.xlu0 %1237, %v549
    %v1239 = vpop.permute.xlu0 %1238
    %v1241 = vadd.f32 %v1227, %v1221
    %v1242 = vadd.f32 %v1231, %v1222
    %v1243 = vadd.f32 %v1235, %v1223
    %v1244 = vadd.f32 %v1239, %v1224
    %v1245 = vsel %vm1066, %v1241, %v1201
    %v1246 = vsel %vm1066, %v1242, %v1202
    %v1247 = vsel %vm1066, %v1243, %v1203
    %v1248 = vsel %vm1066, %v1244, %v1204
    %v1249 = vmul.f32 %v1158, %v1245
    %v1250 = vmul.f32 %v1159, %v1246
    %v1251 = vmul.f32 %v1160, %v1247
    %v1252 = vmul.f32 %v1161, %v1248
    %v1253 = vand.u32 %v972, 1
    %v1254 = vcvt.s32.f32 %v1253
    %1255 = vset.pattern.permute.xlu0 3
    %1256 = vperm.xlu0 %1255, %v966
    %v1257 = vpop.permute.xlu0 %1256
    %1259 = vset.pattern.permute.xlu0 3
    %1260 = vperm.xlu0 %1259, %v967
    %v1261 = vpop.permute.xlu0 %1260
    %1263 = vset.pattern.permute.xlu0 3
    %1264 = vperm.xlu0 %1263, %v968
    %v1265 = vpop.permute.xlu0 %1264
    %1267 = vset.pattern.permute.xlu0 3
    %1268 = vperm.xlu0 %1267, %v969
    %v1269 = vpop.permute.xlu0 %1268
    %v1271 = vmul.f32 %v1257, %v1254
    %v1272 = vmul.f32 %v1261, %v1254
    %v1273 = vmul.f32 %v1265, %v1254
    %v1274 = vmul.f32 %v1269, %v1254
    %1275 = vset.pattern.permute.xlu0 3
    %1276 = vperm.xlu0 %1275, %v240
    %v1277 = vpop.permute.xlu0 %1276
    %1279 = vset.pattern.permute.xlu0 3
    %1280 = vperm.xlu0 %1279, %v343
    %v1281 = vpop.permute.xlu0 %1280
    %1283 = vset.pattern.permute.xlu0 3
    %1284 = vperm.xlu0 %1283, %v446
    %v1285 = vpop.permute.xlu0 %1284
    %1287 = vset.pattern.permute.xlu0 3
    %1288 = vperm.xlu0 %1287, %v549
    %v1289 = vpop.permute.xlu0 %1288
    %v1291 = vadd.f32 %v1277, %v1271
    %v1292 = vadd.f32 %v1281, %v1272
    %v1293 = vadd.f32 %v1285, %v1273
    %v1294 = vadd.f32 %v1289, %v1274
    %1295 = vset.pattern.permute.xlu0 7
    %1296 = vperm.xlu0 %1295, %v966
    %v1297 = vpop.permute.xlu0 %1296
    %1299 = vset.pattern.permute.xlu0 7
    %1300 = vperm.xlu0 %1299, %v967
    %v1301 = vpop.permute.xlu0 %1300
    %1303 = vset.pattern.permute.xlu0 7
    %1304 = vperm.xlu0 %1303, %v968
    %v1305 = vpop.permute.xlu0 %1304
    %1307 = vset.pattern.permute.xlu0 7
    %1308 = vperm.xlu0 %1307, %v969
    %v1309 = vpop.permute.xlu0 %1308
    %v1311 = vmul.f32 %v1297, %v1254
    %v1312 = vmul.f32 %v1301, %v1254
    %v1313 = vmul.f32 %v1305, %v1254
    %v1314 = vmul.f32 %v1309, %v1254
    %1315 = vset.pattern.permute.xlu0 7
    %1316 = vperm.xlu0 %1315, %v240
    %v1317 = vpop.permute.xlu0 %1316
    %1319 = vset.pattern.permute.xlu0 7
    %1320 = vperm.xlu0 %1319, %v343
    %v1321 = vpop.permute.xlu0 %1320
    %1323 = vset.pattern.permute.xlu0 7
    %1324 = vperm.xlu0 %1323, %v446
    %v1325 = vpop.permute.xlu0 %1324
    %1327 = vset.pattern.permute.xlu0 7
    %1328 = vperm.xlu0 %1327, %v549
    %v1329 = vpop.permute.xlu0 %1328
    %v1331 = vadd.f32 %v1317, %v1311
    %v1332 = vadd.f32 %v1321, %v1312
    %v1333 = vadd.f32 %v1325, %v1313
    %v1334 = vadd.f32 %v1329, %v1314
    %v1335 = vsel %vm1066, %v1331, %v1291
    %v1336 = vsel %vm1066, %v1332, %v1292
    %v1337 = vsel %vm1066, %v1333, %v1293
    %v1338 = vsel %vm1066, %v1334, %v1294
    %v1339 = vmul.f32 %v1249, %v1335
    %v1340 = vmul.f32 %v1250, %v1336
    %v1341 = vmul.f32 %v1251, %v1337
    %v1342 = vmul.f32 %v1252, %v1338
    %v1343 = vld [vmem:[%s3] sm:$0xff]
    %v1344 = vld [vmem:[%s3 + $0x8] sm:$0xff]
    %v1345 = vld [vmem:[%s3 + $0x10] sm:$0xff]
    %v1346 = vld [vmem:[%s3 + $0x18] sm:$0xff]
    %v1348 = vsel %vm36, %v1339, 0
    %v1351 = vsel %vm36, %v1340, 0
    %v1354 = vsel %vm36, %v1341, 0
    %v1357 = vsel %vm36, %v1342, 0
    %1359 = vmatprep.subr.mxu0 0.0
    %1360 = vmatpush1.msra.mxu0 0.0
    %1361 = vmatprep.subr.mxu0 0.0
    %1362 = vmatpush1.msra.mxu0 0.0
    %1363 = vmatprep.subr.mxu0 0.0
    %1364 = vmatpush1.msra.mxu0 0.0
    %1365 = vmatprep.subr.mxu0 0.0
    %1366 = vmatpush1.msra.mxu0 0.0
    %1367 = vmatprep.subr.mxu0 0.0
    %1368 = vmatpush1.msra.mxu0 0.0
    %1369 = vmatprep.subr.mxu0 0.0
    %1370 = vmatpush1.msra.mxu0 0.0
    %1371 = vmatprep.subr.mxu0 0.0
    %1372 = vmatpush1.msra.mxu0 0.0
    %1373 = vmatprep.subr.mxu0 0.0
    %1374 = vmatpush1.msra.mxu0 0.0
    %1375 = vmatprep.subr.mxu0 0.0
    %1376 = vmatpush1.msra.mxu0 0.0
    %1377 = vmatprep.subr.mxu0 0.0
    %1378 = vmatpush1.msra.mxu0 0.0
    %1379 = vmatprep.subr.mxu0 0.0
    %1380 = vmatpush1.msra.mxu0 0.0
    %1381 = vmatprep.subr.mxu0 0.0
    %1382 = vmatpush1.msra.mxu0 0.0
    %1383 = vmatprep.subr.mxu0 0.0
    %1384 = vmatpush1.msra.mxu0 %v1346
    %1385 = vmatprep.subr.mxu0 0.0
    %1386 = vmatpush1.msra.mxu0 %v1345
    %1387 = vmatprep.subr.mxu0 0.0
    %1388 = vmatpush1.msra.mxu0 %v1344
    %1389 = vmatprep.subr.mxu0 0.0
    %1390 = vmatpush1.msra.mxu0 %v1343
    %1391 = vmatprep.subr.mxu0 0.0
    %1392 = vmatpush2.msra.mxu0 0.0
    %1393 = vmatprep.subr.mxu0 0.0
    %1394 = vmatpush2.msra.mxu0 0.0
    %1395 = vmatprep.subr.mxu0 0.0
    %1396 = vmatpush2.msra.mxu0 0.0
    %1397 = vmatprep.subr.mxu0 0.0
    %1398 = vmatpush2.msra.mxu0 0.0
    %1399 = vmatprep.subr.mxu0 0.0
    %1400 = vmatpush2.msra.mxu0 0.0
    %1401 = vmatprep.subr.mxu0 0.0
    %1402 = vmatpush2.msra.mxu0 0.0
    %1403 = vmatprep.subr.mxu0 0.0
    %1404 = vmatpush2.msra.mxu0 0.0
    %1405 = vmatprep.subr.mxu0 0.0
    %1406 = vmatpush2.msra.mxu0 0.0
    %1407 = vmatprep.subr.mxu0 0.0
    %1408 = vmatpush2.msra.mxu0 0.0
    %1409 = vmatprep.subr.mxu0 0.0
    %1410 = vmatpush2.msra.mxu0 0.0
    %1411 = vmatprep.subr.mxu0 0.0
    %1412 = vmatpush2.msra.mxu0 0.0
    %1413 = vmatprep.subr.mxu0 0.0
    %1414 = vmatpush2.msra.mxu0 0.0
    %1415 = vmatprep.subr.mxu0 0.0
    %1416 = vmatpush2.msra.mxu0 0.0
    %1417 = vmatprep.subr.mxu0 0.0
    %1418 = vmatpush2.msra.mxu0 0.0
    %1419 = vmatprep.subr.mxu0 0.0
    %1420 = vmatpush2.msra.mxu0 0.0
    %1421 = vmatprep.subr.mxu0 0.0
    %1422 = vmatpush2.msra.mxu0 0.0
    %1423 = vmatprep.mubr.f32.mxu0 0.0
    %1424 = vmatmul.mubr.f32.gmra.mxu0 %v1348
    %v1425 = vpop.f32.mrf.mxu0
    %v1426 = vadd.f32 0.0, %v1425
    %v1427 = vpop.f32.mrf.mxu0
    %1428 = vmatprep.mubr.f32.mxu0 0.0
    %1429 = vmatmul.mubr.f32.gmra.mxu0 %v1351
    %v1430 = vpop.f32.mrf.mxu0
    %v1431 = vadd.f32 0.0, %v1430
    %v1432 = vpop.f32.mrf.mxu0
    %1433 = vmatprep.mubr.f32.mxu0 0.0
    %1434 = vmatmul.mubr.f32.gmra.mxu0 %v1354
    %v1435 = vpop.f32.mrf.mxu0
    %v1436 = vadd.f32 0.0, %v1435
    %v1437 = vpop.f32.mrf.mxu0
    %1438 = vmatprep.mubr.f32.mxu0 0.0
    %1439 = vmatmul.mubr.f32.gmra.mxu0 %v1357
    %v1440 = vpop.f32.mrf.mxu0
    %v1441 = vadd.f32 0.0, %v1440
    %v1442 = vpop.f32.mrf.mxu0
    %1443 = vdwg.mxu0
    %v1444 = vmul.f32 %v1426, %v1426
    %v1445 = vmul.f32 %v1431, %v1431
    %v1446 = vmul.f32 %v1436, %v1436
    %v1447 = vmul.f32 %v1441, %v1441
    %v1448 = vld [vmem:[%s4] sm:$0xff]
    %v1449 = vld [vmem:[%s4 + $0x8] sm:$0xff]
    %v1450 = vld [vmem:[%s4 + $0x10] sm:$0xff]
    %v1451 = vld [vmem:[%s4 + $0x18] sm:$0xff]
    %v1452 = vld [vmem:[%s4 + $0x20] sm:$0xff]
    %v1453 = vld [vmem:[%s4 + $0x28] sm:$0xff]
    %v1454 = vld [vmem:[%s4 + $0x30] sm:$0xff]
    %v1455 = vld [vmem:[%s4 + $0x38] sm:$0xff]
    %vm1456 = vcmask 523264
    %v1458 = vsel %vm1456, %v1444, 0
    %v1461 = vsel %vm1456, %v1445, 0
    %v1464 = vsel %vm1456, %v1446, 0
    %v1467 = vsel %vm1456, %v1447, 0
    %1469 = vmatprep.subr.mxu0 0.0
    %1470 = vmatpush1.msra.mxu0 0.0
    %1471 = vmatprep.subr.mxu0 0.0
    %1472 = vmatpush1.msra.mxu0 0.0
    %1473 = vmatprep.subr.mxu0 0.0
    %1474 = vmatpush1.msra.mxu0 0.0
    %1475 = vmatprep.subr.mxu0 0.0
    %1476 = vmatpush1.msra.mxu0 0.0
    %1477 = vmatprep.subr.mxu0 0.0
    %1478 = vmatpush1.msra.mxu0 0.0
    %1479 = vmatprep.subr.mxu0 0.0
    %1480 = vmatpush1.msra.mxu0 0.0
    %1481 = vmatprep.subr.mxu0 0.0
    %1482 = vmatpush1.msra.mxu0 0.0
    %1483 = vmatprep.subr.mxu0 0.0
    %1484 = vmatpush1.msra.mxu0 0.0
    %1485 = vmatprep.subr.mxu0 0.0
    %1486 = vmatpush1.msra.mxu0 %v1455
    %1487 = vmatprep.subr.mxu0 0.0
    %1488 = vmatpush1.msra.mxu0 %v1454
    %1489 = vmatprep.subr.mxu0 0.0
    %1490 = vmatpush1.msra.mxu0 %v1453
    %1491 = vmatprep.subr.mxu0 0.0
    %1492 = vmatpush1.msra.mxu0 %v1452
    %1493 = vmatprep.subr.mxu0 0.0
    %1494 = vmatpush1.msra.mxu0 %v1451
    %1495 = vmatprep.subr.mxu0 0.0
    %1496 = vmatpush1.msra.mxu0 %v1450
    %1497 = vmatprep.subr.mxu0 0.0
    %1498 = vmatpush1.msra.mxu0 %v1449
    %1499 = vmatprep.subr.mxu0 0.0
    %1500 = vmatpush1.msra.mxu0 %v1448
    %1501 = vmatprep.subr.mxu0 0.0
    %1502 = vmatpush2.msra.mxu0 0.0
    %1503 = vmatprep.subr.mxu0 0.0
    %1504 = vmatpush2.msra.mxu0 0.0
    %1505 = vmatprep.subr.mxu0 0.0
    %1506 = vmatpush2.msra.mxu0 0.0
    %1507 = vmatprep.subr.mxu0 0.0
    %1508 = vmatpush2.msra.mxu0 0.0
    %1509 = vmatprep.subr.mxu0 0.0
    %1510 = vmatpush2.msra.mxu0 0.0
    %1511 = vmatprep.subr.mxu0 0.0
    %1512 = vmatpush2.msra.mxu0 0.0
    %1513 = vmatprep.subr.mxu0 0.0
    %1514 = vmatpush2.msra.mxu0 0.0
    %1515 = vmatprep.subr.mxu0 0.0
    %1516 = vmatpush2.msra.mxu0 0.0
    %1517 = vmatprep.subr.mxu0 0.0
    %1518 = vmatpush2.msra.mxu0 0.0
    %1519 = vmatprep.subr.mxu0 0.0
    %1520 = vmatpush2.msra.mxu0 0.0
    %1521 = vmatprep.subr.mxu0 0.0
    %1522 = vmatpush2.msra.mxu0 0.0
    %1523 = vmatprep.subr.mxu0 0.0
    %1524 = vmatpush2.msra.mxu0 0.0
    %1525 = vmatprep.subr.mxu0 0.0
    %1526 = vmatpush2.msra.mxu0 0.0
    %1527 = vmatprep.subr.mxu0 0.0
    %1528 = vmatpush2.msra.mxu0 0.0
    %1529 = vmatprep.subr.mxu0 0.0
    %1530 = vmatpush2.msra.mxu0 0.0
    %1531 = vmatprep.subr.mxu0 0.0
    %1532 = vmatpush2.msra.mxu0 0.0
    %1533 = vmatprep.mubr.f32.mxu0 0.0
    %1534 = vmatmul.mubr.f32.gmra.mxu0 %v1458
    %v1535 = vpop.f32.mrf.mxu0
    %v1536 = vadd.f32 0.0, %v1535
    %v1537 = vpop.f32.mrf.mxu0
    %1538 = vmatprep.mubr.f32.mxu0 0.0
    %1539 = vmatmul.mubr.f32.gmra.mxu0 %v1461
    %v1540 = vpop.f32.mrf.mxu0
    %v1541 = vadd.f32 0.0, %v1540
    %v1542 = vpop.f32.mrf.mxu0
    %1543 = vmatprep.mubr.f32.mxu0 0.0
    %1544 = vmatmul.mubr.f32.gmra.mxu0 %v1464
    %v1545 = vpop.f32.mrf.mxu0
    %v1546 = vadd.f32 0.0, %v1545
    %v1547 = vpop.f32.mrf.mxu0
    %1548 = vmatprep.mubr.f32.mxu0 0.0
    %1549 = vmatmul.mubr.f32.gmra.mxu0 %v1467
    %v1550 = vpop.f32.mrf.mxu0
    %v1551 = vadd.f32 0.0, %v1550
    %v1552 = vpop.f32.mrf.mxu0
    %1553 = vdwg.mxu0
    %1555 = vrot.lane.b32.xlu0 %v1536, 124
    %v1556 = vpop.permute.xlu0 %1555
    %vm1557 = vcmask 31744
    %v1558 = vsel %vm1557, %v1536, 0
    %v1560 = vsel %vm1557, %v1556, 0
    %1562 = vmatprep.subr.mxu0 0.0
    %1563 = vmatpush1.xpose.msra.mxu0 0.0
    %1564 = vmatprep.subr.mxu0 0.0
    %1565 = vmatpush1.xpose.msra.mxu0 0.0
    %1566 = vmatprep.subr.mxu0 0.0
    %1567 = vmatpush1.xpose.msra.mxu0 0.0
    %1568 = vmatprep.subr.mxu0 0.0
    %1569 = vmatpush1.xpose.msra.mxu0 0.0
    %1570 = vmatprep.subr.mxu0 0.0
    %1571 = vmatpush1.xpose.msra.mxu0 0.0
    %1572 = vmatprep.subr.mxu0 0.0
    %1573 = vmatpush1.xpose.msra.mxu0 0.0
    %1574 = vmatprep.subr.mxu0 0.0
    %1575 = vmatpush1.xpose.msra.mxu0 0.0
    %1576 = vmatprep.subr.mxu0 0.0
    %1577 = vmatpush1.xpose.msra.mxu0 0.0
    %1578 = vmatprep.subr.mxu0 0.0
    %1579 = vmatpush1.xpose.msra.mxu0 0.0
    %1580 = vmatprep.subr.mxu0 0.0
    %1581 = vmatpush1.xpose.msra.mxu0 0.0
    %1582 = vmatprep.subr.mxu0 0.0
    %1583 = vmatpush1.xpose.msra.mxu0 0.0
    %1584 = vmatprep.subr.mxu0 0.0
    %1585 = vmatpush1.xpose.msra.mxu0 0.0
    %1586 = vmatprep.subr.mxu0 0.0
    %1587 = vmatpush1.xpose.msra.mxu0 0.0
    %1588 = vmatprep.subr.mxu0 0.0
    %1589 = vmatpush1.xpose.msra.mxu0 0.0
    %1590 = vmatprep.subr.mxu0 0.0
    %1591 = vmatpush1.xpose.msra.mxu0 0.0
    %1592 = vmatprep.subr.mxu0 0.0
    %1593 = vmatpush1.xpose.msra.mxu0 %v1560
    %1594 = vmatprep.subr.mxu0 0.0
    %1595 = vmatpush2.xpose.msra.mxu0 0.0
    %1596 = vmatprep.subr.mxu0 0.0
    %1597 = vmatpush2.xpose.msra.mxu0 0.0
    %1598 = vmatprep.subr.mxu0 0.0
    %1599 = vmatpush2.xpose.msra.mxu0 0.0
    %1600 = vmatprep.subr.mxu0 0.0
    %1601 = vmatpush2.xpose.msra.mxu0 0.0
    %1602 = vmatprep.subr.mxu0 0.0
    %1603 = vmatpush2.xpose.msra.mxu0 0.0
    %1604 = vmatprep.subr.mxu0 0.0
    %1605 = vmatpush2.xpose.msra.mxu0 0.0
    %1606 = vmatprep.subr.mxu0 0.0
    %1607 = vmatpush2.xpose.msra.mxu0 0.0
    %1608 = vmatprep.subr.mxu0 0.0
    %1609 = vmatpush2.xpose.msra.mxu0 0.0
    %1610 = vmatprep.subr.mxu0 0.0
    %1611 = vmatpush2.xpose.msra.mxu0 0.0
    %1612 = vmatprep.subr.mxu0 0.0
    %1613 = vmatpush2.xpose.msra.mxu0 0.0
    %1614 = vmatprep.subr.mxu0 0.0
    %1615 = vmatpush2.xpose.msra.mxu0 0.0
    %1616 = vmatprep.subr.mxu0 0.0
    %1617 = vmatpush2.xpose.msra.mxu0 0.0
    %1618 = vmatprep.subr.mxu0 0.0
    %1619 = vmatpush2.xpose.msra.mxu0 0.0
    %1620 = vmatprep.subr.mxu0 0.0
    %1621 = vmatpush2.xpose.msra.mxu0 0.0
    %1622 = vmatprep.subr.mxu0 0.0
    %1623 = vmatpush2.xpose.msra.mxu0 0.0
    %1624 = vmatprep.subr.mxu0 0.0
    %1625 = vmatpush2.xpose.msra.mxu0 0.0
    %1626 = vmatprep.mubr.f32.mxu0 0.0
    %1627 = vmatmul.mubr.f32.gmra.mxu0 %v1558
    %v1628 = vpop.f32.mrf.mxu0
    %v1629 = vadd.f32 0.0, %v1628
    %v1630 = vpop.f32.mrf.mxu0
    %1631 = vdwg.mxu0
    %1633 = vrot.lane.b32.xlu0 %v1541, 124
    %v1634 = vpop.permute.xlu0 %1633
    %v1635 = vsel %vm1557, %v1541, 0
    %v1637 = vsel %vm1557, %v1634, 0
    %1639 = vmatprep.subr.mxu0 0.0
    %1640 = vmatpush1.xpose.msra.mxu0 0.0
    %1641 = vmatprep.subr.mxu0 0.0
    %1642 = vmatpush1.xpose.msra.mxu0 0.0
    %1643 = vmatprep.subr.mxu0 0.0
    %1644 = vmatpush1.xpose.msra.mxu0 0.0
    %1645 = vmatprep.subr.mxu0 0.0
    %1646 = vmatpush1.xpose.msra.mxu0 0.0
    %1647 = vmatprep.subr.mxu0 0.0
    %1648 = vmatpush1.xpose.msra.mxu0 0.0
    %1649 = vmatprep.subr.mxu0 0.0
    %1650 = vmatpush1.xpose.msra.mxu0 0.0
    %1651 = vmatprep.subr.mxu0 0.0
    %1652 = vmatpush1.xpose.msra.mxu0 0.0
    %1653 = vmatprep.subr.mxu0 0.0
    %1654 = vmatpush1.xpose.msra.mxu0 0.0
    %1655 = vmatprep.subr.mxu0 0.0
    %1656 = vmatpush1.xpose.msra.mxu0 0.0
    %1657 = vmatprep.subr.mxu0 0.0
    %1658 = vmatpush1.xpose.msra.mxu0 0.0
    %1659 = vmatprep.subr.mxu0 0.0
    %1660 = vmatpush1.xpose.msra.mxu0 0.0
    %1661 = vmatprep.subr.mxu0 0.0
    %1662 = vmatpush1.xpose.msra.mxu0 0.0
    %1663 = vmatprep.subr.mxu0 0.0
    %1664 = vmatpush1.xpose.msra.mxu0 0.0
    %1665 = vmatprep.subr.mxu0 0.0
    %1666 = vmatpush1.xpose.msra.mxu0 0.0
    %1667 = vmatprep.subr.mxu0 0.0
    %1668 = vmatpush1.xpose.msra.mxu0 0.0
    %1669 = vmatprep.subr.mxu0 0.0
    %1670 = vmatpush1.xpose.msra.mxu0 %v1637
    %1671 = vmatprep.subr.mxu0 0.0
    %1672 = vmatpush2.xpose.msra.mxu0 0.0
    %1673 = vmatprep.subr.mxu0 0.0
    %1674 = vmatpush2.xpose.msra.mxu0 0.0
    %1675 = vmatprep.subr.mxu0 0.0
    %1676 = vmatpush2.xpose.msra.mxu0 0.0
    %1677 = vmatprep.subr.mxu0 0.0
    %1678 = vmatpush2.xpose.msra.mxu0 0.0
    %1679 = vmatprep.subr.mxu0 0.0
    %1680 = vmatpush2.xpose.msra.mxu0 0.0
    %1681 = vmatprep.subr.mxu0 0.0
    %1682 = vmatpush2.xpose.msra.mxu0 0.0
    %1683 = vmatprep.subr.mxu0 0.0
    %1684 = vmatpush2.xpose.msra.mxu0 0.0
    %1685 = vmatprep.subr.mxu0 0.0
    %1686 = vmatpush2.xpose.msra.mxu0 0.0
    %1687 = vmatprep.subr.mxu0 0.0
    %1688 = vmatpush2.xpose.msra.mxu0 0.0
    %1689 = vmatprep.subr.mxu0 0.0
    %1690 = vmatpush2.xpose.msra.mxu0 0.0
    %1691 = vmatprep.subr.mxu0 0.0
    %1692 = vmatpush2.xpose.msra.mxu0 0.0
    %1693 = vmatprep.subr.mxu0 0.0
    %1694 = vmatpush2.xpose.msra.mxu0 0.0
    %1695 = vmatprep.subr.mxu0 0.0
    %1696 = vmatpush2.xpose.msra.mxu0 0.0
    %1697 = vmatprep.subr.mxu0 0.0
    %1698 = vmatpush2.xpose.msra.mxu0 0.0
    %1699 = vmatprep.subr.mxu0 0.0
    %1700 = vmatpush2.xpose.msra.mxu0 0.0
    %1701 = vmatprep.subr.mxu0 0.0
    %1702 = vmatpush2.xpose.msra.mxu0 0.0
    %1703 = vmatprep.mubr.f32.mxu0 0.0
    %1704 = vmatmul.mubr.f32.gmra.mxu0 %v1635
    %v1705 = vpop.f32.mrf.mxu0
    %v1706 = vadd.f32 0.0, %v1705
    %v1707 = vpop.f32.mrf.mxu0
    %1708 = vdwg.mxu0
    %1710 = vrot.lane.b32.xlu0 %v1546, 124
    %v1711 = vpop.permute.xlu0 %1710
    %v1712 = vsel %vm1557, %v1546, 0
    %v1714 = vsel %vm1557, %v1711, 0
    %1716 = vmatprep.subr.mxu0 0.0
    %1717 = vmatpush1.xpose.msra.mxu0 0.0
    %1718 = vmatprep.subr.mxu0 0.0
    %1719 = vmatpush1.xpose.msra.mxu0 0.0
    %1720 = vmatprep.subr.mxu0 0.0
    %1721 = vmatpush1.xpose.msra.mxu0 0.0
    %1722 = vmatprep.subr.mxu0 0.0
    %1723 = vmatpush1.xpose.msra.mxu0 0.0
    %1724 = vmatprep.subr.mxu0 0.0
    %1725 = vmatpush1.xpose.msra.mxu0 0.0
    %1726 = vmatprep.subr.mxu0 0.0
    %1727 = vmatpush1.xpose.msra.mxu0 0.0
    %1728 = vmatprep.subr.mxu0 0.0
    %1729 = vmatpush1.xpose.msra.mxu0 0.0
    %1730 = vmatprep.subr.mxu0 0.0
    %1731 = vmatpush1.xpose.msra.mxu0 0.0
    %1732 = vmatprep.subr.mxu0 0.0
    %1733 = vmatpush1.xpose.msra.mxu0 0.0
    %1734 = vmatprep.subr.mxu0 0.0
    %1735 = vmatpush1.xpose.msra.mxu0 0.0
    %1736 = vmatprep.subr.mxu0 0.0
    %1737 = vmatpush1.xpose.msra.mxu0 0.0
    %1738 = vmatprep.subr.mxu0 0.0
    %1739 = vmatpush1.xpose.msra.mxu0 0.0
    %1740 = vmatprep.subr.mxu0 0.0
    %1741 = vmatpush1.xpose.msra.mxu0 0.0
    %1742 = vmatprep.subr.mxu0 0.0
    %1743 = vmatpush1.xpose.msra.mxu0 0.0
    %1744 = vmatprep.subr.mxu0 0.0
    %1745 = vmatpush1.xpose.msra.mxu0 0.0
    %1746 = vmatprep.subr.mxu0 0.0
    %1747 = vmatpush1.xpose.msra.mxu0 %v1714
    %1748 = vmatprep.subr.mxu0 0.0
    %1749 = vmatpush2.xpose.msra.mxu0 0.0
    %1750 = vmatprep.subr.mxu0 0.0
    %1751 = vmatpush2.xpose.msra.mxu0 0.0
    %1752 = vmatprep.subr.mxu0 0.0
    %1753 = vmatpush2.xpose.msra.mxu0 0.0
    %1754 = vmatprep.subr.mxu0 0.0
    %1755 = vmatpush2.xpose.msra.mxu0 0.0
    %1756 = vmatprep.subr.mxu0 0.0
    %1757 = vmatpush2.xpose.msra.mxu0 0.0
    %1758 = vmatprep.subr.mxu0 0.0
    %1759 = vmatpush2.xpose.msra.mxu0 0.0
    %1760 = vmatprep.subr.mxu0 0.0
    %1761 = vmatpush2.xpose.msra.mxu0 0.0
    %1762 = vmatprep.subr.mxu0 0.0
    %1763 = vmatpush2.xpose.msra.mxu0 0.0
    %1764 = vmatprep.subr.mxu0 0.0
    %1765 = vmatpush2.xpose.msra.mxu0 0.0
    %1766 = vmatprep.subr.mxu0 0.0
    %1767 = vmatpush2.xpose.msra.mxu0 0.0
    %1768 = vmatprep.subr.mxu0 0.0
    %1769 = vmatpush2.xpose.msra.mxu0 0.0
    %1770 = vmatprep.subr.mxu0 0.0
    %1771 = vmatpush2.xpose.msra.mxu0 0.0
    %1772 = vmatprep.subr.mxu0 0.0
    %1773 = vmatpush2.xpose.msra.mxu0 0.0
    %1774 = vmatprep.subr.mxu0 0.0
    %1775 = vmatpush2.xpose.msra.mxu0 0.0
    %1776 = vmatprep.subr.mxu0 0.0
    %1777 = vmatpush2.xpose.msra.mxu0 0.0
    %1778 = vmatprep.subr.mxu0 0.0
    %1779 = vmatpush2.xpose.msra.mxu0 0.0
    %1780 = vmatprep.mubr.f32.mxu0 0.0
    %1781 = vmatmul.mubr.f32.gmra.mxu0 %v1712
    %v1782 = vpop.f32.mrf.mxu0
    %v1783 = vadd.f32 0.0, %v1782
    %v1784 = vpop.f32.mrf.mxu0
    %1785 = vdwg.mxu0
    %1787 = vrot.lane.b32.xlu0 %v1551, 124
    %v1788 = vpop.permute.xlu0 %1787
    %v1789 = vsel %vm1557, %v1551, 0
    %v1791 = vsel %vm1557, %v1788, 0
    %1793 = vmatprep.subr.mxu0 0.0
    %1794 = vmatpush1.xpose.msra.mxu0 0.0
    %1795 = vmatprep.subr.mxu0 0.0
    %1796 = vmatpush1.xpose.msra.mxu0 0.0
    %1797 = vmatprep.subr.mxu0 0.0
    %1798 = vmatpush1.xpose.msra.mxu0 0.0
    %1799 = vmatprep.subr.mxu0 0.0
    %1800 = vmatpush1.xpose.msra.mxu0 0.0
    %1801 = vmatprep.subr.mxu0 0.0
    %1802 = vmatpush1.xpose.msra.mxu0 0.0
    %1803 = vmatprep.subr.mxu0 0.0
    %1804 = vmatpush1.xpose.msra.mxu0 0.0
    %1805 = vmatprep.subr.mxu0 0.0
    %1806 = vmatpush1.xpose.msra.mxu0 0.0
    %1807 = vmatprep.subr.mxu0 0.0
    %1808 = vmatpush1.xpose.msra.mxu0 0.0
    %1809 = vmatprep.subr.mxu0 0.0
    %1810 = vmatpush1.xpose.msra.mxu0 0.0
    %1811 = vmatprep.subr.mxu0 0.0
    %1812 = vmatpush1.xpose.msra.mxu0 0.0
    %1813 = vmatprep.subr.mxu0 0.0
    %1814 = vmatpush1.xpose.msra.mxu0 0.0
    %1815 = vmatprep.subr.mxu0 0.0
    %1816 = vmatpush1.xpose.msra.mxu0 0.0
    %1817 = vmatprep.subr.mxu0 0.0
    %1818 = vmatpush1.xpose.msra.mxu0 0.0
    %1819 = vmatprep.subr.mxu0 0.0
    %1820 = vmatpush1.xpose.msra.mxu0 0.0
    %1821 = vmatprep.subr.mxu0 0.0
    %1822 = vmatpush1.xpose.msra.mxu0 0.0
    %1823 = vmatprep.subr.mxu0 0.0
    %1824 = vmatpush1.xpose.msra.mxu0 %v1791
    %1825 = vmatprep.subr.mxu0 0.0
    %1826 = vmatpush2.xpose.msra.mxu0 0.0
    %1827 = vmatprep.subr.mxu0 0.0
    %1828 = vmatpush2.xpose.msra.mxu0 0.0
    %1829 = vmatprep.subr.mxu0 0.0
    %1830 = vmatpush2.xpose.msra.mxu0 0.0
    %1831 = vmatprep.subr.mxu0 0.0
    %1832 = vmatpush2.xpose.msra.mxu0 0.0
    %1833 = vmatprep.subr.mxu0 0.0
    %1834 = vmatpush2.xpose.msra.mxu0 0.0
    %1835 = vmatprep.subr.mxu0 0.0
    %1836 = vmatpush2.xpose.msra.mxu0 0.0
    %1837 = vmatprep.subr.mxu0 0.0
    %1838 = vmatpush2.xpose.msra.mxu0 0.0
    %1839 = vmatprep.subr.mxu0 0.0
    %1840 = vmatpush2.xpose.msra.mxu0 0.0
    %1841 = vmatprep.subr.mxu0 0.0
    %1842 = vmatpush2.xpose.msra.mxu0 0.0
    %1843 = vmatprep.subr.mxu0 0.0
    %1844 = vmatpush2.xpose.msra.mxu0 0.0
    %1845 = vmatprep.subr.mxu0 0.0
    %1846 = vmatpush2.xpose.msra.mxu0 0.0
    %1847 = vmatprep.subr.mxu0 0.0
    %1848 = vmatpush2.xpose.msra.mxu0 0.0
    %1849 = vmatprep.subr.mxu0 0.0
    %1850 = vmatpush2.xpose.msra.mxu0 0.0
    %1851 = vmatprep.subr.mxu0 0.0
    %1852 = vmatpush2.xpose.msra.mxu0 0.0
    %1853 = vmatprep.subr.mxu0 0.0
    %1854 = vmatpush2.xpose.msra.mxu0 0.0
    %1855 = vmatprep.subr.mxu0 0.0
    %1856 = vmatpush2.xpose.msra.mxu0 0.0
    %1857 = vmatprep.mubr.f32.mxu0 0.0
    %1858 = vmatmul.mubr.f32.gmra.mxu0 %v1789
    %v1859 = vpop.f32.mrf.mxu0
    %v1860 = vadd.f32 0.0, %v1859
    %v1861 = vpop.f32.mrf.mxu0
    %1862 = vdwg.mxu0
    %vm1863 = vcmask 64512
    %v1864 = vsel %vm1863, %v1629, -inf
    %1865 = vmax.xlane.f32.xlu0 %v1864
    %v1866 = vpop.xlane.xlu0 %1865
    %v1867 = vsel %vm1863, %v1706, -inf
    %1868 = vmax.xlane.f32.xlu0 %v1867
    %v1869 = vpop.xlane.xlu0 %1868
    %v1870 = vsel %vm1863, %v1783, -inf
    %1871 = vmax.xlane.f32.xlu0 %v1870
    %v1872 = vpop.xlane.xlu0 %1871
    %v1873 = vsel %vm1863, %v1860, -inf
    %1874 = vmax.xlane.f32.xlu0 %v1873
    %v1875 = vpop.xlane.xlu0 %1874
    %v1876 = vsub.f32 %v1629, %v1866
    %v1877 = vsub.f32 %v1706, %v1869
    %v1878 = vsub.f32 %v1783, %v1872
    %v1879 = vsub.f32 %v1860, %v1875
    %v1880 = vmul.f32 %v1876, 1.442695
    %v1881 = vpow.pop %v1880
    %v1882 = vmul.f32 %v1877, 1.442695
    %v1883 = vpow.pop %v1882
    %v1884 = vmul.f32 %v1878, 1.442695
    %v1885 = vpow.pop %v1884
    %v1886 = vmul.f32 %v1879, 1.442695
    %v1887 = vpow.pop %v1886
    %v1888 = vsel %vm1863, %v1881, 0.0
    %1889 = vadd.xlane.f32.xlu0 %v1888
    %v1890 = vpop.xlane.xlu0 %1889
    %v1891 = vsel %vm1863, %v1883, 0.0
    %1892 = vadd.xlane.f32.xlu0 %v1891
    %v1893 = vpop.xlane.xlu0 %1892
    %v1894 = vsel %vm1863, %v1885, 0.0
    %1895 = vadd.xlane.f32.xlu0 %v1894
    %v1896 = vpop.xlane.xlu0 %1895
    %v1897 = vsel %vm1863, %v1887, 0.0
    %1898 = vadd.xlane.f32.xlu0 %v1897
    %v1899 = vpop.xlane.xlu0 %1898
    %v1900 = vrcp.pop %v1890
    %v1901 = vmul.f32 1.0, %v1900
    %v1902 = vrcp.pop %v1893
    %v1903 = vmul.f32 1.0, %v1902
    %v1904 = vrcp.pop %v1896
    %v1905 = vmul.f32 1.0, %v1904
    %v1906 = vrcp.pop %v1899
    %v1907 = vmul.f32 1.0, %v1906
    %v1908 = vmul.f32 %v1881, %v1901
    %v1909 = vmul.f32 %v1883, %v1903
    %v1910 = vmul.f32 %v1885, %v1905
    %v1911 = vmul.f32 %v1887, %v1907
    %v1913 = vsel %vm1863, %v1908, 0
    %1915 = vmatprep.subr.mxu0 0.0
    %1916 = vmatpush1.msra.mxu0 0.0
    %1917 = vmatprep.subr.mxu0 0.0
    %1918 = vmatpush1.msra.mxu0 0.0
    %1919 = vmatprep.subr.mxu0 0.0
    %1920 = vmatpush1.msra.mxu0 0.0
    %1921 = vmatprep.subr.mxu0 0.0
    %1922 = vmatpush1.msra.mxu0 0.0
    %1923 = vmatprep.subr.mxu0 0.0
    %1924 = vmatpush1.msra.mxu0 0.0
    %1925 = vmatprep.subr.mxu0 0.0
    %1926 = vmatpush1.msra.mxu0 0.0
    %1927 = vmatprep.subr.mxu0 0.0
    %1928 = vmatpush1.msra.mxu0 0.0
    %1929 = vmatprep.subr.mxu0 0.0
    %1930 = vmatpush1.msra.mxu0 0.0
    %1931 = vmatprep.subr.mxu0 0.0
    %1932 = vmatpush1.msra.mxu0 0.0
    %1933 = vmatprep.subr.mxu0 0.0
    %1934 = vmatpush1.msra.mxu0 0.0
    %1935 = vmatprep.subr.mxu0 0.0
    %1936 = vmatpush1.msra.mxu0 0.0
    %1937 = vmatprep.subr.mxu0 0.0
    %1938 = vmatpush1.msra.mxu0 0.0
    %1939 = vmatprep.subr.mxu0 0.0
    %1940 = vmatpush1.msra.mxu0 0.0
    %1941 = vmatprep.subr.mxu0 0.0
    %1942 = vmatpush1.msra.mxu0 0.0
    %1943 = vmatprep.subr.mxu0 0.0
    %1944 = vmatpush1.msra.mxu0 0.0
    %1945 = vmatprep.subr.mxu0 0.0
    %1946 = vmatpush1.msra.mxu0 %v21
    %1947 = vmatprep.subr.mxu0 0.0
    %1948 = vmatpush2.msra.mxu0 0.0
    %1949 = vmatprep.subr.mxu0 0.0
    %1950 = vmatpush2.msra.mxu0 0.0
    %1951 = vmatprep.subr.mxu0 0.0
    %1952 = vmatpush2.msra.mxu0 0.0
    %1953 = vmatprep.subr.mxu0 0.0
    %1954 = vmatpush2.msra.mxu0 0.0
    %1955 = vmatprep.subr.mxu0 0.0
    %1956 = vmatpush2.msra.mxu0 0.0
    %1957 = vmatprep.subr.mxu0 0.0
    %1958 = vmatpush2.msra.mxu0 0.0
    %1959 = vmatprep.subr.mxu0 0.0
    %1960 = vmatpush2.msra.mxu0 0.0
    %1961 = vmatprep.subr.mxu0 0.0
    %1962 = vmatpush2.msra.mxu0 0.0
    %1963 = vmatprep.subr.mxu0 0.0
    %1964 = vmatpush2.msra.mxu0 0.0
    %1965 = vmatprep.subr.mxu0 0.0
    %1966 = vmatpush2.msra.mxu0 0.0
    %1967 = vmatprep.subr.mxu0 0.0
    %1968 = vmatpush2.msra.mxu0 0.0
    %1969 = vmatprep.subr.mxu0 0.0
    %1970 = vmatpush2.msra.mxu0 0.0
    %1971 = vmatprep.subr.mxu0 0.0
    %1972 = vmatpush2.msra.mxu0 0.0
    %1973 = vmatprep.subr.mxu0 0.0
    %1974 = vmatpush2.msra.mxu0 0.0
    %1975 = vmatprep.subr.mxu0 0.0
    %1976 = vmatpush2.msra.mxu0 0.0
    %1977 = vmatprep.subr.mxu0 0.0
    %1978 = vmatpush2.msra.mxu0 0.0
    %1979 = vmatprep.mubr.f32.mxu0 0.0
    %1980 = vmatmul.mubr.f32.gmra.mxu0 %v1913
    %v1981 = vpop.f32.mrf.mxu0
    %v1982 = vadd.f32 0.0, %v1981
    %v1983 = vpop.f32.mrf.mxu0
    %1984 = vdwg.mxu0
    %v1986 = vsel %vm1863, %v1909, 0
    %1988 = vmatprep.subr.mxu0 0.0
    %1989 = vmatpush1.msra.mxu0 0.0
    %1990 = vmatprep.subr.mxu0 0.0
    %1991 = vmatpush1.msra.mxu0 0.0
    %1992 = vmatprep.subr.mxu0 0.0
    %1993 = vmatpush1.msra.mxu0 0.0
    %1994 = vmatprep.subr.mxu0 0.0
    %1995 = vmatpush1.msra.mxu0 0.0
    %1996 = vmatprep.subr.mxu0 0.0
    %1997 = vmatpush1.msra.mxu0 0.0
    %1998 = vmatprep.subr.mxu0 0.0
    %1999 = vmatpush1.msra.mxu0 0.0
    %2000 = vmatprep.subr.mxu0 0.0
    %2001 = vmatpush1.msra.mxu0 0.0
    %2002 = vmatprep.subr.mxu0 0.0
    %2003 = vmatpush1.msra.mxu0 0.0
    %2004 = vmatprep.subr.mxu0 0.0
    %2005 = vmatpush1.msra.mxu0 0.0
    %2006 = vmatprep.subr.mxu0 0.0
    %2007 = vmatpush1.msra.mxu0 0.0
    %2008 = vmatprep.subr.mxu0 0.0
    %2009 = vmatpush1.msra.mxu0 0.0
    %2010 = vmatprep.subr.mxu0 0.0
    %2011 = vmatpush1.msra.mxu0 0.0
    %2012 = vmatprep.subr.mxu0 0.0
    %2013 = vmatpush1.msra.mxu0 0.0
    %2014 = vmatprep.subr.mxu0 0.0
    %2015 = vmatpush1.msra.mxu0 0.0
    %2016 = vmatprep.subr.mxu0 0.0
    %2017 = vmatpush1.msra.mxu0 0.0
    %2018 = vmatprep.subr.mxu0 0.0
    %2019 = vmatpush1.msra.mxu0 %v22
    %2020 = vmatprep.subr.mxu0 0.0
    %2021 = vmatpush2.msra.mxu0 0.0
    %2022 = vmatprep.subr.mxu0 0.0
    %2023 = vmatpush2.msra.mxu0 0.0
    %2024 = vmatprep.subr.mxu0 0.0
    %2025 = vmatpush2.msra.mxu0 0.0
    %2026 = vmatprep.subr.mxu0 0.0
    %2027 = vmatpush2.msra.mxu0 0.0
    %2028 = vmatprep.subr.mxu0 0.0
    %2029 = vmatpush2.msra.mxu0 0.0
    %2030 = vmatprep.subr.mxu0 0.0
    %2031 = vmatpush2.msra.mxu0 0.0
    %2032 = vmatprep.subr.mxu0 0.0
    %2033 = vmatpush2.msra.mxu0 0.0
    %2034 = vmatprep.subr.mxu0 0.0
    %2035 = vmatpush2.msra.mxu0 0.0
    %2036 = vmatprep.subr.mxu0 0.0
    %2037 = vmatpush2.msra.mxu0 0.0
    %2038 = vmatprep.subr.mxu0 0.0
    %2039 = vmatpush2.msra.mxu0 0.0
    %2040 = vmatprep.subr.mxu0 0.0
    %2041 = vmatpush2.msra.mxu0 0.0
    %2042 = vmatprep.subr.mxu0 0.0
    %2043 = vmatpush2.msra.mxu0 0.0
    %2044 = vmatprep.subr.mxu0 0.0
    %2045 = vmatpush2.msra.mxu0 0.0
    %2046 = vmatprep.subr.mxu0 0.0
    %2047 = vmatpush2.msra.mxu0 0.0
    %2048 = vmatprep.subr.mxu0 0.0
    %2049 = vmatpush2.msra.mxu0 0.0
    %2050 = vmatprep.subr.mxu0 0.0
    %2051 = vmatpush2.msra.mxu0 0.0
    %2052 = vmatprep.mubr.f32.mxu0 0.0
    %2053 = vmatmul.mubr.f32.gmra.mxu0 %v1986
    %v2054 = vpop.f32.mrf.mxu0
    %v2055 = vadd.f32 0.0, %v2054
    %v2056 = vpop.f32.mrf.mxu0
    %2057 = vdwg.mxu0
    %v2059 = vsel %vm1863, %v1910, 0
    %2061 = vmatprep.subr.mxu0 0.0
    %2062 = vmatpush1.msra.mxu0 0.0
    %2063 = vmatprep.subr.mxu0 0.0
    %2064 = vmatpush1.msra.mxu0 0.0
    %2065 = vmatprep.subr.mxu0 0.0
    %2066 = vmatpush1.msra.mxu0 0.0
    %2067 = vmatprep.subr.mxu0 0.0
    %2068 = vmatpush1.msra.mxu0 0.0
    %2069 = vmatprep.subr.mxu0 0.0
    %2070 = vmatpush1.msra.mxu0 0.0
    %2071 = vmatprep.subr.mxu0 0.0
    %2072 = vmatpush1.msra.mxu0 0.0
    %2073 = vmatprep.subr.mxu0 0.0
    %2074 = vmatpush1.msra.mxu0 0.0
    %2075 = vmatprep.subr.mxu0 0.0
    %2076 = vmatpush1.msra.mxu0 0.0
    %2077 = vmatprep.subr.mxu0 0.0
    %2078 = vmatpush1.msra.mxu0 0.0
    %2079 = vmatprep.subr.mxu0 0.0
    %2080 = vmatpush1.msra.mxu0 0.0
    %2081 = vmatprep.subr.mxu0 0.0
    %2082 = vmatpush1.msra.mxu0 0.0
    %2083 = vmatprep.subr.mxu0 0.0
    %2084 = vmatpush1.msra.mxu0 0.0
    %2085 = vmatprep.subr.mxu0 0.0
    %2086 = vmatpush1.msra.mxu0 0.0
    %2087 = vmatprep.subr.mxu0 0.0
    %2088 = vmatpush1.msra.mxu0 0.0
    %2089 = vmatprep.subr.mxu0 0.0
    %2090 = vmatpush1.msra.mxu0 0.0
    %2091 = vmatprep.subr.mxu0 0.0
    %2092 = vmatpush1.msra.mxu0 %v23
    %2093 = vmatprep.subr.mxu0 0.0
    %2094 = vmatpush2.msra.mxu0 0.0
    %2095 = vmatprep.subr.mxu0 0.0
    %2096 = vmatpush2.msra.mxu0 0.0
    %2097 = vmatprep.subr.mxu0 0.0
    %2098 = vmatpush2.msra.mxu0 0.0
    %2099 = vmatprep.subr.mxu0 0.0
    %2100 = vmatpush2.msra.mxu0 0.0
    %2101 = vmatprep.subr.mxu0 0.0
    %2102 = vmatpush2.msra.mxu0 0.0
    %2103 = vmatprep.subr.mxu0 0.0
    %2104 = vmatpush2.msra.mxu0 0.0
    %2105 = vmatprep.subr.mxu0 0.0
    %2106 = vmatpush2.msra.mxu0 0.0
    %2107 = vmatprep.subr.mxu0 0.0
    %2108 = vmatpush2.msra.mxu0 0.0
    %2109 = vmatprep.subr.mxu0 0.0
    %2110 = vmatpush2.msra.mxu0 0.0
    %2111 = vmatprep.subr.mxu0 0.0
    %2112 = vmatpush2.msra.mxu0 0.0
    %2113 = vmatprep.subr.mxu0 0.0
    %2114 = vmatpush2.msra.mxu0 0.0
    %2115 = vmatprep.subr.mxu0 0.0
    %2116 = vmatpush2.msra.mxu0 0.0
    %2117 = vmatprep.subr.mxu0 0.0
    %2118 = vmatpush2.msra.mxu0 0.0
    %2119 = vmatprep.subr.mxu0 0.0
    %2120 = vmatpush2.msra.mxu0 0.0
    %2121 = vmatprep.subr.mxu0 0.0
    %2122 = vmatpush2.msra.mxu0 0.0
    %2123 = vmatprep.subr.mxu0 0.0
    %2124 = vmatpush2.msra.mxu0 0.0
    %2125 = vmatprep.mubr.f32.mxu0 0.0
    %2126 = vmatmul.mubr.f32.gmra.mxu0 %v2059
    %v2127 = vpop.f32.mrf.mxu0
    %v2128 = vadd.f32 0.0, %v2127
    %v2129 = vpop.f32.mrf.mxu0
    %2130 = vdwg.mxu0
    %v2132 = vsel %vm1863, %v1911, 0
    %2134 = vmatprep.subr.mxu0 0.0
    %2135 = vmatpush1.msra.mxu0 0.0
    %2136 = vmatprep.subr.mxu0 0.0
    %2137 = vmatpush1.msra.mxu0 0.0
    %2138 = vmatprep.subr.mxu0 0.0
    %2139 = vmatpush1.msra.mxu0 0.0
    %2140 = vmatprep.subr.mxu0 0.0
    %2141 = vmatpush1.msra.mxu0 0.0
    %2142 = vmatprep.subr.mxu0 0.0
    %2143 = vmatpush1.msra.mxu0 0.0
    %2144 = vmatprep.subr.mxu0 0.0
    %2145 = vmatpush1.msra.mxu0 0.0
    %2146 = vmatprep.subr.mxu0 0.0
    %2147 = vmatpush1.msra.mxu0 0.0
    %2148 = vmatprep.subr.mxu0 0.0
    %2149 = vmatpush1.msra.mxu0 0.0
    %2150 = vmatprep.subr.mxu0 0.0
    %2151 = vmatpush1.msra.mxu0 0.0
    %2152 = vmatprep.subr.mxu0 0.0
    %2153 = vmatpush1.msra.mxu0 0.0
    %2154 = vmatprep.subr.mxu0 0.0
    %2155 = vmatpush1.msra.mxu0 0.0
    %2156 = vmatprep.subr.mxu0 0.0
    %2157 = vmatpush1.msra.mxu0 0.0
    %2158 = vmatprep.subr.mxu0 0.0
    %2159 = vmatpush1.msra.mxu0 0.0
    %2160 = vmatprep.subr.mxu0 0.0
    %2161 = vmatpush1.msra.mxu0 0.0
    %2162 = vmatprep.subr.mxu0 0.0
    %2163 = vmatpush1.msra.mxu0 0.0
    %2164 = vmatprep.subr.mxu0 0.0
    %2165 = vmatpush1.msra.mxu0 %v24
    %2166 = vmatprep.subr.mxu0 0.0
    %2167 = vmatpush2.msra.mxu0 0.0
    %2168 = vmatprep.subr.mxu0 0.0
    %2169 = vmatpush2.msra.mxu0 0.0
    %2170 = vmatprep.subr.mxu0 0.0
    %2171 = vmatpush2.msra.mxu0 0.0
    %2172 = vmatprep.subr.mxu0 0.0
    %2173 = vmatpush2.msra.mxu0 0.0
    %2174 = vmatprep.subr.mxu0 0.0
    %2175 = vmatpush2.msra.mxu0 0.0
    %2176 = vmatprep.subr.mxu0 0.0
    %2177 = vmatpush2.msra.mxu0 0.0
    %2178 = vmatprep.subr.mxu0 0.0
    %2179 = vmatpush2.msra.mxu0 0.0
    %2180 = vmatprep.subr.mxu0 0.0
    %2181 = vmatpush2.msra.mxu0 0.0
    %2182 = vmatprep.subr.mxu0 0.0
    %2183 = vmatpush2.msra.mxu0 0.0
    %2184 = vmatprep.subr.mxu0 0.0
    %2185 = vmatpush2.msra.mxu0 0.0
    %2186 = vmatprep.subr.mxu0 0.0
    %2187 = vmatpush2.msra.mxu0 0.0
    %2188 = vmatprep.subr.mxu0 0.0
    %2189 = vmatpush2.msra.mxu0 0.0
    %2190 = vmatprep.subr.mxu0 0.0
    %2191 = vmatpush2.msra.mxu0 0.0
    %2192 = vmatprep.subr.mxu0 0.0
    %2193 = vmatpush2.msra.mxu0 0.0
    %2194 = vmatprep.subr.mxu0 0.0
    %2195 = vmatpush2.msra.mxu0 0.0
    %2196 = vmatprep.subr.mxu0 0.0
    %2197 = vmatpush2.msra.mxu0 0.0
    %2198 = vmatprep.mubr.f32.mxu0 0.0
    %2199 = vmatmul.mubr.f32.gmra.mxu0 %v2132
    %v2200 = vpop.f32.mrf.mxu0
    %v2201 = vadd.f32 0.0, %v2200
    %v2202 = vpop.f32.mrf.mxu0
    %2203 = vdwg.mxu0
    %2204 = vst.msk [vmem:[#allocation2] sm:$0xff] %vm36, %v1982
    %2205 = vst.msk [vmem:[#allocation2 + $0x8] sm:$0xff] %vm36, %v2055
    %2206 = vst.msk [vmem:[#allocation2 + $0x10] sm:$0xff] %vm36, %v2128
    %2207 = vst.msk [vmem:[#allocation2 + $0x18] sm:$0xff] %vm36, %v2201
    // Predicated region
    $region22: #{tpu_custom_call.1} parent=1 // pred_check
      _
    $region23: #{tpu_custom_call.1} parent=1 // pred_check_branch
      %2209 = sbr.rel (0) target = $region25
    $region24: #{tpu_custom_call.1} parent=1 // pred_region
      %s2211 = ssub.s32 512, 512
      %2212 = vsyncadd [#allocation3], %s2211
      %s2213 = sshll.u32 [#allocation2], 4
      %s2214 = int_to_ptr.vmem [resolvable:$true] %s2213
      %2219 = dma.vmem_to_hbm [thread:$0]  %s2214, 512, %s5, [#allocation3], 128, 128, 8
    $region25: #{tpu_custom_call.1} parent=1 // pred_fallthru
      _
    // Predicated region
    $region26: #{tpu_custom_call.1} parent=1 // pred_check
      _
    $region27: #{tpu_custom_call.1} parent=1 // pred_check_branch
      %2221 = sbr.rel (0) target = $region29
    $region28: #{tpu_custom_call.1} parent=1 // pred_region
      %2222 = dma.done [#allocation3], 512
    $region29: #{tpu_custom_call.1} parent=1 // pred_fallthru
      _
    %2223 = vsyncpa [#allocation3], 1

</llo_original>
